<compile_context>
chip_gen: v7x
topology: tpu7x:2x2x1
jax: 0.10.0
libtpu: 0.0.40
codegen_flags: <defaults>
</compile_context>

<pallas_src>
import jax
import jax.numpy as jnp
from jax.experimental import pallas as pl
from jax.experimental.pallas import tpu as pltpu

L, D, N_CLASSES = 1024, 256, 1   # Attn_Net_Gated defaults


def _round_up(x, m):
    return ((x + m - 1) // m) * m


def attn_net_gated_kernel(x_ref, wab_ref, bab_ref, wc_ref, bc_ref, a_ref):
    d = wc_ref.shape[1]

    # f32 tile from HBM; bf16 cast happens here (VPU, hidden under the MXU)
    # instead of as a separate wrapper-side XLA pass over HBM.
    x = x_ref[...].astype(jnp.bfloat16)                                 # [tile_n, L]

    # Fused attention_a / attention_b: one [L, 2D] MXU pass instead of two [L, D].
    pre = jnp.dot(x, wab_ref[...],
                  preferred_element_type=jnp.float32) + bab_ref[...]    # [tile_n, 2D] f32
    a = jnp.tanh(pre[:, :d])             # attention_a: Linear(L, D) + Tanh
    b = jax.nn.sigmoid(pre[:, d:])       # attention_b: Linear(L, D) + Sigmoid

    ab = (a * b).astype(jnp.bfloat16)                                   # [tile_n, D]

    # attention_c: Wc [n_cls, D] contracted with ab [tile_n, D] over D ->
    # lane-dense [n_cls, tile_n] result and stores (no lane-width-1 output).
    s = jax.lax.dot_general(wc_ref[...], ab, (((1,), (1,)), ((), ())),
                            preferred_element_type=jnp.float32)
    a_ref[...] = s + bc_ref[...]                                        # bc: [n_cls, 1]


def attn_net_gated_forward(x, params, *, block_n=2048):
    """x: [N, L] float32.  params = (wa, ba, wb, bb, wc, bc).  Returns (A, x)."""
    wa, ba, wb, bb, wc, bc = params
    N, Lx = x.shape
    n_cls, Dx = wc.shape

    # Fuse the two gate projections into one resident weight/bias (tiny one-time op;
    # in a real model these would be stored fused).
    w_ab = jnp.concatenate([wa, wb], axis=1).astype(jnp.bfloat16)       # [L, 2D]
    b_ab = jnp.concatenate([ba, bb], axis=1).astype(jnp.float32)        # [1, 2D]

    mxu_align = 256                          # multiple of 128 (v5e) / 256 (v6e, v7x)
    block_n = max(mxu_align, _round_up(block_n, mxu_align))
    # >=2 grid steps whenever N allows it (v7x megacore splits the "parallel" axis),
    # capped by block_n so the tile also fits v7x's 64 MiB physical VMEM.
    tile_n = max(mxu_align, min(block_n, _round_up(pl.cdiv(N, 2), mxu_align)))
    grid = (pl.cdiv(N, tile_n),)             # ragged tail -> partial last tile

    # VMEM budget: double-buffered f32 x tile dominates; headroom for the ~1 MiB
    # resident weights and f32 intermediates.  Clamped so the default tile_n=2048
    # stays inside v7x's 64 MiB; grows automatically if block_n is raised on
    # v5e/v6e (128 MiB physical VMEM).
    x_tile_bytes = tile_n * Lx * 4
    vmem_limit = int(min(96 * 1024 * 1024,
                         max(48 * 1024 * 1024, 2 * x_tile_bytes + 24 * 1024 * 1024)))

    a_t = pl.pallas_call(
        attn_net_gated_kernel,
        out_shape=jax.ShapeDtypeStruct((n_cls, N), jnp.float32),
        grid_spec=pltpu.PrefetchScalarGridSpec(
            num_scalar_prefetch=0,
            grid=grid,
            in_specs=[
                pl.BlockSpec((tile_n, Lx), lambda i: (i, 0)),      # x tile (streamed, f32)
                pl.BlockSpec((Lx, 2 * Dx), lambda i: (0, 0)),      # fused Wa|Wb (resident)
                pl.BlockSpec((1, 2 * Dx), lambda i: (0, 0)),       # fused ba|bb (resident)
                pl.BlockSpec((n_cls, Dx), lambda i: (0, 0)),       # Wc (resident)
                pl.BlockSpec((n_cls, 1), lambda i: (0, 0)),        # bc (resident)
            ],
            out_specs=pl.BlockSpec((n_cls, tile_n), lambda i: (0, i)),   # lane-dense A^T
        ),
        compiler_params=pltpu.CompilerParams(
            dimension_semantics=("parallel",),   # no cross-tile carry on N
            vmem_limit_bytes=vmem_limit,
        ),
    )(x, w_ab, b_ab, wc.astype(jnp.bfloat16), bc.astype(jnp.float32))

    A = a_t.T                                  # [N, n_classes] (module layout)
    return A, x


def init_params(key, L_=L, D_=D, n_classes=N_CLASSES):
    """Deterministic PyTorch nn.Linear-style init: U(-1/sqrt(fan_in), 1/sqrt(fan_in))."""
    ks = jax.random.split(key, 6)

    def linear(kw, kb, fin, fout):
        bound = 1.0 / (fin ** 0.5)
        w = jax.random.uniform(kw, (fin, fout), jnp.float32, -bound, bound)
        b = jax.random.uniform(kb, (1, fout), jnp.float32, -bound, bound)
        return w, b

    wa, ba = linear(ks[0], ks[1], L_, D_)             # attention_a Linear(L, D)
    wb, bb = linear(ks[2], ks[3], L_, D_)             # attention_b Linear(L, D)
    wc_t, bc_t = linear(ks[4], ks[5], D_, n_classes)  # attention_c Linear(D, n_classes)
    wc = wc_t.T                                       # [n_classes, D] (PyTorch weight layout)
    bc = bc_t.T                                       # [n_classes, 1]
    return (wa, ba, wb, bb, wc, bc)


def attn_net_gated_ref(x, params):
    """Pure-JAX f32 reference of the PyTorch forward."""
    wa, ba, wb, bb, wc, bc = params
    a = jnp.tanh(x @ wa + ba)
    b = jax.nn.sigmoid(x @ wb + bb)
    A = (a * b) @ wc.T + bc.T
    return A, x


if __name__ == "__main__":
    key = jax.random.PRNGKey(0)
    k_x, k_p = jax.random.split(key)

    N = 64                                            # small bag: 64 instances x 1024-d features
    x = jax.random.normal(k_x, (N, L), dtype=jnp.float32)
    params = init_params(k_p)

    A, x_out = attn_net_gated_forward(x, params)
    jax.block_until_ready((A, x_out))

    assert A.shape == (N, N_CLASSES)
    assert x_out.shape == (N, L)

    # NOTE: bf16 MXU feed (x, Wa|Wb, Wc, a*b) means agreement with the f32
    # reference is ~1e-2 absolute by design; 5e-2 tolerance is the contract.
    A_ref, _ = attn_net_gated_ref(x, params)
    max_err = float(jnp.max(jnp.abs(A - A_ref)))
    assert max_err < 5e-2, f"max |A - A_ref| = {max_err}"
    print("KERNEL_OK")
</pallas_src>

<mosaic_0001>
module attributes {stable_mosaic.version = 11 : i64} {
  func.func @attn_net_gated_kernel(%arg0: i32, %arg1: memref<256x1024xf32, #tpu.memory_space<vmem>>, %arg2: memref<1024x512xbf16, #tpu.memory_space<vmem>>, %arg3: memref<1x512xf32, #tpu.memory_space<vmem>>, %arg4: memref<1x256xbf16, #tpu.memory_space<vmem>>, %arg5: memref<1x1xf32, #tpu.memory_space<vmem>>, %arg6: memref<1x256xf32, #tpu.memory_space<vmem>>) attributes {dimension_semantics = [#tpu.dimension_semantics<parallel>], iteration_bounds = array<i64: 1>, scalar_prefetch = 0 : i64, scratch_operands = 0 : i64, tpu.core_type = #tpu.core_type<tc>, window_params = [{transform_indices = @transform_0, window_bounds = array<i64: 256, 1024>}, {pipeline_mode = #tpu.pipeline_mode<synchronous>, transform_indices = @transform_1, window_bounds = array<i64: 1024, 512>}, {pipeline_mode = #tpu.pipeline_mode<synchronous>, transform_indices = @transform_2, window_bounds = array<i64: 1, 512>}, {pipeline_mode = #tpu.pipeline_mode<synchronous>, transform_indices = @transform_3, window_bounds = array<i64: 1, 256>}, {pipeline_mode = #tpu.pipeline_mode<synchronous>, transform_indices = @transform_4, window_bounds = array<i64: 1, 1>}, {transform_indices = @transform_5, window_bounds = array<i64: 1, 256>}]} {
    %c0 = arith.constant 0 : index
    %c0_0 = arith.constant 0 : index
    %0 = vector.load %arg1[%c0, %c0_0] : memref<256x1024xf32, #tpu.memory_space<vmem>>, vector<256x1024xf32>
    %1 = arith.truncf %0 : vector<256x1024xf32> to vector<256x1024xbf16>
    %c0_1 = arith.constant 0 : index
    %c0_2 = arith.constant 0 : index
    %2 = vector.load %arg2[%c0_1, %c0_2] : memref<1024x512xbf16, #tpu.memory_space<vmem>>, vector<1024x512xbf16>
    %cst = arith.constant dense<0.000000e+00> : vector<256x512xf32>
    %3 = tpu.matmul %1, %2, %cst {dimension_numbers = #tpu.dot_dimension_numbers<[1], [0], [0], [1], [0, 0, 1, 1], [], []>} : vector<256x1024xbf16>, vector<1024x512xbf16>, vector<256x512xf32> -> vector<256x512xf32>
    %c0_3 = arith.constant 0 : index
    %c0_4 = arith.constant 0 : index
    %4 = vector.load %arg3[%c0_3, %c0_4] : memref<1x512xf32, #tpu.memory_space<vmem>>, vector<1x512xf32>
    %5 = vector.broadcast %4 : vector<1x512xf32> to vector<256x512xf32>
    %6 = arith.addf %3, %5 : vector<256x512xf32>
    %7 = vector.extract_strided_slice %6 {offsets = [0, 0], sizes = [256, 256], strides = [1, 1]} : vector<256x512xf32> to vector<256x256xf32>
    %8 = math.tanh %7 : vector<256x256xf32>
    %9 = vector.extract_strided_slice %6 {offsets = [0, 256], sizes = [256, 256], strides = [1, 1]} : vector<256x512xf32> to vector<256x256xf32>
    %10 = arith.negf %9 : vector<256x256xf32>
    %11 = math.exp %10 : vector<256x256xf32>
    %cst_5 = arith.constant 1.000000e+00 : f32
    %12 = vector.broadcast %cst_5 : f32 to vector<256x256xf32>
    %13 = arith.addf %12, %11 : vector<256x256xf32>
    %14 = arith.divf %12, %13 : vector<256x256xf32>
    %15 = arith.mulf %8, %14 : vector<256x256xf32>
    %16 = arith.truncf %15 : vector<256x256xf32> to vector<256x256xbf16>
    %c0_6 = arith.constant 0 : index
    %c0_7 = arith.constant 0 : index
    %17 = vector.load %arg4[%c0_6, %c0_7] : memref<1x256xbf16, #tpu.memory_space<vmem>>, vector<1x256xbf16>
    %cst_8 = arith.constant dense<0.000000e+00> : vector<1x256xf32>
    %18 = tpu.matmul %17, %16, %cst_8 {dimension_numbers = #tpu.dot_dimension_numbers<[1], [1], [0], [0], [0, 0, 1, 0], [], []>} : vector<1x256xbf16>, vector<256x256xbf16>, vector<1x256xf32> -> vector<1x256xf32>
    %c0_9 = arith.constant 0 : index
    %c0_10 = arith.constant 0 : index
    %19 = vector.load %arg5[%c0_9, %c0_10] : memref<1x1xf32, #tpu.memory_space<vmem>>, vector<1x1xf32>
    %20 = vector.broadcast %19 : vector<1x1xf32> to vector<1x256xf32>
    %21 = arith.addf %18, %20 : vector<1x256xf32>
    %c0_11 = arith.constant 0 : index
    %c0_12 = arith.constant 0 : index
    %22 = vector.load %arg6[%c0_11, %c0_12] : memref<1x256xf32, #tpu.memory_space<vmem>>, vector<1x256xf32>
    tpu.vector_store %arg6[%c0_11, %c0_12], %21 {strides = array<i32>} : memref<1x256xf32, #tpu.memory_space<vmem>>, vector<1x256xf32>,
    return
  }
  func.func @transform_0(%arg0: i32) -> (i32, i32) {
    %c0_i32 = arith.constant 0 : i32
    %c0_i32_0 = arith.constant 0 : i32
    return %arg0, %c0_i32 : i32, i32
  }
  func.func @transform_1(%arg0: i32) -> (i32, i32) {
    %c0_i32 = arith.constant 0 : i32
    %c0_i32_0 = arith.constant 0 : i32
    %c0_i32_1 = arith.constant 0 : i32
    return %c0_i32, %c0_i32_0 : i32, i32
  }
  func.func @transform_2(%arg0: i32) -> (i32, i32) {
    %c0_i32 = arith.constant 0 : i32
    %c0_i32_0 = arith.constant 0 : i32
    %c0_i32_1 = arith.constant 0 : i32
    return %c0_i32, %c0_i32_0 : i32, i32
  }
  func.func @transform_3(%arg0: i32) -> (i32, i32) {
    %c0_i32 = arith.constant 0 : i32
    %c0_i32_0 = arith.constant 0 : i32
    %c0_i32_1 = arith.constant 0 : i32
    return %c0_i32, %c0_i32_0 : i32, i32
  }
  func.func @transform_4(%arg0: i32) -> (i32, i32) {
    %c0_i32 = arith.constant 0 : i32
    %c0_i32_0 = arith.constant 0 : i32
    %c0_i32_1 = arith.constant 0 : i32
    return %c0_i32, %c0_i32_0 : i32, i32
  }
  func.func @transform_5(%arg0: i32) -> (i32, i32) {
    %c0_i32 = arith.constant 0 : i32
    %c0_i32_0 = arith.constant 0 : i32
    return %c0_i32, %arg0 : i32, i32
  }
}

</mosaic_0001>

<llo_original>
// kernel: tpu_custom_call.1
$region0: #{tpu_custom_call.1}
  #allocation0 [shape = 'u32[]', space=smem, size = 0x4, offset = 0x4, fixed_abs, tag = 'smem constant byte address 0x4 - core index']
  #allocation1 [shape = 'u32[144,128]{1,0:T(1,128)}', space=vmem, size = 0x12000, scoped, tag = 'internal scratch']
  #allocation2 [shape = 'f32[1,1]{1,0:T(1,128)S(1)}', space=vmem, size = 0x200, scoped, tag = 'scoped memory for tpu_custom_call.1']
  %s0 = inlined_call_operand.hbm [shape: f32[64,1024], index: 0, kind: input, shape index: {}]
  %s1 = inlined_call_operand.hbm [shape: bf16[1024,512], index: 1, kind: input, shape index: {}]
  %s2 = inlined_call_operand.vmem [shape: f32[1,512], index: 2, kind: input, shape index: {}]
  %s3 = inlined_call_operand.vmem [shape: bf16[1,256], index: 3, kind: input, shape index: {}]
  %s4 = inlined_call_operand.<no memory space> [shape: f32[1,1], index: 4, kind: input, shape index: {}]
  %s5 = inlined_call_operand.hbm [shape: f32[1,64], index: 5, kind: output, shape index: {}]
  %s6 = sld [smem:[#allocation0]]
  $region38: #{tpu_custom_call.1} parent=0
    _
  %s8 = ssub.s32 1, %s6
  %s9 = scalar_select 0, %s8, %s6
  %v10 = vstv %s4
  %11 = vst [vmem:[#allocation2] sm:$0x1] %v10
  $region1: #{tpu_custom_call.1} parent=0
    #allocation3 [shape = 'u8[1048576]{0}', space=vmem, size = 0x100000, scoped, tag = 'input window, operand 0, single buffered']
    #allocation4 [shape = 's32[1]{0}', space=sflag, size = 0x4, scoped, tag = 'scoped memory for tpu_custom_call.1']
    #allocation5 [shape = 's32[1]{0}', space=sflag, size = 0x4, scoped, tag = 'scoped memory for tpu_custom_call.1']
    #allocation6 [shape = 'u8[1048576]{0}', space=vmem, size = 0x100000, scoped, tag = 'input window, operand 1, single buffered']
    #allocation7 [shape = 's32[1]{0}', space=sflag, size = 0x4, scoped, tag = 'scoped memory for tpu_custom_call.1']
    #allocation8 [shape = 'u8[1024]{0}', space=vmem, size = 0x400, scoped, tag = 'output window, operand 0, single buffered']
    %12 = vsyncpa [#allocation4], 0
    %13 = vsyncpa [#allocation7], 0
    %14 = vsyncpa [#allocation5], 0
    // Predicated region
    $region2: #{tpu_custom_call.1} parent=1 // pred_check
      _
    $region3: #{tpu_custom_call.1} parent=1 // pred_check_branch
      %16 = sbr.rel (0) target = $region5
    $region4: #{tpu_custom_call.1} parent=1 // pred_region
      %s18 = ssub.s32 32768, 8192
      %19 = vsyncadd [#allocation4], %s18
      %s20 = sshll.u32 [#allocation3], 4
      %s21 = int_to_ptr.vmem [resolvable:$true] %s20
      %26 = dma.hbm_to_vmem [thread:$0]  %s0, 8192, %s21, [#allocation4], 1024, 1024, 64
    $region5: #{tpu_custom_call.1} parent=1 // pred_fallthru
      _
    // Predicated region
    $region6: #{tpu_custom_call.1} parent=1 // pred_check
      _
    $region7: #{tpu_custom_call.1} parent=1 // pred_check_branch
      %28 = sbr.rel (0) target = $region9
    $region8: #{tpu_custom_call.1} parent=1 // pred_region
      %s30 = ssub.s32 32768, 32768
      %31 = vsyncadd [#allocation7], %s30
      %s32 = sshll.u32 [#allocation6], 4
      %s33 = int_to_ptr.vmem [resolvable:$true] %s32
      %38 = dma.hbm_to_vmem [thread:$0]  %s1, 32768, %s33, [#allocation7], 256, 256, 16
    $region9: #{tpu_custom_call.1} parent=1 // pred_fallthru
      _
    // Predicated region
    $region10: #{tpu_custom_call.1} parent=1 // pred_check
      _
    $region11: #{tpu_custom_call.1} parent=1 // pred_check_branch
      %40 = sbr.rel (0) target = $region13
    $region12: #{tpu_custom_call.1} parent=1 // pred_region
      _
    $region13: #{tpu_custom_call.1} parent=1 // pred_fallthru
      _
    // Predicated region
    $region14: #{tpu_custom_call.1} parent=1 // pred_check
      _
    $region15: #{tpu_custom_call.1} parent=1 // pred_check_branch
      %42 = sbr.rel (0) target = $region17
    $region16: #{tpu_custom_call.1} parent=1 // pred_region
      _
    $region17: #{tpu_custom_call.1} parent=1 // pred_fallthru
      _
    // Predicated region
    $region18: #{tpu_custom_call.1} parent=1 // pred_check
      _
    $region19: #{tpu_custom_call.1} parent=1 // pred_check_branch
      %44 = sbr.rel (0) target = $region21
    $region20: #{tpu_custom_call.1} parent=1 // pred_region
      _
    $region21: #{tpu_custom_call.1} parent=1 // pred_fallthru
      _
    // Predicated region
    $region22: #{tpu_custom_call.1} parent=1 // pred_check
      _
    $region23: #{tpu_custom_call.1} parent=1 // pred_check_branch
      %46 = sbr.rel (0) target = $region25
    $region24: #{tpu_custom_call.1} parent=1 // pred_region
      %47 = dma.done [#allocation4], 32768
    $region25: #{tpu_custom_call.1} parent=1 // pred_fallthru
      _
    // Predicated region
    $region26: #{tpu_custom_call.1} parent=1 // pred_check
      _
    $region27: #{tpu_custom_call.1} parent=1 // pred_check_branch
      %49 = sbr.rel (0) target = $region29
    $region28: #{tpu_custom_call.1} parent=1 // pred_region
      %50 = dma.done [#allocation7], 32768
    $region29: #{tpu_custom_call.1} parent=1 // pred_fallthru
      _
    %v51 = vld [vmem:[#allocation3] sm:$0xff]
    %v52 = vld [vmem:[#allocation3 + $0x8] sm:$0xff]
    %v53 = vld [vmem:[#allocation3 + $0x10] sm:$0xff]
    %v54 = vld [vmem:[#allocation3 + $0x18] sm:$0xff]
    %v55 = vld [vmem:[#allocation3 + $0x20] sm:$0xff]
    %v56 = vld [vmem:[#allocation3 + $0x28] sm:$0xff]
    %v57 = vld [vmem:[#allocation3 + $0x30] sm:$0xff]
    %v58 = vld [vmem:[#allocation3 + $0x38] sm:$0xff]
    %v59 = vld [vmem:[#allocation3 + $0x40] sm:$0xff]
    %v60 = vld [vmem:[#allocation3 + $0x48] sm:$0xff]
    %v61 = vld [vmem:[#allocation3 + $0x50] sm:$0xff]
    %v62 = vld [vmem:[#allocation3 + $0x58] sm:$0xff]
    %v63 = vld [vmem:[#allocation3 + $0x60] sm:$0xff]
    %v64 = vld [vmem:[#allocation3 + $0x68] sm:$0xff]
    %v65 = vld [vmem:[#allocation3 + $0x70] sm:$0xff]
    %v66 = vld [vmem:[#allocation3 + $0x78] sm:$0xff]
    %v67 = vld [vmem:[#allocation3 + $0x80] sm:$0xff]
    %v68 = vld [vmem:[#allocation3 + $0x88] sm:$0xff]
    %v69 = vld [vmem:[#allocation3 + $0x90] sm:$0xff]
    %v70 = vld [vmem:[#allocation3 + $0x98] sm:$0xff]
    %v71 = vld [vmem:[#allocation3 + $0xa0] sm:$0xff]
    %v72 = vld [vmem:[#allocation3 + $0xa8] sm:$0xff]
    %v73 = vld [vmem:[#allocation3 + $0xb0] sm:$0xff]
    %v74 = vld [vmem:[#allocation3 + $0xb8] sm:$0xff]
    %v75 = vld [vmem:[#allocation3 + $0xc0] sm:$0xff]
    %v76 = vld [vmem:[#allocation3 + $0xc8] sm:$0xff]
    %v77 = vld [vmem:[#allocation3 + $0xd0] sm:$0xff]
    %v78 = vld [vmem:[#allocation3 + $0xd8] sm:$0xff]
    %v79 = vld [vmem:[#allocation3 + $0xe0] sm:$0xff]
    %v80 = vld [vmem:[#allocation3 + $0xe8] sm:$0xff]
    %v81 = vld [vmem:[#allocation3 + $0xf0] sm:$0xff]
    %v82 = vld [vmem:[#allocation3 + $0xf8] sm:$0xff]
    %v83 = vld [vmem:[#allocation3 + $0x100] sm:$0xff]
    %v84 = vld [vmem:[#allocation3 + $0x108] sm:$0xff]
    %v85 = vld [vmem:[#allocation3 + $0x110] sm:$0xff]
    %v86 = vld [vmem:[#allocation3 + $0x118] sm:$0xff]
    %v87 = vld [vmem:[#allocation3 + $0x120] sm:$0xff]
    %v88 = vld [vmem:[#allocation3 + $0x128] sm:$0xff]
    %v89 = vld [vmem:[#allocation3 + $0x130] sm:$0xff]
    %v90 = vld [vmem:[#allocation3 + $0x138] sm:$0xff]
    %v91 = vld [vmem:[#allocation3 + $0x140] sm:$0xff]
    %v92 = vld [vmem:[#allocation3 + $0x148] sm:$0xff]
    %v93 = vld [vmem:[#allocation3 + $0x150] sm:$0xff]
    %v94 = vld [vmem:[#allocation3 + $0x158] sm:$0xff]
    %v95 = vld [vmem:[#allocation3 + $0x160] sm:$0xff]
    %v96 = vld [vmem:[#allocation3 + $0x168] sm:$0xff]
    %v97 = vld [vmem:[#allocation3 + $0x170] sm:$0xff]
    %v98 = vld [vmem:[#allocation3 + $0x178] sm:$0xff]
    %v99 = vld [vmem:[#allocation3 + $0x180] sm:$0xff]
    %v100 = vld [vmem:[#allocation3 + $0x188] sm:$0xff]
    %v101 = vld [vmem:[#allocation3 + $0x190] sm:$0xff]
    %v102 = vld [vmem:[#allocation3 + $0x198] sm:$0xff]
    %v103 = vld [vmem:[#allocation3 + $0x1a0] sm:$0xff]
    %v104 = vld [vmem:[#allocation3 + $0x1a8] sm:$0xff]
    %v105 = vld [vmem:[#allocation3 + $0x1b0] sm:$0xff]
    %v106 = vld [vmem:[#allocation3 + $0x1b8] sm:$0xff]
    %v107 = vld [vmem:[#allocation3 + $0x1c0] sm:$0xff]
    %v108 = vld [vmem:[#allocation3 + $0x1c8] sm:$0xff]
    %v109 = vld [vmem:[#allocation3 + $0x1d0] sm:$0xff]
    %v110 = vld [vmem:[#allocation3 + $0x1d8] sm:$0xff]
    %v111 = vld [vmem:[#allocation3 + $0x1e0] sm:$0xff]
    %v112 = vld [vmem:[#allocation3 + $0x1e8] sm:$0xff]
    %v113 = vld [vmem:[#allocation3 + $0x1f0] sm:$0xff]
    %v114 = vld [vmem:[#allocation3 + $0x1f8] sm:$0xff]
    %v115 = vld [vmem:[#allocation3 + $0x200] sm:$0xff]
    %v116 = vld [vmem:[#allocation3 + $0x208] sm:$0xff]
    %v117 = vld [vmem:[#allocation3 + $0x210] sm:$0xff]
    %v118 = vld [vmem:[#allocation3 + $0x218] sm:$0xff]
    %v119 = vld [vmem:[#allocation3 + $0x220] sm:$0xff]
    %v120 = vld [vmem:[#allocation3 + $0x228] sm:$0xff]
    %v121 = vld [vmem:[#allocation3 + $0x230] sm:$0xff]
    %v122 = vld [vmem:[#allocation3 + $0x238] sm:$0xff]
    %v123 = vld [vmem:[#allocation3 + $0x240] sm:$0xff]
    %v124 = vld [vmem:[#allocation3 + $0x248] sm:$0xff]
    %v125 = vld [vmem:[#allocation3 + $0x250] sm:$0xff]
    %v126 = vld [vmem:[#allocation3 + $0x258] sm:$0xff]
    %v127 = vld [vmem:[#allocation3 + $0x260] sm:$0xff]
    %v128 = vld [vmem:[#allocation3 + $0x268] sm:$0xff]
    %v129 = vld [vmem:[#allocation3 + $0x270] sm:$0xff]
    %v130 = vld [vmem:[#allocation3 + $0x278] sm:$0xff]
    %v131 = vld [vmem:[#allocation3 + $0x280] sm:$0xff]
    %v132 = vld [vmem:[#allocation3 + $0x288] sm:$0xff]
    %v133 = vld [vmem:[#allocation3 + $0x290] sm:$0xff]
    %v134 = vld [vmem:[#allocation3 + $0x298] sm:$0xff]
    %v135 = vld [vmem:[#allocation3 + $0x2a0] sm:$0xff]
    %v136 = vld [vmem:[#allocation3 + $0x2a8] sm:$0xff]
    %v137 = vld [vmem:[#allocation3 + $0x2b0] sm:$0xff]
    %v138 = vld [vmem:[#allocation3 + $0x2b8] sm:$0xff]
    %v139 = vld [vmem:[#allocation3 + $0x2c0] sm:$0xff]
    %v140 = vld [vmem:[#allocation3 + $0x2c8] sm:$0xff]
    %v141 = vld [vmem:[#allocation3 + $0x2d0] sm:$0xff]
    %v142 = vld [vmem:[#allocation3 + $0x2d8] sm:$0xff]
    %v143 = vld [vmem:[#allocation3 + $0x2e0] sm:$0xff]
    %v144 = vld [vmem:[#allocation3 + $0x2e8] sm:$0xff]
    %v145 = vld [vmem:[#allocation3 + $0x2f0] sm:$0xff]
    %v146 = vld [vmem:[#allocation3 + $0x2f8] sm:$0xff]
    %v147 = vld [vmem:[#allocation3 + $0x300] sm:$0xff]
    %v148 = vld [vmem:[#allocation3 + $0x308] sm:$0xff]
    %v149 = vld [vmem:[#allocation3 + $0x310] sm:$0xff]
    %v150 = vld [vmem:[#allocation3 + $0x318] sm:$0xff]
    %v151 = vld [vmem:[#allocation3 + $0x320] sm:$0xff]
    %v152 = vld [vmem:[#allocation3 + $0x328] sm:$0xff]
    %v153 = vld [vmem:[#allocation3 + $0x330] sm:$0xff]
    %v154 = vld [vmem:[#allocation3 + $0x338] sm:$0xff]
    %v155 = vld [vmem:[#allocation3 + $0x340] sm:$0xff]
    %v156 = vld [vmem:[#allocation3 + $0x348] sm:$0xff]
    %v157 = vld [vmem:[#allocation3 + $0x350] sm:$0xff]
    %v158 = vld [vmem:[#allocation3 + $0x358] sm:$0xff]
    %v159 = vld [vmem:[#allocation3 + $0x360] sm:$0xff]
    %v160 = vld [vmem:[#allocation3 + $0x368] sm:$0xff]
    %v161 = vld [vmem:[#allocation3 + $0x370] sm:$0xff]
    %v162 = vld [vmem:[#allocation3 + $0x378] sm:$0xff]
    %v163 = vld [vmem:[#allocation3 + $0x380] sm:$0xff]
    %v164 = vld [vmem:[#allocation3 + $0x388] sm:$0xff]
    %v165 = vld [vmem:[#allocation3 + $0x390] sm:$0xff]
    %v166 = vld [vmem:[#allocation3 + $0x398] sm:$0xff]
    %v167 = vld [vmem:[#allocation3 + $0x3a0] sm:$0xff]
    %v168 = vld [vmem:[#allocation3 + $0x3a8] sm:$0xff]
    %v169 = vld [vmem:[#allocation3 + $0x3b0] sm:$0xff]
    %v170 = vld [vmem:[#allocation3 + $0x3b8] sm:$0xff]
    %v171 = vld [vmem:[#allocation3 + $0x3c0] sm:$0xff]
    %v172 = vld [vmem:[#allocation3 + $0x3c8] sm:$0xff]
    %v173 = vld [vmem:[#allocation3 + $0x3d0] sm:$0xff]
    %v174 = vld [vmem:[#allocation3 + $0x3d8] sm:$0xff]
    %v175 = vld [vmem:[#allocation3 + $0x3e0] sm:$0xff]
    %v176 = vld [vmem:[#allocation3 + $0x3e8] sm:$0xff]
    %v177 = vld [vmem:[#allocation3 + $0x3f0] sm:$0xff]
    %v178 = vld [vmem:[#allocation3 + $0x3f8] sm:$0xff]
    %v179 = vld [vmem:[#allocation3 + $0x400] sm:$0xff]
    %v180 = vld [vmem:[#allocation3 + $0x408] sm:$0xff]
    %v181 = vld [vmem:[#allocation3 + $0x410] sm:$0xff]
    %v182 = vld [vmem:[#allocation3 + $0x418] sm:$0xff]
    %v183 = vld [vmem:[#allocation3 + $0x420] sm:$0xff]
    %v184 = vld [vmem:[#allocation3 + $0x428] sm:$0xff]
    %v185 = vld [vmem:[#allocation3 + $0x430] sm:$0xff]
    %v186 = vld [vmem:[#allocation3 + $0x438] sm:$0xff]
    %v187 = vld [vmem:[#allocation3 + $0x440] sm:$0xff]
    %v188 = vld [vmem:[#allocation3 + $0x448] sm:$0xff]
    %v189 = vld [vmem:[#allocation3 + $0x450] sm:$0xff]
    %v190 = vld [vmem:[#allocation3 + $0x458] sm:$0xff]
    %v191 = vld [vmem:[#allocation3 + $0x460] sm:$0xff]
    %v192 = vld [vmem:[#allocation3 + $0x468] sm:$0xff]
    %v193 = vld [vmem:[#allocation3 + $0x470] sm:$0xff]
    %v194 = vld [vmem:[#allocation3 + $0x478] sm:$0xff]
    %v195 = vld [vmem:[#allocation3 + $0x480] sm:$0xff]
    %v196 = vld [vmem:[#allocation3 + $0x488] sm:$0xff]
    %v197 = vld [vmem:[#allocation3 + $0x490] sm:$0xff]
    %v198 = vld [vmem:[#allocation3 + $0x498] sm:$0xff]
    %v199 = vld [vmem:[#allocation3 + $0x4a0] sm:$0xff]
    %v200 = vld [vmem:[#allocation3 + $0x4a8] sm:$0xff]
    %v201 = vld [vmem:[#allocation3 + $0x4b0] sm:$0xff]
    %v202 = vld [vmem:[#allocation3 + $0x4b8] sm:$0xff]
    %v203 = vld [vmem:[#allocation3 + $0x4c0] sm:$0xff]
    %v204 = vld [vmem:[#allocation3 + $0x4c8] sm:$0xff]
    %v205 = vld [vmem:[#allocation3 + $0x4d0] sm:$0xff]
    %v206 = vld [vmem:[#allocation3 + $0x4d8] sm:$0xff]
    %v207 = vld [vmem:[#allocation3 + $0x4e0] sm:$0xff]
    %v208 = vld [vmem:[#allocation3 + $0x4e8] sm:$0xff]
    %v209 = vld [vmem:[#allocation3 + $0x4f0] sm:$0xff]
    %v210 = vld [vmem:[#allocation3 + $0x4f8] sm:$0xff]
    %v211 = vld [vmem:[#allocation3 + $0x500] sm:$0xff]
    %v212 = vld [vmem:[#allocation3 + $0x508] sm:$0xff]
    %v213 = vld [vmem:[#allocation3 + $0x510] sm:$0xff]
    %v214 = vld [vmem:[#allocation3 + $0x518] sm:$0xff]
    %v215 = vld [vmem:[#allocation3 + $0x520] sm:$0xff]
    %v216 = vld [vmem:[#allocation3 + $0x528] sm:$0xff]
    %v217 = vld [vmem:[#allocation3 + $0x530] sm:$0xff]
    %v218 = vld [vmem:[#allocation3 + $0x538] sm:$0xff]
    %v219 = vld [vmem:[#allocation3 + $0x540] sm:$0xff]
    %v220 = vld [vmem:[#allocation3 + $0x548] sm:$0xff]
    %v221 = vld [vmem:[#allocation3 + $0x550] sm:$0xff]
    %v222 = vld [vmem:[#allocation3 + $0x558] sm:$0xff]
    %v223 = vld [vmem:[#allocation3 + $0x560] sm:$0xff]
    %v224 = vld [vmem:[#allocation3 + $0x568] sm:$0xff]
    %v225 = vld [vmem:[#allocation3 + $0x570] sm:$0xff]
    %v226 = vld [vmem:[#allocation3 + $0x578] sm:$0xff]
    %v227 = vld [vmem:[#allocation3 + $0x580] sm:$0xff]
    %v228 = vld [vmem:[#allocation3 + $0x588] sm:$0xff]
    %v229 = vld [vmem:[#allocation3 + $0x590] sm:$0xff]
    %v230 = vld [vmem:[#allocation3 + $0x598] sm:$0xff]
    %v231 = vld [vmem:[#allocation3 + $0x5a0] sm:$0xff]
    %v232 = vld [vmem:[#allocation3 + $0x5a8] sm:$0xff]
    %v233 = vld [vmem:[#allocation3 + $0x5b0] sm:$0xff]
    %v234 = vld [vmem:[#allocation3 + $0x5b8] sm:$0xff]
    %v235 = vld [vmem:[#allocation3 + $0x5c0] sm:$0xff]
    %v236 = vld [vmem:[#allocation3 + $0x5c8] sm:$0xff]
    %v237 = vld [vmem:[#allocation3 + $0x5d0] sm:$0xff]
    %v238 = vld [vmem:[#allocation3 + $0x5d8] sm:$0xff]
    %v239 = vld [vmem:[#allocation3 + $0x5e0] sm:$0xff]
    %v240 = vld [vmem:[#allocation3 + $0x5e8] sm:$0xff]
    %v241 = vld [vmem:[#allocation3 + $0x5f0] sm:$0xff]
    %v242 = vld [vmem:[#allocation3 + $0x5f8] sm:$0xff]
    %v243 = vld [vmem:[#allocation3 + $0x600] sm:$0xff]
    %v244 = vld [vmem:[#allocation3 + $0x608] sm:$0xff]
    %v245 = vld [vmem:[#allocation3 + $0x610] sm:$0xff]
    %v246 = vld [vmem:[#allocation3 + $0x618] sm:$0xff]
    %v247 = vld [vmem:[#allocation3 + $0x620] sm:$0xff]
    %v248 = vld [vmem:[#allocation3 + $0x628] sm:$0xff]
    %v249 = vld [vmem:[#allocation3 + $0x630] sm:$0xff]
    %v250 = vld [vmem:[#allocation3 + $0x638] sm:$0xff]
    %v251 = vld [vmem:[#allocation3 + $0x640] sm:$0xff]
    %v252 = vld [vmem:[#allocation3 + $0x648] sm:$0xff]
    %v253 = vld [vmem:[#allocation3 + $0x650] sm:$0xff]
    %v254 = vld [vmem:[#allocation3 + $0x658] sm:$0xff]
    %v255 = vld [vmem:[#allocation3 + $0x660] sm:$0xff]
    %v256 = vld [vmem:[#allocation3 + $0x668] sm:$0xff]
    %v257 = vld [vmem:[#allocation3 + $0x670] sm:$0xff]
    %v258 = vld [vmem:[#allocation3 + $0x678] sm:$0xff]
    %v259 = vld [vmem:[#allocation3 + $0x680] sm:$0xff]
    %v260 = vld [vmem:[#allocation3 + $0x688] sm:$0xff]
    %v261 = vld [vmem:[#allocation3 + $0x690] sm:$0xff]
    %v262 = vld [vmem:[#allocation3 + $0x698] sm:$0xff]
    %v263 = vld [vmem:[#allocation3 + $0x6a0] sm:$0xff]
    %v264 = vld [vmem:[#allocation3 + $0x6a8] sm:$0xff]
    %v265 = vld [vmem:[#allocation3 + $0x6b0] sm:$0xff]
    %v266 = vld [vmem:[#allocation3 + $0x6b8] sm:$0xff]
    %v267 = vld [vmem:[#allocation3 + $0x6c0] sm:$0xff]
    %v268 = vld [vmem:[#allocation3 + $0x6c8] sm:$0xff]
    %v269 = vld [vmem:[#allocation3 + $0x6d0] sm:$0xff]
    %v270 = vld [vmem:[#allocation3 + $0x6d8] sm:$0xff]
    %v271 = vld [vmem:[#allocation3 + $0x6e0] sm:$0xff]
    %v272 = vld [vmem:[#allocation3 + $0x6e8] sm:$0xff]
    %v273 = vld [vmem:[#allocation3 + $0x6f0] sm:$0xff]
    %v274 = vld [vmem:[#allocation3 + $0x6f8] sm:$0xff]
    %v275 = vld [vmem:[#allocation3 + $0x700] sm:$0xff]
    %v276 = vld [vmem:[#allocation3 + $0x708] sm:$0xff]
    %v277 = vld [vmem:[#allocation3 + $0x710] sm:$0xff]
    %v278 = vld [vmem:[#allocation3 + $0x718] sm:$0xff]
    %v279 = vld [vmem:[#allocation3 + $0x720] sm:$0xff]
    %v280 = vld [vmem:[#allocation3 + $0x728] sm:$0xff]
    %v281 = vld [vmem:[#allocation3 + $0x730] sm:$0xff]
    %v282 = vld [vmem:[#allocation3 + $0x738] sm:$0xff]
    %v283 = vld [vmem:[#allocation3 + $0x740] sm:$0xff]
    %v284 = vld [vmem:[#allocation3 + $0x748] sm:$0xff]
    %v285 = vld [vmem:[#allocation3 + $0x750] sm:$0xff]
    %v286 = vld [vmem:[#allocation3 + $0x758] sm:$0xff]
    %v287 = vld [vmem:[#allocation3 + $0x760] sm:$0xff]
    %v288 = vld [vmem:[#allocation3 + $0x768] sm:$0xff]
    %v289 = vld [vmem:[#allocation3 + $0x770] sm:$0xff]
    %v290 = vld [vmem:[#allocation3 + $0x778] sm:$0xff]
    %v291 = vld [vmem:[#allocation3 + $0x780] sm:$0xff]
    %v292 = vld [vmem:[#allocation3 + $0x788] sm:$0xff]
    %v293 = vld [vmem:[#allocation3 + $0x790] sm:$0xff]
    %v294 = vld [vmem:[#allocation3 + $0x798] sm:$0xff]
    %v295 = vld [vmem:[#allocation3 + $0x7a0] sm:$0xff]
    %v296 = vld [vmem:[#allocation3 + $0x7a8] sm:$0xff]
    %v297 = vld [vmem:[#allocation3 + $0x7b0] sm:$0xff]
    %v298 = vld [vmem:[#allocation3 + $0x7b8] sm:$0xff]
    %v299 = vld [vmem:[#allocation3 + $0x7c0] sm:$0xff]
    %v300 = vld [vmem:[#allocation3 + $0x7c8] sm:$0xff]
    %v301 = vld [vmem:[#allocation3 + $0x7d0] sm:$0xff]
    %v302 = vld [vmem:[#allocation3 + $0x7d8] sm:$0xff]
    %v303 = vld [vmem:[#allocation3 + $0x7e0] sm:$0xff]
    %v304 = vld [vmem:[#allocation3 + $0x7e8] sm:$0xff]
    %v305 = vld [vmem:[#allocation3 + $0x7f0] sm:$0xff]
    %v306 = vld [vmem:[#allocation3 + $0x7f8] sm:$0xff]
    %v307 = vpack.c.bf16 %v59, %v51
    %v308 = vpack.c.bf16 %v60, %v52
    %v309 = vpack.c.bf16 %v61, %v53
    %v310 = vpack.c.bf16 %v62, %v54
    %v311 = vpack.c.bf16 %v63, %v55
    %v312 = vpack.c.bf16 %v64, %v56
    %v313 = vpack.c.bf16 %v65, %v57
    %v314 = vpack.c.bf16 %v66, %v58
    %v315 = vpack.c.bf16 %v75, %v67
    %v316 = vpack.c.bf16 %v76, %v68
    %v317 = vpack.c.bf16 %v77, %v69
    %v318 = vpack.c.bf16 %v78, %v70
    %v319 = vpack.c.bf16 %v79, %v71
    %v320 = vpack.c.bf16 %v80, %v72
    %v321 = vpack.c.bf16 %v81, %v73
    %v322 = vpack.c.bf16 %v82, %v74
    %v323 = vpack.c.bf16 %v91, %v83
    %v324 = vpack.c.bf16 %v92, %v84
    %v325 = vpack.c.bf16 %v93, %v85
    %v326 = vpack.c.bf16 %v94, %v86
    %v327 = vpack.c.bf16 %v95, %v87
    %v328 = vpack.c.bf16 %v96, %v88
    %v329 = vpack.c.bf16 %v97, %v89
    %v330 = vpack.c.bf16 %v98, %v90
    %v331 = vpack.c.bf16 %v107, %v99
    %v332 = vpack.c.bf16 %v108, %v100
    %v333 = vpack.c.bf16 %v109, %v101
    %v334 = vpack.c.bf16 %v110, %v102
    %v335 = vpack.c.bf16 %v111, %v103
    %v336 = vpack.c.bf16 %v112, %v104
    %v337 = vpack.c.bf16 %v113, %v105
    %v338 = vpack.c.bf16 %v114, %v106
    %v339 = vpack.c.bf16 %v123, %v115
    %v340 = vpack.c.bf16 %v124, %v116
    %v341 = vpack.c.bf16 %v125, %v117
    %v342 = vpack.c.bf16 %v126, %v118
    %v343 = vpack.c.bf16 %v127, %v119
    %v344 = vpack.c.bf16 %v128, %v120
    %v345 = vpack.c.bf16 %v129, %v121
    %v346 = vpack.c.bf16 %v130, %v122
    %v347 = vpack.c.bf16 %v139, %v131
    %v348 = vpack.c.bf16 %v140, %v132
    %v349 = vpack.c.bf16 %v141, %v133
    %v350 = vpack.c.bf16 %v142, %v134
    %v351 = vpack.c.bf16 %v143, %v135
    %v352 = vpack.c.bf16 %v144, %v136
    %v353 = vpack.c.bf16 %v145, %v137
    %v354 = vpack.c.bf16 %v146, %v138
    %v355 = vpack.c.bf16 %v155, %v147
    %v356 = vpack.c.bf16 %v156, %v148
    %v357 = vpack.c.bf16 %v157, %v149
    %v358 = vpack.c.bf16 %v158, %v150
    %v359 = vpack.c.bf16 %v159, %v151
    %v360 = vpack.c.bf16 %v160, %v152
    %v361 = vpack.c.bf16 %v161, %v153
    %v362 = vpack.c.bf16 %v162, %v154
    %v363 = vpack.c.bf16 %v171, %v163
    %v364 = vpack.c.bf16 %v172, %v164
    %v365 = vpack.c.bf16 %v173, %v165
    %v366 = vpack.c.bf16 %v174, %v166
    %v367 = vpack.c.bf16 %v175, %v167
    %v368 = vpack.c.bf16 %v176, %v168
    %v369 = vpack.c.bf16 %v177, %v169
    %v370 = vpack.c.bf16 %v178, %v170
    %v371 = vpack.c.bf16 %v187, %v179
    %v372 = vpack.c.bf16 %v188, %v180
    %v373 = vpack.c.bf16 %v189, %v181
    %v374 = vpack.c.bf16 %v190, %v182
    %v375 = vpack.c.bf16 %v191, %v183
    %v376 = vpack.c.bf16 %v192, %v184
    %v377 = vpack.c.bf16 %v193, %v185
    %v378 = vpack.c.bf16 %v194, %v186
    %v379 = vpack.c.bf16 %v203, %v195
    %v380 = vpack.c.bf16 %v204, %v196
    %v381 = vpack.c.bf16 %v205, %v197
    %v382 = vpack.c.bf16 %v206, %v198
    %v383 = vpack.c.bf16 %v207, %v199
    %v384 = vpack.c.bf16 %v208, %v200
    %v385 = vpack.c.bf16 %v209, %v201
    %v386 = vpack.c.bf16 %v210, %v202
    %v387 = vpack.c.bf16 %v219, %v211
    %v388 = vpack.c.bf16 %v220, %v212
    %v389 = vpack.c.bf16 %v221, %v213
    %v390 = vpack.c.bf16 %v222, %v214
    %v391 = vpack.c.bf16 %v223, %v215
    %v392 = vpack.c.bf16 %v224, %v216
    %v393 = vpack.c.bf16 %v225, %v217
    %v394 = vpack.c.bf16 %v226, %v218
    %v395 = vpack.c.bf16 %v235, %v227
    %v396 = vpack.c.bf16 %v236, %v228
    %v397 = vpack.c.bf16 %v237, %v229
    %v398 = vpack.c.bf16 %v238, %v230
    %v399 = vpack.c.bf16 %v239, %v231
    %v400 = vpack.c.bf16 %v240, %v232
    %v401 = vpack.c.bf16 %v241, %v233
    %v402 = vpack.c.bf16 %v242, %v234
    %v403 = vpack.c.bf16 %v251, %v243
    %v404 = vpack.c.bf16 %v252, %v244
    %v405 = vpack.c.bf16 %v253, %v245
    %v406 = vpack.c.bf16 %v254, %v246
    %v407 = vpack.c.bf16 %v255, %v247
    %v408 = vpack.c.bf16 %v256, %v248
    %v409 = vpack.c.bf16 %v257, %v249
    %v410 = vpack.c.bf16 %v258, %v250
    %v411 = vpack.c.bf16 %v267, %v259
    %v412 = vpack.c.bf16 %v268, %v260
    %v413 = vpack.c.bf16 %v269, %v261
    %v414 = vpack.c.bf16 %v270, %v262
    %v415 = vpack.c.bf16 %v271, %v263
    %v416 = vpack.c.bf16 %v272, %v264
    %v417 = vpack.c.bf16 %v273, %v265
    %v418 = vpack.c.bf16 %v274, %v266
    %v419 = vpack.c.bf16 %v283, %v275
    %v420 = vpack.c.bf16 %v284, %v276
    %v421 = vpack.c.bf16 %v285, %v277
    %v422 = vpack.c.bf16 %v286, %v278
    %v423 = vpack.c.bf16 %v287, %v279
    %v424 = vpack.c.bf16 %v288, %v280
    %v425 = vpack.c.bf16 %v289, %v281
    %v426 = vpack.c.bf16 %v290, %v282
    %v427 = vpack.c.bf16 %v299, %v291
    %v428 = vpack.c.bf16 %v300, %v292
    %v429 = vpack.c.bf16 %v301, %v293
    %v430 = vpack.c.bf16 %v302, %v294
    %v431 = vpack.c.bf16 %v303, %v295
    %v432 = vpack.c.bf16 %v304, %v296
    %v433 = vpack.c.bf16 %v305, %v297
    %v434 = vpack.c.bf16 %v306, %v298
    %v435 = vld [vmem:[#allocation6] sm:$0xff]
    %v436 = vld [vmem:[#allocation6 + $0x8] sm:$0xff]
    %v437 = vld [vmem:[#allocation6 + $0x10] sm:$0xff]
    %v438 = vld [vmem:[#allocation6 + $0x18] sm:$0xff]
    %v439 = vld [vmem:[#allocation6 + $0x20] sm:$0xff]
    %v440 = vld [vmem:[#allocation6 + $0x28] sm:$0xff]
    %v441 = vld [vmem:[#allocation6 + $0x30] sm:$0xff]
    %v442 = vld [vmem:[#allocation6 + $0x38] sm:$0xff]
    %v443 = vld [vmem:[#allocation6 + $0x40] sm:$0xff]
    %v444 = vld [vmem:[#allocation6 + $0x48] sm:$0xff]
    %v445 = vld [vmem:[#allocation6 + $0x50] sm:$0xff]
    %v446 = vld [vmem:[#allocation6 + $0x58] sm:$0xff]
    %v447 = vld [vmem:[#allocation6 + $0x60] sm:$0xff]
    %v448 = vld [vmem:[#allocation6 + $0x68] sm:$0xff]
    %v449 = vld [vmem:[#allocation6 + $0x70] sm:$0xff]
    %v450 = vld [vmem:[#allocation6 + $0x78] sm:$0xff]
    %v451 = vld [vmem:[#allocation6 + $0x80] sm:$0xff]
    %v452 = vld [vmem:[#allocation6 + $0x88] sm:$0xff]
    %v453 = vld [vmem:[#allocation6 + $0x90] sm:$0xff]
    %v454 = vld [vmem:[#allocation6 + $0x98] sm:$0xff]
    %v455 = vld [vmem:[#allocation6 + $0xa0] sm:$0xff]
    %v456 = vld [vmem:[#allocation6 + $0xa8] sm:$0xff]
    %v457 = vld [vmem:[#allocation6 + $0xb0] sm:$0xff]
    %v458 = vld [vmem:[#allocation6 + $0xb8] sm:$0xff]
    %v459 = vld [vmem:[#allocation6 + $0xc0] sm:$0xff]
    %v460 = vld [vmem:[#allocation6 + $0xc8] sm:$0xff]
    %v461 = vld [vmem:[#allocation6 + $0xd0] sm:$0xff]
    %v462 = vld [vmem:[#allocation6 + $0xd8] sm:$0xff]
    %v463 = vld [vmem:[#allocation6 + $0xe0] sm:$0xff]
    %v464 = vld [vmem:[#allocation6 + $0xe8] sm:$0xff]
    %v465 = vld [vmem:[#allocation6 + $0xf0] sm:$0xff]
    %v466 = vld [vmem:[#allocation6 + $0xf8] sm:$0xff]
    %v467 = vld [vmem:[#allocation6 + $0x100] sm:$0xff]
    %v468 = vld [vmem:[#allocation6 + $0x108] sm:$0xff]
    %v469 = vld [vmem:[#allocation6 + $0x110] sm:$0xff]
    %v470 = vld [vmem:[#allocation6 + $0x118] sm:$0xff]
    %v471 = vld [vmem:[#allocation6 + $0x120] sm:$0xff]
    %v472 = vld [vmem:[#allocation6 + $0x128] sm:$0xff]
    %v473 = vld [vmem:[#allocation6 + $0x130] sm:$0xff]
    %v474 = vld [vmem:[#allocation6 + $0x138] sm:$0xff]
    %v475 = vld [vmem:[#allocation6 + $0x140] sm:$0xff]
    %v476 = vld [vmem:[#allocation6 + $0x148] sm:$0xff]
    %v477 = vld [vmem:[#allocation6 + $0x150] sm:$0xff]
    %v478 = vld [vmem:[#allocation6 + $0x158] sm:$0xff]
    %v479 = vld [vmem:[#allocation6 + $0x160] sm:$0xff]
    %v480 = vld [vmem:[#allocation6 + $0x168] sm:$0xff]
    %v481 = vld [vmem:[#allocation6 + $0x170] sm:$0xff]
    %v482 = vld [vmem:[#allocation6 + $0x178] sm:$0xff]
    %v483 = vld [vmem:[#allocation6 + $0x180] sm:$0xff]
    %v484 = vld [vmem:[#allocation6 + $0x188] sm:$0xff]
    %v485 = vld [vmem:[#allocation6 + $0x190] sm:$0xff]
    %v486 = vld [vmem:[#allocation6 + $0x198] sm:$0xff]
    %v487 = vld [vmem:[#allocation6 + $0x1a0] sm:$0xff]
    %v488 = vld [vmem:[#allocation6 + $0x1a8] sm:$0xff]
    %v489 = vld [vmem:[#allocation6 + $0x1b0] sm:$0xff]
    %v490 = vld [vmem:[#allocation6 + $0x1b8] sm:$0xff]
    %v491 = vld [vmem:[#allocation6 + $0x1c0] sm:$0xff]
    %v492 = vld [vmem:[#allocation6 + $0x1c8] sm:$0xff]
    %v493 = vld [vmem:[#allocation6 + $0x1d0] sm:$0xff]
    %v494 = vld [vmem:[#allocation6 + $0x1d8] sm:$0xff]
    %v495 = vld [vmem:[#allocation6 + $0x1e0] sm:$0xff]
    %v496 = vld [vmem:[#allocation6 + $0x1e8] sm:$0xff]
    %v497 = vld [vmem:[#allocation6 + $0x1f0] sm:$0xff]
    %v498 = vld [vmem:[#allocation6 + $0x1f8] sm:$0xff]
    %v499 = vld [vmem:[#allocation6 + $0x200] sm:$0xff]
    %v500 = vld [vmem:[#allocation6 + $0x208] sm:$0xff]
    %v501 = vld [vmem:[#allocation6 + $0x210] sm:$0xff]
    %v502 = vld [vmem:[#allocation6 + $0x218] sm:$0xff]
    %v503 = vld [vmem:[#allocation6 + $0x220] sm:$0xff]
    %v504 = vld [vmem:[#allocation6 + $0x228] sm:$0xff]
    %v505 = vld [vmem:[#allocation6 + $0x230] sm:$0xff]
    %v506 = vld [vmem:[#allocation6 + $0x238] sm:$0xff]
    %v507 = vld [vmem:[#allocation6 + $0x240] sm:$0xff]
    %v508 = vld [vmem:[#allocation6 + $0x248] sm:$0xff]
    %v509 = vld [vmem:[#allocation6 + $0x250] sm:$0xff]
    %v510 = vld [vmem:[#allocation6 + $0x258] sm:$0xff]
    %v511 = vld [vmem:[#allocation6 + $0x260] sm:$0xff]
    %v512 = vld [vmem:[#allocation6 + $0x268] sm:$0xff]
    %v513 = vld [vmem:[#allocation6 + $0x270] sm:$0xff]
    %v514 = vld [vmem:[#allocation6 + $0x278] sm:$0xff]
    %v515 = vld [vmem:[#allocation6 + $0x280] sm:$0xff]
    %v516 = vld [vmem:[#allocation6 + $0x288] sm:$0xff]
    %v517 = vld [vmem:[#allocation6 + $0x290] sm:$0xff]
    %v518 = vld [vmem:[#allocation6 + $0x298] sm:$0xff]
    %v519 = vld [vmem:[#allocation6 + $0x2a0] sm:$0xff]
    %v520 = vld [vmem:[#allocation6 + $0x2a8] sm:$0xff]
    %v521 = vld [vmem:[#allocation6 + $0x2b0] sm:$0xff]
    %v522 = vld [vmem:[#allocation6 + $0x2b8] sm:$0xff]
    %v523 = vld [vmem:[#allocation6 + $0x2c0] sm:$0xff]
    %v524 = vld [vmem:[#allocation6 + $0x2c8] sm:$0xff]
    %v525 = vld [vmem:[#allocation6 + $0x2d0] sm:$0xff]
    %v526 = vld [vmem:[#allocation6 + $0x2d8] sm:$0xff]
    %v527 = vld [vmem:[#allocation6 + $0x2e0] sm:$0xff]
    %v528 = vld [vmem:[#allocation6 + $0x2e8] sm:$0xff]
    %v529 = vld [vmem:[#allocation6 + $0x2f0] sm:$0xff]
    %v530 = vld [vmem:[#allocation6 + $0x2f8] sm:$0xff]
    %v531 = vld [vmem:[#allocation6 + $0x300] sm:$0xff]
    %v532 = vld [vmem:[#allocation6 + $0x308] sm:$0xff]
    %v533 = vld [vmem:[#allocation6 + $0x310] sm:$0xff]
    %v534 = vld [vmem:[#allocation6 + $0x318] sm:$0xff]
    %v535 = vld [vmem:[#allocation6 + $0x320] sm:$0xff]
    %v536 = vld [vmem:[#allocation6 + $0x328] sm:$0xff]
    %v537 = vld [vmem:[#allocation6 + $0x330] sm:$0xff]
    %v538 = vld [vmem:[#allocation6 + $0x338] sm:$0xff]
    %v539 = vld [vmem:[#allocation6 + $0x340] sm:$0xff]
    %v540 = vld [vmem:[#allocation6 + $0x348] sm:$0xff]
    %v541 = vld [vmem:[#allocation6 + $0x350] sm:$0xff]
    %v542 = vld [vmem:[#allocation6 + $0x358] sm:$0xff]
    %v543 = vld [vmem:[#allocation6 + $0x360] sm:$0xff]
    %v544 = vld [vmem:[#allocation6 + $0x368] sm:$0xff]
    %v545 = vld [vmem:[#allocation6 + $0x370] sm:$0xff]
    %v546 = vld [vmem:[#allocation6 + $0x378] sm:$0xff]
    %v547 = vld [vmem:[#allocation6 + $0x380] sm:$0xff]
    %v548 = vld [vmem:[#allocation6 + $0x388] sm:$0xff]
    %v549 = vld [vmem:[#allocation6 + $0x390] sm:$0xff]
    %v550 = vld [vmem:[#allocation6 + $0x398] sm:$0xff]
    %v551 = vld [vmem:[#allocation6 + $0x3a0] sm:$0xff]
    %v552 = vld [vmem:[#allocation6 + $0x3a8] sm:$0xff]
    %v553 = vld [vmem:[#allocation6 + $0x3b0] sm:$0xff]
    %v554 = vld [vmem:[#allocation6 + $0x3b8] sm:$0xff]
    %v555 = vld [vmem:[#allocation6 + $0x3c0] sm:$0xff]
    %v556 = vld [vmem:[#allocation6 + $0x3c8] sm:$0xff]
    %v557 = vld [vmem:[#allocation6 + $0x3d0] sm:$0xff]
    %v558 = vld [vmem:[#allocation6 + $0x3d8] sm:$0xff]
    %v559 = vld [vmem:[#allocation6 + $0x3e0] sm:$0xff]
    %v560 = vld [vmem:[#allocation6 + $0x3e8] sm:$0xff]
    %v561 = vld [vmem:[#allocation6 + $0x3f0] sm:$0xff]
    %v562 = vld [vmem:[#allocation6 + $0x3f8] sm:$0xff]
    %v563 = vld [vmem:[#allocation6 + $0x400] sm:$0xff]
    %v564 = vld [vmem:[#allocation6 + $0x408] sm:$0xff]
    %v565 = vld [vmem:[#allocation6 + $0x410] sm:$0xff]
    %v566 = vld [vmem:[#allocation6 + $0x418] sm:$0xff]
    %v567 = vld [vmem:[#allocation6 + $0x420] sm:$0xff]
    %v568 = vld [vmem:[#allocation6 + $0x428] sm:$0xff]
    %v569 = vld [vmem:[#allocation6 + $0x430] sm:$0xff]
    %v570 = vld [vmem:[#allocation6 + $0x438] sm:$0xff]
    %v571 = vld [vmem:[#allocation6 + $0x440] sm:$0xff]
    %v572 = vld [vmem:[#allocation6 + $0x448] sm:$0xff]
    %v573 = vld [vmem:[#allocation6 + $0x450] sm:$0xff]
    %v574 = vld [vmem:[#allocation6 + $0x458] sm:$0xff]
    %v575 = vld [vmem:[#allocation6 + $0x460] sm:$0xff]
    %v576 = vld [vmem:[#allocation6 + $0x468] sm:$0xff]
    %v577 = vld [vmem:[#allocation6 + $0x470] sm:$0xff]
    %v578 = vld [vmem:[#allocation6 + $0x478] sm:$0xff]
    %v579 = vld [vmem:[#allocation6 + $0x480] sm:$0xff]
    %v580 = vld [vmem:[#allocation6 + $0x488] sm:$0xff]
    %v581 = vld [vmem:[#allocation6 + $0x490] sm:$0xff]
    %v582 = vld [vmem:[#allocation6 + $0x498] sm:$0xff]
    %v583 = vld [vmem:[#allocation6 + $0x4a0] sm:$0xff]
    %v584 = vld [vmem:[#allocation6 + $0x4a8] sm:$0xff]
    %v585 = vld [vmem:[#allocation6 + $0x4b0] sm:$0xff]
    %v586 = vld [vmem:[#allocation6 + $0x4b8] sm:$0xff]
    %v587 = vld [vmem:[#allocation6 + $0x4c0] sm:$0xff]
    %v588 = vld [vmem:[#allocation6 + $0x4c8] sm:$0xff]
    %v589 = vld [vmem:[#allocation6 + $0x4d0] sm:$0xff]
    %v590 = vld [vmem:[#allocation6 + $0x4d8] sm:$0xff]
    %v591 = vld [vmem:[#allocation6 + $0x4e0] sm:$0xff]
    %v592 = vld [vmem:[#allocation6 + $0x4e8] sm:$0xff]
    %v593 = vld [vmem:[#allocation6 + $0x4f0] sm:$0xff]
    %v594 = vld [vmem:[#allocation6 + $0x4f8] sm:$0xff]
    %v595 = vld [vmem:[#allocation6 + $0x500] sm:$0xff]
    %v596 = vld [vmem:[#allocation6 + $0x508] sm:$0xff]
    %v597 = vld [vmem:[#allocation6 + $0x510] sm:$0xff]
    %v598 = vld [vmem:[#allocation6 + $0x518] sm:$0xff]
    %v599 = vld [vmem:[#allocation6 + $0x520] sm:$0xff]
    %v600 = vld [vmem:[#allocation6 + $0x528] sm:$0xff]
    %v601 = vld [vmem:[#allocation6 + $0x530] sm:$0xff]
    %v602 = vld [vmem:[#allocation6 + $0x538] sm:$0xff]
    %v603 = vld [vmem:[#allocation6 + $0x540] sm:$0xff]
    %v604 = vld [vmem:[#allocation6 + $0x548] sm:$0xff]
    %v605 = vld [vmem:[#allocation6 + $0x550] sm:$0xff]
    %v606 = vld [vmem:[#allocation6 + $0x558] sm:$0xff]
    %v607 = vld [vmem:[#allocation6 + $0x560] sm:$0xff]
    %v608 = vld [vmem:[#allocation6 + $0x568] sm:$0xff]
    %v609 = vld [vmem:[#allocation6 + $0x570] sm:$0xff]
    %v610 = vld [vmem:[#allocation6 + $0x578] sm:$0xff]
    %v611 = vld [vmem:[#allocation6 + $0x580] sm:$0xff]
    %v612 = vld [vmem:[#allocation6 + $0x588] sm:$0xff]
    %v613 = vld [vmem:[#allocation6 + $0x590] sm:$0xff]
    %v614 = vld [vmem:[#allocation6 + $0x598] sm:$0xff]
    %v615 = vld [vmem:[#allocation6 + $0x5a0] sm:$0xff]
    %v616 = vld [vmem:[#allocation6 + $0x5a8] sm:$0xff]
    %v617 = vld [vmem:[#allocation6 + $0x5b0] sm:$0xff]
    %v618 = vld [vmem:[#allocation6 + $0x5b8] sm:$0xff]
    %v619 = vld [vmem:[#allocation6 + $0x5c0] sm:$0xff]
    %v620 = vld [vmem:[#allocation6 + $0x5c8] sm:$0xff]
    %v621 = vld [vmem:[#allocation6 + $0x5d0] sm:$0xff]
    %v622 = vld [vmem:[#allocation6 + $0x5d8] sm:$0xff]
    %v623 = vld [vmem:[#allocation6 + $0x5e0] sm:$0xff]
    %v624 = vld [vmem:[#allocation6 + $0x5e8] sm:$0xff]
    %v625 = vld [vmem:[#allocation6 + $0x5f0] sm:$0xff]
    %v626 = vld [vmem:[#allocation6 + $0x5f8] sm:$0xff]
    %v627 = vld [vmem:[#allocation6 + $0x600] sm:$0xff]
    %v628 = vld [vmem:[#allocation6 + $0x608] sm:$0xff]
    %v629 = vld [vmem:[#allocation6 + $0x610] sm:$0xff]
    %v630 = vld [vmem:[#allocation6 + $0x618] sm:$0xff]
    %v631 = vld [vmem:[#allocation6 + $0x620] sm:$0xff]
    %v632 = vld [vmem:[#allocation6 + $0x628] sm:$0xff]
    %v633 = vld [vmem:[#allocation6 + $0x630] sm:$0xff]
    %v634 = vld [vmem:[#allocation6 + $0x638] sm:$0xff]
    %v635 = vld [vmem:[#allocation6 + $0x640] sm:$0xff]
    %v636 = vld [vmem:[#allocation6 + $0x648] sm:$0xff]
    %v637 = vld [vmem:[#allocation6 + $0x650] sm:$0xff]
    %v638 = vld [vmem:[#allocation6 + $0x658] sm:$0xff]
    %v639 = vld [vmem:[#allocation6 + $0x660] sm:$0xff]
    %v640 = vld [vmem:[#allocation6 + $0x668] sm:$0xff]
    %v641 = vld [vmem:[#allocation6 + $0x670] sm:$0xff]
    %v642 = vld [vmem:[#allocation6 + $0x678] sm:$0xff]
    %v643 = vld [vmem:[#allocation6 + $0x680] sm:$0xff]
    %v644 = vld [vmem:[#allocation6 + $0x688] sm:$0xff]
    %v645 = vld [vmem:[#allocation6 + $0x690] sm:$0xff]
    %v646 = vld [vmem:[#allocation6 + $0x698] sm:$0xff]
    %v647 = vld [vmem:[#allocation6 + $0x6a0] sm:$0xff]
    %v648 = vld [vmem:[#allocation6 + $0x6a8] sm:$0xff]
    %v649 = vld [vmem:[#allocation6 + $0x6b0] sm:$0xff]
    %v650 = vld [vmem:[#allocation6 + $0x6b8] sm:$0xff]
    %v651 = vld [vmem:[#allocation6 + $0x6c0] sm:$0xff]
    %v652 = vld [vmem:[#allocation6 + $0x6c8] sm:$0xff]
    %v653 = vld [vmem:[#allocation6 + $0x6d0] sm:$0xff]
    %v654 = vld [vmem:[#allocation6 + $0x6d8] sm:$0xff]
    %v655 = vld [vmem:[#allocation6 + $0x6e0] sm:$0xff]
    %v656 = vld [vmem:[#allocation6 + $0x6e8] sm:$0xff]
    %v657 = vld [vmem:[#allocation6 + $0x6f0] sm:$0xff]
    %v658 = vld [vmem:[#allocation6 + $0x6f8] sm:$0xff]
    %v659 = vld [vmem:[#allocation6 + $0x700] sm:$0xff]
    %v660 = vld [vmem:[#allocation6 + $0x708] sm:$0xff]
    %v661 = vld [vmem:[#allocation6 + $0x710] sm:$0xff]
    %v662 = vld [vmem:[#allocation6 + $0x718] sm:$0xff]
    %v663 = vld [vmem:[#allocation6 + $0x720] sm:$0xff]
    %v664 = vld [vmem:[#allocation6 + $0x728] sm:$0xff]
    %v665 = vld [vmem:[#allocation6 + $0x730] sm:$0xff]
    %v666 = vld [vmem:[#allocation6 + $0x738] sm:$0xff]
    %v667 = vld [vmem:[#allocation6 + $0x740] sm:$0xff]
    %v668 = vld [vmem:[#allocation6 + $0x748] sm:$0xff]
    %v669 = vld [vmem:[#allocation6 + $0x750] sm:$0xff]
    %v670 = vld [vmem:[#allocation6 + $0x758] sm:$0xff]
    %v671 = vld [vmem:[#allocation6 + $0x760] sm:$0xff]
    %v672 = vld [vmem:[#allocation6 + $0x768] sm:$0xff]
    %v673 = vld [vmem:[#allocation6 + $0x770] sm:$0xff]
    %v674 = vld [vmem:[#allocation6 + $0x778] sm:$0xff]
    %v675 = vld [vmem:[#allocation6 + $0x780] sm:$0xff]
    %v676 = vld [vmem:[#allocation6 + $0x788] sm:$0xff]
    %v677 = vld [vmem:[#allocation6 + $0x790] sm:$0xff]
    %v678 = vld [vmem:[#allocation6 + $0x798] sm:$0xff]
    %v679 = vld [vmem:[#allocation6 + $0x7a0] sm:$0xff]
    %v680 = vld [vmem:[#allocation6 + $0x7a8] sm:$0xff]
    %v681 = vld [vmem:[#allocation6 + $0x7b0] sm:$0xff]
    %v682 = vld [vmem:[#allocation6 + $0x7b8] sm:$0xff]
    %v683 = vld [vmem:[#allocation6 + $0x7c0] sm:$0xff]
    %v684 = vld [vmem:[#allocation6 + $0x7c8] sm:$0xff]
    %v685 = vld [vmem:[#allocation6 + $0x7d0] sm:$0xff]
    %v686 = vld [vmem:[#allocation6 + $0x7d8] sm:$0xff]
    %v687 = vld [vmem:[#allocation6 + $0x7e0] sm:$0xff]
    %v688 = vld [vmem:[#allocation6 + $0x7e8] sm:$0xff]
    %v689 = vld [vmem:[#allocation6 + $0x7f0] sm:$0xff]
    %v690 = vld [vmem:[#allocation6 + $0x7f8] sm:$0xff]
    %v691 = vld [vmem:[%s2] sm:$0xf]
    %v693 = vlaneseq
    %v694 = vshrl.u32 %v693, 7
    %v695 = vsub.s32 0, %v694
    %v696 = vrot.slane %v691, %v695
    %v697 = vlaneseq
    %v698 = vshrl.u32 %v697, 7
    %v699 = vsub.s32 1, %v698
    %v700 = vrot.slane %v691, %v699
    %v701 = vlaneseq
    %v702 = vshrl.u32 %v701, 7
    %v703 = vsub.s32 2, %v702
    %v704 = vrot.slane %v691, %v703
    %v705 = vlaneseq
    %v706 = vshrl.u32 %v705, 7
    %v707 = vsub.s32 3, %v706
    %v708 = vrot.slane %v691, %v707
    %v969 = vunpack.c.l.b16 %v435
    %v970 = vunpack.c.h.b16 %v435
    %v971 = vunpack.c.l.b16 %v436
    %v972 = vunpack.c.h.b16 %v436
    %v973 = vunpack.c.l.b16 %v437
    %v974 = vunpack.c.h.b16 %v437
    %v975 = vunpack.c.l.b16 %v438
    %v976 = vunpack.c.h.b16 %v438
    %v977 = vunpack.c.l.b16 %v439
    %v978 = vunpack.c.h.b16 %v439
    %v979 = vunpack.c.l.b16 %v440
    %v980 = vunpack.c.h.b16 %v440
    %v981 = vunpack.c.l.b16 %v441
    %v982 = vunpack.c.h.b16 %v441
    %v983 = vunpack.c.l.b16 %v442
    %v984 = vunpack.c.h.b16 %v442
    %v985 = vunpack.c.l.b16 %v443
    %v986 = vunpack.c.h.b16 %v443
    %v987 = vunpack.c.l.b16 %v444
    %v988 = vunpack.c.h.b16 %v444
    %v989 = vunpack.c.l.b16 %v445
    %v990 = vunpack.c.h.b16 %v445
    %v991 = vunpack.c.l.b16 %v446
    %v992 = vunpack.c.h.b16 %v446
    %v993 = vunpack.c.l.b16 %v447
    %v994 = vunpack.c.h.b16 %v447
    %v995 = vunpack.c.l.b16 %v448
    %v996 = vunpack.c.h.b16 %v448
    %v997 = vunpack.c.l.b16 %v449
    %v998 = vunpack.c.h.b16 %v449
    %v999 = vunpack.c.l.b16 %v450
    %v1000 = vunpack.c.h.b16 %v450
    %v1001 = vunpack.c.l.b16 %v451
    %v1002 = vunpack.c.h.b16 %v451
    %v1003 = vunpack.c.l.b16 %v452
    %v1004 = vunpack.c.h.b16 %v452
    %v1005 = vunpack.c.l.b16 %v453
    %v1006 = vunpack.c.h.b16 %v453
    %v1007 = vunpack.c.l.b16 %v454
    %v1008 = vunpack.c.h.b16 %v454
    %v1009 = vunpack.c.l.b16 %v455
    %v1010 = vunpack.c.h.b16 %v455
    %v1011 = vunpack.c.l.b16 %v456
    %v1012 = vunpack.c.h.b16 %v456
    %v1013 = vunpack.c.l.b16 %v457
    %v1014 = vunpack.c.h.b16 %v457
    %v1015 = vunpack.c.l.b16 %v458
    %v1016 = vunpack.c.h.b16 %v458
    %v1017 = vunpack.c.l.b16 %v459
    %v1018 = vunpack.c.h.b16 %v459
    %v1019 = vunpack.c.l.b16 %v460
    %v1020 = vunpack.c.h.b16 %v460
    %v1021 = vunpack.c.l.b16 %v461
    %v1022 = vunpack.c.h.b16 %v461
    %v1023 = vunpack.c.l.b16 %v462
    %v1024 = vunpack.c.h.b16 %v462
    %v1025 = vunpack.c.l.b16 %v463
    %v1026 = vunpack.c.h.b16 %v463
    %v1027 = vunpack.c.l.b16 %v464
    %v1028 = vunpack.c.h.b16 %v464
    %v1029 = vunpack.c.l.b16 %v465
    %v1030 = vunpack.c.h.b16 %v465
    %v1031 = vunpack.c.l.b16 %v466
    %v1032 = vunpack.c.h.b16 %v466
    %v1033 = vunpack.c.l.b16 %v467
    %v1034 = vunpack.c.h.b16 %v467
    %v1035 = vunpack.c.l.b16 %v468
    %v1036 = vunpack.c.h.b16 %v468
    %v1037 = vunpack.c.l.b16 %v469
    %v1038 = vunpack.c.h.b16 %v469
    %v1039 = vunpack.c.l.b16 %v470
    %v1040 = vunpack.c.h.b16 %v470
    %v1041 = vunpack.c.l.b16 %v471
    %v1042 = vunpack.c.h.b16 %v471
    %v1043 = vunpack.c.l.b16 %v472
    %v1044 = vunpack.c.h.b16 %v472
    %v1045 = vunpack.c.l.b16 %v473
    %v1046 = vunpack.c.h.b16 %v473
    %v1047 = vunpack.c.l.b16 %v474
    %v1048 = vunpack.c.h.b16 %v474
    %v1049 = vunpack.c.l.b16 %v475
    %v1050 = vunpack.c.h.b16 %v475
    %v1051 = vunpack.c.l.b16 %v476
    %v1052 = vunpack.c.h.b16 %v476
    %v1053 = vunpack.c.l.b16 %v477
    %v1054 = vunpack.c.h.b16 %v477
    %v1055 = vunpack.c.l.b16 %v478
    %v1056 = vunpack.c.h.b16 %v478
    %v1057 = vunpack.c.l.b16 %v479
    %v1058 = vunpack.c.h.b16 %v479
    %v1059 = vunpack.c.l.b16 %v480
    %v1060 = vunpack.c.h.b16 %v480
    %v1061 = vunpack.c.l.b16 %v481
    %v1062 = vunpack.c.h.b16 %v481
    %v1063 = vunpack.c.l.b16 %v482
    %v1064 = vunpack.c.h.b16 %v482
    %v1065 = vunpack.c.l.b16 %v483
    %v1066 = vunpack.c.h.b16 %v483
    %v1067 = vunpack.c.l.b16 %v484
    %v1068 = vunpack.c.h.b16 %v484
    %v1069 = vunpack.c.l.b16 %v485
    %v1070 = vunpack.c.h.b16 %v485
    %v1071 = vunpack.c.l.b16 %v486
    %v1072 = vunpack.c.h.b16 %v486
    %v1073 = vunpack.c.l.b16 %v487
    %v1074 = vunpack.c.h.b16 %v487
    %v1075 = vunpack.c.l.b16 %v488
    %v1076 = vunpack.c.h.b16 %v488
    %v1077 = vunpack.c.l.b16 %v489
    %v1078 = vunpack.c.h.b16 %v489
    %v1079 = vunpack.c.l.b16 %v490
    %v1080 = vunpack.c.h.b16 %v490
    %v1081 = vunpack.c.l.b16 %v491
    %v1082 = vunpack.c.h.b16 %v491
    %v1083 = vunpack.c.l.b16 %v492
    %v1084 = vunpack.c.h.b16 %v492
    %v1085 = vunpack.c.l.b16 %v493
    %v1086 = vunpack.c.h.b16 %v493
    %v1087 = vunpack.c.l.b16 %v494
    %v1088 = vunpack.c.h.b16 %v494
    %v1089 = vunpack.c.l.b16 %v495
    %v1090 = vunpack.c.h.b16 %v495
    %v1091 = vunpack.c.l.b16 %v496
    %v1092 = vunpack.c.h.b16 %v496
    %v1093 = vunpack.c.l.b16 %v497
    %v1094 = vunpack.c.h.b16 %v497
    %v1095 = vunpack.c.l.b16 %v498
    %v1096 = vunpack.c.h.b16 %v498
    %v1097 = vunpack.c.l.b16 %v499
    %v1098 = vunpack.c.h.b16 %v499
    %v1099 = vunpack.c.l.b16 %v500
    %v1100 = vunpack.c.h.b16 %v500
    %v1101 = vunpack.c.l.b16 %v501
    %v1102 = vunpack.c.h.b16 %v501
    %v1103 = vunpack.c.l.b16 %v502
    %v1104 = vunpack.c.h.b16 %v502
    %v1105 = vunpack.c.l.b16 %v503
    %v1106 = vunpack.c.h.b16 %v503
    %v1107 = vunpack.c.l.b16 %v504
    %v1108 = vunpack.c.h.b16 %v504
    %v1109 = vunpack.c.l.b16 %v505
    %v1110 = vunpack.c.h.b16 %v505
    %v1111 = vunpack.c.l.b16 %v506
    %v1112 = vunpack.c.h.b16 %v506
    %v1113 = vunpack.c.l.b16 %v507
    %v1114 = vunpack.c.h.b16 %v507
    %v1115 = vunpack.c.l.b16 %v508
    %v1116 = vunpack.c.h.b16 %v508
    %v1117 = vunpack.c.l.b16 %v509
    %v1118 = vunpack.c.h.b16 %v509
    %v1119 = vunpack.c.l.b16 %v510
    %v1120 = vunpack.c.h.b16 %v510
    %v1121 = vunpack.c.l.b16 %v511
    %v1122 = vunpack.c.h.b16 %v511
    %v1123 = vunpack.c.l.b16 %v512
    %v1124 = vunpack.c.h.b16 %v512
    %v1125 = vunpack.c.l.b16 %v513
    %v1126 = vunpack.c.h.b16 %v513
    %v1127 = vunpack.c.l.b16 %v514
    %v1128 = vunpack.c.h.b16 %v514
    %v1129 = vunpack.c.l.b16 %v515
    %v1130 = vunpack.c.h.b16 %v515
    %v1131 = vunpack.c.l.b16 %v516
    %v1132 = vunpack.c.h.b16 %v516
    %v1133 = vunpack.c.l.b16 %v517
    %v1134 = vunpack.c.h.b16 %v517
    %v1135 = vunpack.c.l.b16 %v518
    %v1136 = vunpack.c.h.b16 %v518
    %v1137 = vunpack.c.l.b16 %v519
    %v1138 = vunpack.c.h.b16 %v519
    %v1139 = vunpack.c.l.b16 %v520
    %v1140 = vunpack.c.h.b16 %v520
    %v1141 = vunpack.c.l.b16 %v521
    %v1142 = vunpack.c.h.b16 %v521
    %v1143 = vunpack.c.l.b16 %v522
    %v1144 = vunpack.c.h.b16 %v522
    %v1145 = vunpack.c.l.b16 %v523
    %v1146 = vunpack.c.h.b16 %v523
    %v1147 = vunpack.c.l.b16 %v524
    %v1148 = vunpack.c.h.b16 %v524
    %v1149 = vunpack.c.l.b16 %v525
    %v1150 = vunpack.c.h.b16 %v525
    %v1151 = vunpack.c.l.b16 %v526
    %v1152 = vunpack.c.h.b16 %v526
    %v1153 = vunpack.c.l.b16 %v527
    %v1154 = vunpack.c.h.b16 %v527
    %v1155 = vunpack.c.l.b16 %v528
    %v1156 = vunpack.c.h.b16 %v528
    %v1157 = vunpack.c.l.b16 %v529
    %v1158 = vunpack.c.h.b16 %v529
    %v1159 = vunpack.c.l.b16 %v530
    %v1160 = vunpack.c.h.b16 %v530
    %v1161 = vunpack.c.l.b16 %v531
    %v1162 = vunpack.c.h.b16 %v531
    %v1163 = vunpack.c.l.b16 %v532
    %v1164 = vunpack.c.h.b16 %v532
    %v1165 = vunpack.c.l.b16 %v533
    %v1166 = vunpack.c.h.b16 %v533
    %v1167 = vunpack.c.l.b16 %v534
    %v1168 = vunpack.c.h.b16 %v534
    %v1169 = vunpack.c.l.b16 %v535
    %v1170 = vunpack.c.h.b16 %v535
    %v1171 = vunpack.c.l.b16 %v536
    %v1172 = vunpack.c.h.b16 %v536
    %v1173 = vunpack.c.l.b16 %v537
    %v1174 = vunpack.c.h.b16 %v537
    %v1175 = vunpack.c.l.b16 %v538
    %v1176 = vunpack.c.h.b16 %v538
    %v1177 = vunpack.c.l.b16 %v539
    %v1178 = vunpack.c.h.b16 %v539
    %v1179 = vunpack.c.l.b16 %v540
    %v1180 = vunpack.c.h.b16 %v540
    %v1181 = vunpack.c.l.b16 %v541
    %v1182 = vunpack.c.h.b16 %v541
    %v1183 = vunpack.c.l.b16 %v542
    %v1184 = vunpack.c.h.b16 %v542
    %v1185 = vunpack.c.l.b16 %v543
    %v1186 = vunpack.c.h.b16 %v543
    %v1187 = vunpack.c.l.b16 %v544
    %v1188 = vunpack.c.h.b16 %v544
    %v1189 = vunpack.c.l.b16 %v545
    %v1190 = vunpack.c.h.b16 %v545
    %v1191 = vunpack.c.l.b16 %v546
    %v1192 = vunpack.c.h.b16 %v546
    %v1193 = vunpack.c.l.b16 %v547
    %v1194 = vunpack.c.h.b16 %v547
    %v1195 = vunpack.c.l.b16 %v548
    %v1196 = vunpack.c.h.b16 %v548
    %v1197 = vunpack.c.l.b16 %v549
    %v1198 = vunpack.c.h.b16 %v549
    %v1199 = vunpack.c.l.b16 %v550
    %v1200 = vunpack.c.h.b16 %v550
    %v1201 = vunpack.c.l.b16 %v551
    %v1202 = vunpack.c.h.b16 %v551
    %v1203 = vunpack.c.l.b16 %v552
    %v1204 = vunpack.c.h.b16 %v552
    %v1205 = vunpack.c.l.b16 %v553
    %v1206 = vunpack.c.h.b16 %v553
    %v1207 = vunpack.c.l.b16 %v554
    %v1208 = vunpack.c.h.b16 %v554
    %v1209 = vunpack.c.l.b16 %v555
    %v1210 = vunpack.c.h.b16 %v555
    %v1211 = vunpack.c.l.b16 %v556
    %v1212 = vunpack.c.h.b16 %v556
    %v1213 = vunpack.c.l.b16 %v557
    %v1214 = vunpack.c.h.b16 %v557
    %v1215 = vunpack.c.l.b16 %v558
    %v1216 = vunpack.c.h.b16 %v558
    %v1217 = vunpack.c.l.b16 %v559
    %v1218 = vunpack.c.h.b16 %v559
    %v1219 = vunpack.c.l.b16 %v560
    %v1220 = vunpack.c.h.b16 %v560
    %v1221 = vunpack.c.l.b16 %v561
    %v1222 = vunpack.c.h.b16 %v561
    %v1223 = vunpack.c.l.b16 %v562
    %v1224 = vunpack.c.h.b16 %v562
    %v1225 = vunpack.c.l.b16 %v563
    %v1226 = vunpack.c.h.b16 %v563
    %v1227 = vunpack.c.l.b16 %v564
    %v1228 = vunpack.c.h.b16 %v564
    %v1229 = vunpack.c.l.b16 %v565
    %v1230 = vunpack.c.h.b16 %v565
    %v1231 = vunpack.c.l.b16 %v566
    %v1232 = vunpack.c.h.b16 %v566
    %v1233 = vunpack.c.l.b16 %v567
    %v1234 = vunpack.c.h.b16 %v567
    %v1235 = vunpack.c.l.b16 %v568
    %v1236 = vunpack.c.h.b16 %v568
    %v1237 = vunpack.c.l.b16 %v569
    %v1238 = vunpack.c.h.b16 %v569
    %v1239 = vunpack.c.l.b16 %v570
    %v1240 = vunpack.c.h.b16 %v570
    %v1241 = vunpack.c.l.b16 %v571
    %v1242 = vunpack.c.h.b16 %v571
    %v1243 = vunpack.c.l.b16 %v572
    %v1244 = vunpack.c.h.b16 %v572
    %v1245 = vunpack.c.l.b16 %v573
    %v1246 = vunpack.c.h.b16 %v573
    %v1247 = vunpack.c.l.b16 %v574
    %v1248 = vunpack.c.h.b16 %v574
    %v1249 = vunpack.c.l.b16 %v575
    %v1250 = vunpack.c.h.b16 %v575
    %v1251 = vunpack.c.l.b16 %v576
    %v1252 = vunpack.c.h.b16 %v576
    %v1253 = vunpack.c.l.b16 %v577
    %v1254 = vunpack.c.h.b16 %v577
    %v1255 = vunpack.c.l.b16 %v578
    %v1256 = vunpack.c.h.b16 %v578
    %v1257 = vunpack.c.l.b16 %v579
    %v1258 = vunpack.c.h.b16 %v579
    %v1259 = vunpack.c.l.b16 %v580
    %v1260 = vunpack.c.h.b16 %v580
    %v1261 = vunpack.c.l.b16 %v581
    %v1262 = vunpack.c.h.b16 %v581
    %v1263 = vunpack.c.l.b16 %v582
    %v1264 = vunpack.c.h.b16 %v582
    %v1265 = vunpack.c.l.b16 %v583
    %v1266 = vunpack.c.h.b16 %v583
    %v1267 = vunpack.c.l.b16 %v584
    %v1268 = vunpack.c.h.b16 %v584
    %v1269 = vunpack.c.l.b16 %v585
    %v1270 = vunpack.c.h.b16 %v585
    %v1271 = vunpack.c.l.b16 %v586
    %v1272 = vunpack.c.h.b16 %v586
    %v1273 = vunpack.c.l.b16 %v587
    %v1274 = vunpack.c.h.b16 %v587
    %v1275 = vunpack.c.l.b16 %v588
    %v1276 = vunpack.c.h.b16 %v588
    %v1277 = vunpack.c.l.b16 %v589
    %v1278 = vunpack.c.h.b16 %v589
    %v1279 = vunpack.c.l.b16 %v590
    %v1280 = vunpack.c.h.b16 %v590
    %v1281 = vunpack.c.l.b16 %v591
    %v1282 = vunpack.c.h.b16 %v591
    %v1283 = vunpack.c.l.b16 %v592
    %v1284 = vunpack.c.h.b16 %v592
    %v1285 = vunpack.c.l.b16 %v593
    %v1286 = vunpack.c.h.b16 %v593
    %v1287 = vunpack.c.l.b16 %v594
    %v1288 = vunpack.c.h.b16 %v594
    %v1289 = vunpack.c.l.b16 %v595
    %v1290 = vunpack.c.h.b16 %v595
    %v1291 = vunpack.c.l.b16 %v596
    %v1292 = vunpack.c.h.b16 %v596
    %v1293 = vunpack.c.l.b16 %v597
    %v1294 = vunpack.c.h.b16 %v597
    %v1295 = vunpack.c.l.b16 %v598
    %v1296 = vunpack.c.h.b16 %v598
    %v1297 = vunpack.c.l.b16 %v599
    %v1298 = vunpack.c.h.b16 %v599
    %v1299 = vunpack.c.l.b16 %v600
    %v1300 = vunpack.c.h.b16 %v600
    %v1301 = vunpack.c.l.b16 %v601
    %v1302 = vunpack.c.h.b16 %v601
    %v1303 = vunpack.c.l.b16 %v602
    %v1304 = vunpack.c.h.b16 %v602
    %v1305 = vunpack.c.l.b16 %v603
    %v1306 = vunpack.c.h.b16 %v603
    %v1307 = vunpack.c.l.b16 %v604
    %v1308 = vunpack.c.h.b16 %v604
    %v1309 = vunpack.c.l.b16 %v605
    %v1310 = vunpack.c.h.b16 %v605
    %v1311 = vunpack.c.l.b16 %v606
    %v1312 = vunpack.c.h.b16 %v606
    %v1313 = vunpack.c.l.b16 %v607
    %v1314 = vunpack.c.h.b16 %v607
    %v1315 = vunpack.c.l.b16 %v608
    %v1316 = vunpack.c.h.b16 %v608
    %v1317 = vunpack.c.l.b16 %v609
    %v1318 = vunpack.c.h.b16 %v609
    %v1319 = vunpack.c.l.b16 %v610
    %v1320 = vunpack.c.h.b16 %v610
    %v1321 = vunpack.c.l.b16 %v611
    %v1322 = vunpack.c.h.b16 %v611
    %v1323 = vunpack.c.l.b16 %v612
    %v1324 = vunpack.c.h.b16 %v612
    %v1325 = vunpack.c.l.b16 %v613
    %v1326 = vunpack.c.h.b16 %v613
    %v1327 = vunpack.c.l.b16 %v614
    %v1328 = vunpack.c.h.b16 %v614
    %v1329 = vunpack.c.l.b16 %v615
    %v1330 = vunpack.c.h.b16 %v615
    %v1331 = vunpack.c.l.b16 %v616
    %v1332 = vunpack.c.h.b16 %v616
    %v1333 = vunpack.c.l.b16 %v617
    %v1334 = vunpack.c.h.b16 %v617
    %v1335 = vunpack.c.l.b16 %v618
    %v1336 = vunpack.c.h.b16 %v618
    %v1337 = vunpack.c.l.b16 %v619
    %v1338 = vunpack.c.h.b16 %v619
    %v1339 = vunpack.c.l.b16 %v620
    %v1340 = vunpack.c.h.b16 %v620
    %v1341 = vunpack.c.l.b16 %v621
    %v1342 = vunpack.c.h.b16 %v621
    %v1343 = vunpack.c.l.b16 %v622
    %v1344 = vunpack.c.h.b16 %v622
    %v1345 = vunpack.c.l.b16 %v623
    %v1346 = vunpack.c.h.b16 %v623
    %v1347 = vunpack.c.l.b16 %v624
    %v1348 = vunpack.c.h.b16 %v624
    %v1349 = vunpack.c.l.b16 %v625
    %v1350 = vunpack.c.h.b16 %v625
    %v1351 = vunpack.c.l.b16 %v626
    %v1352 = vunpack.c.h.b16 %v626
    %v1353 = vunpack.c.l.b16 %v627
    %v1354 = vunpack.c.h.b16 %v627
    %v1355 = vunpack.c.l.b16 %v628
    %v1356 = vunpack.c.h.b16 %v628
    %v1357 = vunpack.c.l.b16 %v629
    %v1358 = vunpack.c.h.b16 %v629
    %v1359 = vunpack.c.l.b16 %v630
    %v1360 = vunpack.c.h.b16 %v630
    %v1361 = vunpack.c.l.b16 %v631
    %v1362 = vunpack.c.h.b16 %v631
    %v1363 = vunpack.c.l.b16 %v632
    %v1364 = vunpack.c.h.b16 %v632
    %v1365 = vunpack.c.l.b16 %v633
    %v1366 = vunpack.c.h.b16 %v633
    %v1367 = vunpack.c.l.b16 %v634
    %v1368 = vunpack.c.h.b16 %v634
    %v1369 = vunpack.c.l.b16 %v635
    %v1370 = vunpack.c.h.b16 %v635
    %v1371 = vunpack.c.l.b16 %v636
    %v1372 = vunpack.c.h.b16 %v636
    %v1373 = vunpack.c.l.b16 %v637
    %v1374 = vunpack.c.h.b16 %v637
    %v1375 = vunpack.c.l.b16 %v638
    %v1376 = vunpack.c.h.b16 %v638
    %v1377 = vunpack.c.l.b16 %v639
    %v1378 = vunpack.c.h.b16 %v639
    %v1379 = vunpack.c.l.b16 %v640
    %v1380 = vunpack.c.h.b16 %v640
    %v1381 = vunpack.c.l.b16 %v641
    %v1382 = vunpack.c.h.b16 %v641
    %v1383 = vunpack.c.l.b16 %v642
    %v1384 = vunpack.c.h.b16 %v642
    %v1385 = vunpack.c.l.b16 %v643
    %v1386 = vunpack.c.h.b16 %v643
    %v1387 = vunpack.c.l.b16 %v644
    %v1388 = vunpack.c.h.b16 %v644
    %v1389 = vunpack.c.l.b16 %v645
    %v1390 = vunpack.c.h.b16 %v645
    %v1391 = vunpack.c.l.b16 %v646
    %v1392 = vunpack.c.h.b16 %v646
    %v1393 = vunpack.c.l.b16 %v647
    %v1394 = vunpack.c.h.b16 %v647
    %v1395 = vunpack.c.l.b16 %v648
    %v1396 = vunpack.c.h.b16 %v648
    %v1397 = vunpack.c.l.b16 %v649
    %v1398 = vunpack.c.h.b16 %v649
    %v1399 = vunpack.c.l.b16 %v650
    %v1400 = vunpack.c.h.b16 %v650
    %v1401 = vunpack.c.l.b16 %v651
    %v1402 = vunpack.c.h.b16 %v651
    %v1403 = vunpack.c.l.b16 %v652
    %v1404 = vunpack.c.h.b16 %v652
    %v1405 = vunpack.c.l.b16 %v653
    %v1406 = vunpack.c.h.b16 %v653
    %v1407 = vunpack.c.l.b16 %v654
    %v1408 = vunpack.c.h.b16 %v654
    %v1409 = vunpack.c.l.b16 %v655
    %v1410 = vunpack.c.h.b16 %v655
    %v1411 = vunpack.c.l.b16 %v656
    %v1412 = vunpack.c.h.b16 %v656
    %v1413 = vunpack.c.l.b16 %v657
    %v1414 = vunpack.c.h.b16 %v657
    %v1415 = vunpack.c.l.b16 %v658
    %v1416 = vunpack.c.h.b16 %v658
    %v1417 = vunpack.c.l.b16 %v659
    %v1418 = vunpack.c.h.b16 %v659
    %v1419 = vunpack.c.l.b16 %v660
    %v1420 = vunpack.c.h.b16 %v660
    %v1421 = vunpack.c.l.b16 %v661
    %v1422 = vunpack.c.h.b16 %v661
    %v1423 = vunpack.c.l.b16 %v662
    %v1424 = vunpack.c.h.b16 %v662
    %v1425 = vunpack.c.l.b16 %v663
    %v1426 = vunpack.c.h.b16 %v663
    %v1427 = vunpack.c.l.b16 %v664
    %v1428 = vunpack.c.h.b16 %v664
    %v1429 = vunpack.c.l.b16 %v665
    %v1430 = vunpack.c.h.b16 %v665
    %v1431 = vunpack.c.l.b16 %v666
    %v1432 = vunpack.c.h.b16 %v666
    %v1433 = vunpack.c.l.b16 %v667
    %v1434 = vunpack.c.h.b16 %v667
    %v1435 = vunpack.c.l.b16 %v668
    %v1436 = vunpack.c.h.b16 %v668
    %v1437 = vunpack.c.l.b16 %v669
    %v1438 = vunpack.c.h.b16 %v669
    %v1439 = vunpack.c.l.b16 %v670
    %v1440 = vunpack.c.h.b16 %v670
    %v1441 = vunpack.c.l.b16 %v671
    %v1442 = vunpack.c.h.b16 %v671
    %v1443 = vunpack.c.l.b16 %v672
    %v1444 = vunpack.c.h.b16 %v672
    %v1445 = vunpack.c.l.b16 %v673
    %v1446 = vunpack.c.h.b16 %v673
    %v1447 = vunpack.c.l.b16 %v674
    %v1448 = vunpack.c.h.b16 %v674
    %v1449 = vunpack.c.l.b16 %v675
    %v1450 = vunpack.c.h.b16 %v675
    %v1451 = vunpack.c.l.b16 %v676
    %v1452 = vunpack.c.h.b16 %v676
    %v1453 = vunpack.c.l.b16 %v677
    %v1454 = vunpack.c.h.b16 %v677
    %v1455 = vunpack.c.l.b16 %v678
    %v1456 = vunpack.c.h.b16 %v678
    %v1457 = vunpack.c.l.b16 %v679
    %v1458 = vunpack.c.h.b16 %v679
    %v1459 = vunpack.c.l.b16 %v680
    %v1460 = vunpack.c.h.b16 %v680
    %v1461 = vunpack.c.l.b16 %v681
    %v1462 = vunpack.c.h.b16 %v681
    %v1463 = vunpack.c.l.b16 %v682
    %v1464 = vunpack.c.h.b16 %v682
    %v1465 = vunpack.c.l.b16 %v683
    %v1466 = vunpack.c.h.b16 %v683
    %v1467 = vunpack.c.l.b16 %v684
    %v1468 = vunpack.c.h.b16 %v684
    %v1469 = vunpack.c.l.b16 %v685
    %v1470 = vunpack.c.h.b16 %v685
    %v1471 = vunpack.c.l.b16 %v686
    %v1472 = vunpack.c.h.b16 %v686
    %v1473 = vunpack.c.l.b16 %v687
    %v1474 = vunpack.c.h.b16 %v687
    %v1475 = vunpack.c.l.b16 %v688
    %v1476 = vunpack.c.h.b16 %v688
    %v1477 = vunpack.c.l.b16 %v689
    %v1478 = vunpack.c.h.b16 %v689
    %v1479 = vunpack.c.l.b16 %v690
    %v1480 = vunpack.c.h.b16 %v690
    %v1481 = vpack.c.b16 %v973, %v969
    %v1482 = vpack.c.b16 %v974, %v970
    %v1483 = vpack.c.b16 %v975, %v971
    %v1484 = vpack.c.b16 %v976, %v972
    %v1485 = vpack.c.b16 %v981, %v977
    %v1486 = vpack.c.b16 %v982, %v978
    %v1487 = vpack.c.b16 %v983, %v979
    %v1488 = vpack.c.b16 %v984, %v980
    %v1489 = vpack.c.b16 %v989, %v985
    %v1490 = vpack.c.b16 %v990, %v986
    %v1491 = vpack.c.b16 %v991, %v987
    %v1492 = vpack.c.b16 %v992, %v988
    %v1493 = vpack.c.b16 %v997, %v993
    %v1494 = vpack.c.b16 %v998, %v994
    %v1495 = vpack.c.b16 %v999, %v995
    %v1496 = vpack.c.b16 %v1000, %v996
    %v1497 = vpack.c.b16 %v1005, %v1001
    %v1498 = vpack.c.b16 %v1006, %v1002
    %v1499 = vpack.c.b16 %v1007, %v1003
    %v1500 = vpack.c.b16 %v1008, %v1004
    %v1501 = vpack.c.b16 %v1013, %v1009
    %v1502 = vpack.c.b16 %v1014, %v1010
    %v1503 = vpack.c.b16 %v1015, %v1011
    %v1504 = vpack.c.b16 %v1016, %v1012
    %v1505 = vpack.c.b16 %v1021, %v1017
    %v1506 = vpack.c.b16 %v1022, %v1018
    %v1507 = vpack.c.b16 %v1023, %v1019
    %v1508 = vpack.c.b16 %v1024, %v1020
    %v1509 = vpack.c.b16 %v1029, %v1025
    %v1510 = vpack.c.b16 %v1030, %v1026
    %v1511 = vpack.c.b16 %v1031, %v1027
    %v1512 = vpack.c.b16 %v1032, %v1028
    %v1513 = vpack.c.b16 %v1037, %v1033
    %v1514 = vpack.c.b16 %v1038, %v1034
    %v1515 = vpack.c.b16 %v1039, %v1035
    %v1516 = vpack.c.b16 %v1040, %v1036
    %v1517 = vpack.c.b16 %v1045, %v1041
    %v1518 = vpack.c.b16 %v1046, %v1042
    %v1519 = vpack.c.b16 %v1047, %v1043
    %v1520 = vpack.c.b16 %v1048, %v1044
    %v1521 = vpack.c.b16 %v1053, %v1049
    %v1522 = vpack.c.b16 %v1054, %v1050
    %v1523 = vpack.c.b16 %v1055, %v1051
    %v1524 = vpack.c.b16 %v1056, %v1052
    %v1525 = vpack.c.b16 %v1061, %v1057
    %v1526 = vpack.c.b16 %v1062, %v1058
    %v1527 = vpack.c.b16 %v1063, %v1059
    %v1528 = vpack.c.b16 %v1064, %v1060
    %v1529 = vpack.c.b16 %v1069, %v1065
    %v1530 = vpack.c.b16 %v1070, %v1066
    %v1531 = vpack.c.b16 %v1071, %v1067
    %v1532 = vpack.c.b16 %v1072, %v1068
    %v1533 = vpack.c.b16 %v1077, %v1073
    %v1534 = vpack.c.b16 %v1078, %v1074
    %v1535 = vpack.c.b16 %v1079, %v1075
    %v1536 = vpack.c.b16 %v1080, %v1076
    %v1537 = vpack.c.b16 %v1085, %v1081
    %v1538 = vpack.c.b16 %v1086, %v1082
    %v1539 = vpack.c.b16 %v1087, %v1083
    %v1540 = vpack.c.b16 %v1088, %v1084
    %v1541 = vpack.c.b16 %v1093, %v1089
    %v1542 = vpack.c.b16 %v1094, %v1090
    %v1543 = vpack.c.b16 %v1095, %v1091
    %v1544 = vpack.c.b16 %v1096, %v1092
    %v1545 = vpack.c.b16 %v1101, %v1097
    %v1546 = vpack.c.b16 %v1102, %v1098
    %v1547 = vpack.c.b16 %v1103, %v1099
    %v1548 = vpack.c.b16 %v1104, %v1100
    %v1549 = vpack.c.b16 %v1109, %v1105
    %v1550 = vpack.c.b16 %v1110, %v1106
    %v1551 = vpack.c.b16 %v1111, %v1107
    %v1552 = vpack.c.b16 %v1112, %v1108
    %v1553 = vpack.c.b16 %v1117, %v1113
    %v1554 = vpack.c.b16 %v1118, %v1114
    %v1555 = vpack.c.b16 %v1119, %v1115
    %v1556 = vpack.c.b16 %v1120, %v1116
    %v1557 = vpack.c.b16 %v1125, %v1121
    %v1558 = vpack.c.b16 %v1126, %v1122
    %v1559 = vpack.c.b16 %v1127, %v1123
    %v1560 = vpack.c.b16 %v1128, %v1124
    %v1561 = vpack.c.b16 %v1133, %v1129
    %v1562 = vpack.c.b16 %v1134, %v1130
    %v1563 = vpack.c.b16 %v1135, %v1131
    %v1564 = vpack.c.b16 %v1136, %v1132
    %v1565 = vpack.c.b16 %v1141, %v1137
    %v1566 = vpack.c.b16 %v1142, %v1138
    %v1567 = vpack.c.b16 %v1143, %v1139
    %v1568 = vpack.c.b16 %v1144, %v1140
    %v1569 = vpack.c.b16 %v1149, %v1145
    %v1570 = vpack.c.b16 %v1150, %v1146
    %v1571 = vpack.c.b16 %v1151, %v1147
    %v1572 = vpack.c.b16 %v1152, %v1148
    %v1573 = vpack.c.b16 %v1157, %v1153
    %v1574 = vpack.c.b16 %v1158, %v1154
    %v1575 = vpack.c.b16 %v1159, %v1155
    %v1576 = vpack.c.b16 %v1160, %v1156
    %v1577 = vpack.c.b16 %v1165, %v1161
    %v1578 = vpack.c.b16 %v1166, %v1162
    %v1579 = vpack.c.b16 %v1167, %v1163
    %v1580 = vpack.c.b16 %v1168, %v1164
    %v1581 = vpack.c.b16 %v1173, %v1169
    %v1582 = vpack.c.b16 %v1174, %v1170
    %v1583 = vpack.c.b16 %v1175, %v1171
    %v1584 = vpack.c.b16 %v1176, %v1172
    %v1585 = vpack.c.b16 %v1181, %v1177
    %v1586 = vpack.c.b16 %v1182, %v1178
    %v1587 = vpack.c.b16 %v1183, %v1179
    %v1588 = vpack.c.b16 %v1184, %v1180
    %v1589 = vpack.c.b16 %v1189, %v1185
    %v1590 = vpack.c.b16 %v1190, %v1186
    %v1591 = vpack.c.b16 %v1191, %v1187
    %v1592 = vpack.c.b16 %v1192, %v1188
    %v1593 = vpack.c.b16 %v1197, %v1193
    %v1594 = vpack.c.b16 %v1198, %v1194
    %v1595 = vpack.c.b16 %v1199, %v1195
    %v1596 = vpack.c.b16 %v1200, %v1196
    %v1597 = vpack.c.b16 %v1205, %v1201
    %v1598 = vpack.c.b16 %v1206, %v1202
    %v1599 = vpack.c.b16 %v1207, %v1203
    %v1600 = vpack.c.b16 %v1208, %v1204
    %v1601 = vpack.c.b16 %v1213, %v1209
    %v1602 = vpack.c.b16 %v1214, %v1210
    %v1603 = vpack.c.b16 %v1215, %v1211
    %v1604 = vpack.c.b16 %v1216, %v1212
    %v1605 = vpack.c.b16 %v1221, %v1217
    %v1606 = vpack.c.b16 %v1222, %v1218
    %v1607 = vpack.c.b16 %v1223, %v1219
    %v1608 = vpack.c.b16 %v1224, %v1220
    %v1609 = vpack.c.b16 %v1229, %v1225
    %v1610 = vpack.c.b16 %v1230, %v1226
    %v1611 = vpack.c.b16 %v1231, %v1227
    %v1612 = vpack.c.b16 %v1232, %v1228
    %v1613 = vpack.c.b16 %v1237, %v1233
    %v1614 = vpack.c.b16 %v1238, %v1234
    %v1615 = vpack.c.b16 %v1239, %v1235
    %v1616 = vpack.c.b16 %v1240, %v1236
    %v1617 = vpack.c.b16 %v1245, %v1241
    %v1618 = vpack.c.b16 %v1246, %v1242
    %v1619 = vpack.c.b16 %v1247, %v1243
    %v1620 = vpack.c.b16 %v1248, %v1244
    %v1621 = vpack.c.b16 %v1253, %v1249
    %v1622 = vpack.c.b16 %v1254, %v1250
    %v1623 = vpack.c.b16 %v1255, %v1251
    %v1624 = vpack.c.b16 %v1256, %v1252
    %v1625 = vpack.c.b16 %v1261, %v1257
    %v1626 = vpack.c.b16 %v1262, %v1258
    %v1627 = vpack.c.b16 %v1263, %v1259
    %v1628 = vpack.c.b16 %v1264, %v1260
    %v1629 = vpack.c.b16 %v1269, %v1265
    %v1630 = vpack.c.b16 %v1270, %v1266
    %v1631 = vpack.c.b16 %v1271, %v1267
    %v1632 = vpack.c.b16 %v1272, %v1268
    %v1633 = vpack.c.b16 %v1277, %v1273
    %v1634 = vpack.c.b16 %v1278, %v1274
    %v1635 = vpack.c.b16 %v1279, %v1275
    %v1636 = vpack.c.b16 %v1280, %v1276
    %v1637 = vpack.c.b16 %v1285, %v1281
    %v1638 = vpack.c.b16 %v1286, %v1282
    %v1639 = vpack.c.b16 %v1287, %v1283
    %v1640 = vpack.c.b16 %v1288, %v1284
    %v1641 = vpack.c.b16 %v1293, %v1289
    %v1642 = vpack.c.b16 %v1294, %v1290
    %v1643 = vpack.c.b16 %v1295, %v1291
    %v1644 = vpack.c.b16 %v1296, %v1292
    %v1645 = vpack.c.b16 %v1301, %v1297
    %v1646 = vpack.c.b16 %v1302, %v1298
    %v1647 = vpack.c.b16 %v1303, %v1299
    %v1648 = vpack.c.b16 %v1304, %v1300
    %v1649 = vpack.c.b16 %v1309, %v1305
    %v1650 = vpack.c.b16 %v1310, %v1306
    %v1651 = vpack.c.b16 %v1311, %v1307
    %v1652 = vpack.c.b16 %v1312, %v1308
    %v1653 = vpack.c.b16 %v1317, %v1313
    %v1654 = vpack.c.b16 %v1318, %v1314
    %v1655 = vpack.c.b16 %v1319, %v1315
    %v1656 = vpack.c.b16 %v1320, %v1316
    %v1657 = vpack.c.b16 %v1325, %v1321
    %v1658 = vpack.c.b16 %v1326, %v1322
    %v1659 = vpack.c.b16 %v1327, %v1323
    %v1660 = vpack.c.b16 %v1328, %v1324
    %v1661 = vpack.c.b16 %v1333, %v1329
    %v1662 = vpack.c.b16 %v1334, %v1330
    %v1663 = vpack.c.b16 %v1335, %v1331
    %v1664 = vpack.c.b16 %v1336, %v1332
    %v1665 = vpack.c.b16 %v1341, %v1337
    %v1666 = vpack.c.b16 %v1342, %v1338
    %v1667 = vpack.c.b16 %v1343, %v1339
    %v1668 = vpack.c.b16 %v1344, %v1340
    %v1669 = vpack.c.b16 %v1349, %v1345
    %v1670 = vpack.c.b16 %v1350, %v1346
    %v1671 = vpack.c.b16 %v1351, %v1347
    %v1672 = vpack.c.b16 %v1352, %v1348
    %v1673 = vpack.c.b16 %v1357, %v1353
    %v1674 = vpack.c.b16 %v1358, %v1354
    %v1675 = vpack.c.b16 %v1359, %v1355
    %v1676 = vpack.c.b16 %v1360, %v1356
    %v1677 = vpack.c.b16 %v1365, %v1361
    %v1678 = vpack.c.b16 %v1366, %v1362
    %v1679 = vpack.c.b16 %v1367, %v1363
    %v1680 = vpack.c.b16 %v1368, %v1364
    %v1681 = vpack.c.b16 %v1373, %v1369
    %v1682 = vpack.c.b16 %v1374, %v1370
    %v1683 = vpack.c.b16 %v1375, %v1371
    %v1684 = vpack.c.b16 %v1376, %v1372
    %v1685 = vpack.c.b16 %v1381, %v1377
    %v1686 = vpack.c.b16 %v1382, %v1378
    %v1687 = vpack.c.b16 %v1383, %v1379
    %v1688 = vpack.c.b16 %v1384, %v1380
    %v1689 = vpack.c.b16 %v1389, %v1385
    %v1690 = vpack.c.b16 %v1390, %v1386
    %v1691 = vpack.c.b16 %v1391, %v1387
    %v1692 = vpack.c.b16 %v1392, %v1388
    %v1693 = vpack.c.b16 %v1397, %v1393
    %v1694 = vpack.c.b16 %v1398, %v1394
    %v1695 = vpack.c.b16 %v1399, %v1395
    %v1696 = vpack.c.b16 %v1400, %v1396
    %v1697 = vpack.c.b16 %v1405, %v1401
    %v1698 = vpack.c.b16 %v1406, %v1402
    %v1699 = vpack.c.b16 %v1407, %v1403
    %v1700 = vpack.c.b16 %v1408, %v1404
    %v1701 = vpack.c.b16 %v1413, %v1409
    %v1702 = vpack.c.b16 %v1414, %v1410
    %v1703 = vpack.c.b16 %v1415, %v1411
    %v1704 = vpack.c.b16 %v1416, %v1412
    %v1705 = vpack.c.b16 %v1421, %v1417
    %v1706 = vpack.c.b16 %v1422, %v1418
    %v1707 = vpack.c.b16 %v1423, %v1419
    %v1708 = vpack.c.b16 %v1424, %v1420
    %v1709 = vpack.c.b16 %v1429, %v1425
    %v1710 = vpack.c.b16 %v1430, %v1426
    %v1711 = vpack.c.b16 %v1431, %v1427
    %v1712 = vpack.c.b16 %v1432, %v1428
    %v1713 = vpack.c.b16 %v1437, %v1433
    %v1714 = vpack.c.b16 %v1438, %v1434
    %v1715 = vpack.c.b16 %v1439, %v1435
    %v1716 = vpack.c.b16 %v1440, %v1436
    %v1717 = vpack.c.b16 %v1445, %v1441
    %v1718 = vpack.c.b16 %v1446, %v1442
    %v1719 = vpack.c.b16 %v1447, %v1443
    %v1720 = vpack.c.b16 %v1448, %v1444
    %v1721 = vpack.c.b16 %v1453, %v1449
    %v1722 = vpack.c.b16 %v1454, %v1450
    %v1723 = vpack.c.b16 %v1455, %v1451
    %v1724 = vpack.c.b16 %v1456, %v1452
    %v1725 = vpack.c.b16 %v1461, %v1457
    %v1726 = vpack.c.b16 %v1462, %v1458
    %v1727 = vpack.c.b16 %v1463, %v1459
    %v1728 = vpack.c.b16 %v1464, %v1460
    %v1729 = vpack.c.b16 %v1469, %v1465
    %v1730 = vpack.c.b16 %v1470, %v1466
    %v1731 = vpack.c.b16 %v1471, %v1467
    %v1732 = vpack.c.b16 %v1472, %v1468
    %v1733 = vpack.c.b16 %v1477, %v1473
    %v1734 = vpack.c.b16 %v1478, %v1474
    %v1735 = vpack.c.b16 %v1479, %v1475
    %v1736 = vpack.c.b16 %v1480, %v1476
    %1993 = vmatprep.subr.bf16.mxu0 %v1482
    %1994 = vmatpush1.bf16.msra.mxu0 %v1481
    %1995 = vmatprep.subr.bf16.mxu0 %v1486
    %1996 = vmatpush1.bf16.msra.mxu0 %v1485
    %1997 = vmatprep.subr.bf16.mxu0 %v1490
    %1998 = vmatpush1.bf16.msra.mxu0 %v1489
    %1999 = vmatprep.subr.bf16.mxu0 %v1494
    %2000 = vmatpush1.bf16.msra.mxu0 %v1493
    %2001 = vmatprep.subr.bf16.mxu0 %v1498
    %2002 = vmatpush1.bf16.msra.mxu0 %v1497
    %2003 = vmatprep.subr.bf16.mxu0 %v1502
    %2004 = vmatpush1.bf16.msra.mxu0 %v1501
    %2005 = vmatprep.subr.bf16.mxu0 %v1506
    %2006 = vmatpush1.bf16.msra.mxu0 %v1505
    %2007 = vmatprep.subr.bf16.mxu0 %v1510
    %2008 = vmatpush1.bf16.msra.mxu0 %v1509
    %2009 = vmatprep.subr.bf16.mxu0 %v1514
    %2010 = vmatpush1.bf16.msra.mxu0 %v1513
    %2011 = vmatprep.subr.bf16.mxu0 %v1518
    %2012 = vmatpush1.bf16.msra.mxu0 %v1517
    %2013 = vmatprep.subr.bf16.mxu0 %v1522
    %2014 = vmatpush1.bf16.msra.mxu0 %v1521
    %2015 = vmatprep.subr.bf16.mxu0 %v1526
    %2016 = vmatpush1.bf16.msra.mxu0 %v1525
    %2017 = vmatprep.subr.bf16.mxu0 %v1530
    %2018 = vmatpush1.bf16.msra.mxu0 %v1529
    %2019 = vmatprep.subr.bf16.mxu0 %v1534
    %2020 = vmatpush1.bf16.msra.mxu0 %v1533
    %2021 = vmatprep.subr.bf16.mxu0 %v1538
    %2022 = vmatpush1.bf16.msra.mxu0 %v1537
    %2023 = vmatprep.subr.bf16.mxu0 %v1542
    %2024 = vmatpush1.bf16.msra.mxu0 %v1541
    %2025 = vmatprep.mubr.bf16.mxu0 %v308
    %2026 = vmatmul.mubr.bf16.gmra.mrb[0].mxu0 %v307
    %v2027 = vpop.f32.mrb[0].mxu0
    %v2028 = vadd.f32 %v696, %v2027
    %v2029 = vpop.f32.mrb[0].mxu0
    %v2030 = vadd.f32 %v700, %v2029
    %v2031 = vpop.f32.mrb[0].mxu0
    %v2032 = vadd.f32 %v696, %v2031
    %v2033 = vpop.f32.mrb[0].mxu0
    %v2034 = vadd.f32 %v700, %v2033
    %2035 = vmatprep.mubr.bf16.mxu0 %v316
    %2036 = vmatmul.mubr.bf16.gmra.mrb[0].mxu0 %v315
    %v2037 = vpop.f32.mrb[0].mxu0
    %v2038 = vadd.f32 %v696, %v2037
    %v2039 = vpop.f32.mrb[0].mxu0
    %v2040 = vadd.f32 %v700, %v2039
    %v2041 = vpop.f32.mrb[0].mxu0
    %v2042 = vadd.f32 %v696, %v2041
    %v2043 = vpop.f32.mrb[0].mxu0
    %v2044 = vadd.f32 %v700, %v2043
    %2045 = vmatprep.mubr.bf16.mxu0 %v324
    %2046 = vmatmul.mubr.bf16.gmra.mrb[0].mxu0 %v323
    %v2047 = vpop.f32.mrb[0].mxu0
    %v2048 = vadd.f32 %v696, %v2047
    %v2049 = vpop.f32.mrb[0].mxu0
    %v2050 = vadd.f32 %v700, %v2049
    %v2051 = vpop.f32.mrb[0].mxu0
    %v2052 = vadd.f32 %v696, %v2051
    %v2053 = vpop.f32.mrb[0].mxu0
    %v2054 = vadd.f32 %v700, %v2053
    %2055 = vmatprep.mubr.bf16.mxu0 %v332
    %2056 = vmatmul.mubr.bf16.gmra.mrb[0].mxu0 %v331
    %v2057 = vpop.f32.mrb[0].mxu0
    %v2058 = vadd.f32 %v696, %v2057
    %v2059 = vpop.f32.mrb[0].mxu0
    %v2060 = vadd.f32 %v700, %v2059
    %v2061 = vpop.f32.mrb[0].mxu0
    %v2062 = vadd.f32 %v696, %v2061
    %v2063 = vpop.f32.mrb[0].mxu0
    %v2064 = vadd.f32 %v700, %v2063
    %2065 = vmatprep.mubr.bf16.mxu0 %v340
    %2066 = vmatmul.mubr.bf16.gmra.mrb[0].mxu0 %v339
    %v2067 = vpop.f32.mrb[0].mxu0
    %v2068 = vadd.f32 %v696, %v2067
    %v2069 = vpop.f32.mrb[0].mxu0
    %v2070 = vadd.f32 %v700, %v2069
    %v2071 = vpop.f32.mrb[0].mxu0
    %v2072 = vadd.f32 %v696, %v2071
    %v2073 = vpop.f32.mrb[0].mxu0
    %v2074 = vadd.f32 %v700, %v2073
    %2075 = vmatprep.mubr.bf16.mxu0 %v348
    %2076 = vmatmul.mubr.bf16.gmra.mrb[0].mxu0 %v347
    %v2077 = vpop.f32.mrb[0].mxu0
    %v2078 = vadd.f32 %v696, %v2077
    %v2079 = vpop.f32.mrb[0].mxu0
    %v2080 = vadd.f32 %v700, %v2079
    %v2081 = vpop.f32.mrb[0].mxu0
    %v2082 = vadd.f32 %v696, %v2081
    %v2083 = vpop.f32.mrb[0].mxu0
    %v2084 = vadd.f32 %v700, %v2083
    %2085 = vmatprep.mubr.bf16.mxu0 %v356
    %2086 = vmatmul.mubr.bf16.gmra.mrb[0].mxu0 %v355
    %v2087 = vpop.f32.mrb[0].mxu0
    %v2088 = vadd.f32 %v696, %v2087
    %v2089 = vpop.f32.mrb[0].mxu0
    %v2090 = vadd.f32 %v700, %v2089
    %v2091 = vpop.f32.mrb[0].mxu0
    %v2092 = vadd.f32 %v696, %v2091
    %v2093 = vpop.f32.mrb[0].mxu0
    %v2094 = vadd.f32 %v700, %v2093
    %2095 = vmatprep.mubr.bf16.mxu0 %v364
    %2096 = vmatmul.mubr.bf16.gmra.mrb[0].mxu0 %v363
    %v2097 = vpop.f32.mrb[0].mxu0
    %v2098 = vadd.f32 %v696, %v2097
    %v2099 = vpop.f32.mrb[0].mxu0
    %v2100 = vadd.f32 %v700, %v2099
    %v2101 = vpop.f32.mrb[0].mxu0
    %v2102 = vadd.f32 %v696, %v2101
    %v2103 = vpop.f32.mrb[0].mxu0
    %v2104 = vadd.f32 %v700, %v2103
    %2105 = vmatprep.mubr.bf16.mxu0 %v372
    %2106 = vmatmul.mubr.bf16.gmra.mrb[0].mxu0 %v371
    %v2107 = vpop.f32.mrb[0].mxu0
    %v2108 = vadd.f32 %v696, %v2107
    %v2109 = vpop.f32.mrb[0].mxu0
    %v2110 = vadd.f32 %v700, %v2109
    %v2111 = vpop.f32.mrb[0].mxu0
    %v2112 = vadd.f32 %v696, %v2111
    %v2113 = vpop.f32.mrb[0].mxu0
    %v2114 = vadd.f32 %v700, %v2113
    %2115 = vmatprep.mubr.bf16.mxu0 %v380
    %2116 = vmatmul.mubr.bf16.gmra.mrb[0].mxu0 %v379
    %v2117 = vpop.f32.mrb[0].mxu0
    %v2118 = vadd.f32 %v696, %v2117
    %v2119 = vpop.f32.mrb[0].mxu0
    %v2120 = vadd.f32 %v700, %v2119
    %v2121 = vpop.f32.mrb[0].mxu0
    %v2122 = vadd.f32 %v696, %v2121
    %v2123 = vpop.f32.mrb[0].mxu0
    %v2124 = vadd.f32 %v700, %v2123
    %2125 = vmatprep.mubr.bf16.mxu0 %v388
    %2126 = vmatmul.mubr.bf16.gmra.mrb[0].mxu0 %v387
    %v2127 = vpop.f32.mrb[0].mxu0
    %v2128 = vadd.f32 %v696, %v2127
    %v2129 = vpop.f32.mrb[0].mxu0
    %v2130 = vadd.f32 %v700, %v2129
    %v2131 = vpop.f32.mrb[0].mxu0
    %v2132 = vadd.f32 %v696, %v2131
    %v2133 = vpop.f32.mrb[0].mxu0
    %v2134 = vadd.f32 %v700, %v2133
    %2135 = vmatprep.mubr.bf16.mxu0 %v396
    %2136 = vmatmul.mubr.bf16.gmra.mrb[0].mxu0 %v395
    %v2137 = vpop.f32.mrb[0].mxu0
    %v2138 = vadd.f32 %v696, %v2137
    %v2139 = vpop.f32.mrb[0].mxu0
    %v2140 = vadd.f32 %v700, %v2139
    %v2141 = vpop.f32.mrb[0].mxu0
    %v2142 = vadd.f32 %v696, %v2141
    %v2143 = vpop.f32.mrb[0].mxu0
    %v2144 = vadd.f32 %v700, %v2143
    %2145 = vmatprep.mubr.bf16.mxu0 %v404
    %2146 = vmatmul.mubr.bf16.gmra.mrb[0].mxu0 %v403
    %v2147 = vpop.f32.mrb[0].mxu0
    %v2148 = vadd.f32 %v696, %v2147
    %v2149 = vpop.f32.mrb[0].mxu0
    %v2150 = vadd.f32 %v700, %v2149
    %v2151 = vpop.f32.mrb[0].mxu0
    %v2152 = vadd.f32 %v696, %v2151
    %v2153 = vpop.f32.mrb[0].mxu0
    %v2154 = vadd.f32 %v700, %v2153
    %2155 = vmatprep.mubr.bf16.mxu0 %v412
    %2156 = vmatmul.mubr.bf16.gmra.mrb[0].mxu0 %v411
    %v2157 = vpop.f32.mrb[0].mxu0
    %v2158 = vadd.f32 %v696, %v2157
    %v2159 = vpop.f32.mrb[0].mxu0
    %v2160 = vadd.f32 %v700, %v2159
    %v2161 = vpop.f32.mrb[0].mxu0
    %v2162 = vadd.f32 %v696, %v2161
    %v2163 = vpop.f32.mrb[0].mxu0
    %v2164 = vadd.f32 %v700, %v2163
    %2165 = vmatprep.mubr.bf16.mxu0 %v420
    %2166 = vmatmul.mubr.bf16.gmra.mrb[0].mxu0 %v419
    %v2167 = vpop.f32.mrb[0].mxu0
    %v2168 = vadd.f32 %v696, %v2167
    %v2169 = vpop.f32.mrb[0].mxu0
    %v2170 = vadd.f32 %v700, %v2169
    %v2171 = vpop.f32.mrb[0].mxu0
    %v2172 = vadd.f32 %v696, %v2171
    %v2173 = vpop.f32.mrb[0].mxu0
    %v2174 = vadd.f32 %v700, %v2173
    %2175 = vmatprep.mubr.bf16.mxu0 %v428
    %2176 = vmatmul.mubr.bf16.gmra.mrb[0].mxu0 %v427
    %v2177 = vpop.f32.mrb[0].mxu0
    %v2178 = vadd.f32 %v696, %v2177
    %v2179 = vpop.f32.mrb[0].mxu0
    %v2180 = vadd.f32 %v700, %v2179
    %v2181 = vpop.f32.mrb[0].mxu0
    %v2182 = vadd.f32 %v696, %v2181
    %v2183 = vpop.f32.mrb[0].mxu0
    %v2184 = vadd.f32 %v700, %v2183
    %2185 = vdwg.mxu0
    %2186 = vmatprep.subr.bf16.mxu0 %v1546
    %2187 = vmatpush1.bf16.msra.mxu0 %v1545
    %2188 = vmatprep.subr.bf16.mxu0 %v1550
    %2189 = vmatpush1.bf16.msra.mxu0 %v1549
    %2190 = vmatprep.subr.bf16.mxu0 %v1554
    %2191 = vmatpush1.bf16.msra.mxu0 %v1553
    %2192 = vmatprep.subr.bf16.mxu0 %v1558
    %2193 = vmatpush1.bf16.msra.mxu0 %v1557
    %2194 = vmatprep.subr.bf16.mxu0 %v1562
    %2195 = vmatpush1.bf16.msra.mxu0 %v1561
    %2196 = vmatprep.subr.bf16.mxu0 %v1566
    %2197 = vmatpush1.bf16.msra.mxu0 %v1565
    %2198 = vmatprep.subr.bf16.mxu0 %v1570
    %2199 = vmatpush1.bf16.msra.mxu0 %v1569
    %2200 = vmatprep.subr.bf16.mxu0 %v1574
    %2201 = vmatpush1.bf16.msra.mxu0 %v1573
    %2202 = vmatprep.subr.bf16.mxu0 %v1578
    %2203 = vmatpush1.bf16.msra.mxu0 %v1577
    %2204 = vmatprep.subr.bf16.mxu0 %v1582
    %2205 = vmatpush1.bf16.msra.mxu0 %v1581
    %2206 = vmatprep.subr.bf16.mxu0 %v1586
    %2207 = vmatpush1.bf16.msra.mxu0 %v1585
    %2208 = vmatprep.subr.bf16.mxu0 %v1590
    %2209 = vmatpush1.bf16.msra.mxu0 %v1589
    %2210 = vmatprep.subr.bf16.mxu0 %v1594
    %2211 = vmatpush1.bf16.msra.mxu0 %v1593
    %2212 = vmatprep.subr.bf16.mxu0 %v1598
    %2213 = vmatpush1.bf16.msra.mxu0 %v1597
    %2214 = vmatprep.subr.bf16.mxu0 %v1602
    %2215 = vmatpush1.bf16.msra.mxu0 %v1601
    %2216 = vmatprep.subr.bf16.mxu0 %v1606
    %2217 = vmatpush1.bf16.msra.mxu0 %v1605
    %2218 = vmatprep.mubr.bf16.mxu0 %v310
    %2219 = vmatmul.mubr.bf16.gmra.mrb[0].mxu0 %v309
    %v2220 = vpop.f32.mrb[0].mxu0
    %v2221 = vadd.f32 %v2028, %v2220
    %v2222 = vpop.f32.mrb[0].mxu0
    %v2223 = vadd.f32 %v2030, %v2222
    %v2224 = vpop.f32.mrb[0].mxu0
    %v2225 = vadd.f32 %v2032, %v2224
    %v2226 = vpop.f32.mrb[0].mxu0
    %v2227 = vadd.f32 %v2034, %v2226
    %2228 = vmatprep.mubr.bf16.mxu0 %v318
    %2229 = vmatmul.mubr.bf16.gmra.mrb[0].mxu0 %v317
    %v2230 = vpop.f32.mrb[0].mxu0
    %v2231 = vadd.f32 %v2038, %v2230
    %v2232 = vpop.f32.mrb[0].mxu0
    %v2233 = vadd.f32 %v2040, %v2232
    %v2234 = vpop.f32.mrb[0].mxu0
    %v2235 = vadd.f32 %v2042, %v2234
    %v2236 = vpop.f32.mrb[0].mxu0
    %v2237 = vadd.f32 %v2044, %v2236
    %2238 = vmatprep.mubr.bf16.mxu0 %v326
    %2239 = vmatmul.mubr.bf16.gmra.mrb[0].mxu0 %v325
    %v2240 = vpop.f32.mrb[0].mxu0
    %v2241 = vadd.f32 %v2048, %v2240
    %v2242 = vpop.f32.mrb[0].mxu0
    %v2243 = vadd.f32 %v2050, %v2242
    %v2244 = vpop.f32.mrb[0].mxu0
    %v2245 = vadd.f32 %v2052, %v2244
    %v2246 = vpop.f32.mrb[0].mxu0
    %v2247 = vadd.f32 %v2054, %v2246
    %2248 = vmatprep.mubr.bf16.mxu0 %v334
    %2249 = vmatmul.mubr.bf16.gmra.mrb[0].mxu0 %v333
    %v2250 = vpop.f32.mrb[0].mxu0
    %v2251 = vadd.f32 %v2058, %v2250
    %v2252 = vpop.f32.mrb[0].mxu0
    %v2253 = vadd.f32 %v2060, %v2252
    %v2254 = vpop.f32.mrb[0].mxu0
    %v2255 = vadd.f32 %v2062, %v2254
    %v2256 = vpop.f32.mrb[0].mxu0
    %v2257 = vadd.f32 %v2064, %v2256
    %2258 = vmatprep.mubr.bf16.mxu0 %v342
    %2259 = vmatmul.mubr.bf16.gmra.mrb[0].mxu0 %v341
    %v2260 = vpop.f32.mrb[0].mxu0
    %v2261 = vadd.f32 %v2068, %v2260
    %v2262 = vpop.f32.mrb[0].mxu0
    %v2263 = vadd.f32 %v2070, %v2262
    %v2264 = vpop.f32.mrb[0].mxu0
    %v2265 = vadd.f32 %v2072, %v2264
    %v2266 = vpop.f32.mrb[0].mxu0
    %v2267 = vadd.f32 %v2074, %v2266
    %2268 = vmatprep.mubr.bf16.mxu0 %v350
    %2269 = vmatmul.mubr.bf16.gmra.mrb[0].mxu0 %v349
    %v2270 = vpop.f32.mrb[0].mxu0
    %v2271 = vadd.f32 %v2078, %v2270
    %v2272 = vpop.f32.mrb[0].mxu0
    %v2273 = vadd.f32 %v2080, %v2272
    %v2274 = vpop.f32.mrb[0].mxu0
    %v2275 = vadd.f32 %v2082, %v2274
    %v2276 = vpop.f32.mrb[0].mxu0
    %v2277 = vadd.f32 %v2084, %v2276
    %2278 = vmatprep.mubr.bf16.mxu0 %v358
    %2279 = vmatmul.mubr.bf16.gmra.mrb[0].mxu0 %v357
    %v2280 = vpop.f32.mrb[0].mxu0
    %v2281 = vadd.f32 %v2088, %v2280
    %v2282 = vpop.f32.mrb[0].mxu0
    %v2283 = vadd.f32 %v2090, %v2282
    %v2284 = vpop.f32.mrb[0].mxu0
    %v2285 = vadd.f32 %v2092, %v2284
    %v2286 = vpop.f32.mrb[0].mxu0
    %v2287 = vadd.f32 %v2094, %v2286
    %2288 = vmatprep.mubr.bf16.mxu0 %v366
    %2289 = vmatmul.mubr.bf16.gmra.mrb[0].mxu0 %v365
    %v2290 = vpop.f32.mrb[0].mxu0
    %v2291 = vadd.f32 %v2098, %v2290
    %v2292 = vpop.f32.mrb[0].mxu0
    %v2293 = vadd.f32 %v2100, %v2292
    %v2294 = vpop.f32.mrb[0].mxu0
    %v2295 = vadd.f32 %v2102, %v2294
    %v2296 = vpop.f32.mrb[0].mxu0
    %v2297 = vadd.f32 %v2104, %v2296
    %2298 = vmatprep.mubr.bf16.mxu0 %v374
    %2299 = vmatmul.mubr.bf16.gmra.mrb[0].mxu0 %v373
    %v2300 = vpop.f32.mrb[0].mxu0
    %v2301 = vadd.f32 %v2108, %v2300
    %v2302 = vpop.f32.mrb[0].mxu0
    %v2303 = vadd.f32 %v2110, %v2302
    %v2304 = vpop.f32.mrb[0].mxu0
    %v2305 = vadd.f32 %v2112, %v2304
    %v2306 = vpop.f32.mrb[0].mxu0
    %v2307 = vadd.f32 %v2114, %v2306
    %2308 = vmatprep.mubr.bf16.mxu0 %v382
    %2309 = vmatmul.mubr.bf16.gmra.mrb[0].mxu0 %v381
    %v2310 = vpop.f32.mrb[0].mxu0
    %v2311 = vadd.f32 %v2118, %v2310
    %v2312 = vpop.f32.mrb[0].mxu0
    %v2313 = vadd.f32 %v2120, %v2312
    %v2314 = vpop.f32.mrb[0].mxu0
    %v2315 = vadd.f32 %v2122, %v2314
    %v2316 = vpop.f32.mrb[0].mxu0
    %v2317 = vadd.f32 %v2124, %v2316
    %2318 = vmatprep.mubr.bf16.mxu0 %v390
    %2319 = vmatmul.mubr.bf16.gmra.mrb[0].mxu0 %v389
    %v2320 = vpop.f32.mrb[0].mxu0
    %v2321 = vadd.f32 %v2128, %v2320
    %v2322 = vpop.f32.mrb[0].mxu0
    %v2323 = vadd.f32 %v2130, %v2322
    %v2324 = vpop.f32.mrb[0].mxu0
    %v2325 = vadd.f32 %v2132, %v2324
    %v2326 = vpop.f32.mrb[0].mxu0
    %v2327 = vadd.f32 %v2134, %v2326
    %2328 = vmatprep.mubr.bf16.mxu0 %v398
    %2329 = vmatmul.mubr.bf16.gmra.mrb[0].mxu0 %v397
    %v2330 = vpop.f32.mrb[0].mxu0
    %v2331 = vadd.f32 %v2138, %v2330
    %v2332 = vpop.f32.mrb[0].mxu0
    %v2333 = vadd.f32 %v2140, %v2332
    %v2334 = vpop.f32.mrb[0].mxu0
    %v2335 = vadd.f32 %v2142, %v2334
    %v2336 = vpop.f32.mrb[0].mxu0
    %v2337 = vadd.f32 %v2144, %v2336
    %2338 = vmatprep.mubr.bf16.mxu0 %v406
    %2339 = vmatmul.mubr.bf16.gmra.mrb[0].mxu0 %v405
    %v2340 = vpop.f32.mrb[0].mxu0
    %v2341 = vadd.f32 %v2148, %v2340
    %v2342 = vpop.f32.mrb[0].mxu0
    %v2343 = vadd.f32 %v2150, %v2342
    %v2344 = vpop.f32.mrb[0].mxu0
    %v2345 = vadd.f32 %v2152, %v2344
    %v2346 = vpop.f32.mrb[0].mxu0
    %v2347 = vadd.f32 %v2154, %v2346
    %2348 = vmatprep.mubr.bf16.mxu0 %v414
    %2349 = vmatmul.mubr.bf16.gmra.mrb[0].mxu0 %v413
    %v2350 = vpop.f32.mrb[0].mxu0
    %v2351 = vadd.f32 %v2158, %v2350
    %v2352 = vpop.f32.mrb[0].mxu0
    %v2353 = vadd.f32 %v2160, %v2352
    %v2354 = vpop.f32.mrb[0].mxu0
    %v2355 = vadd.f32 %v2162, %v2354
    %v2356 = vpop.f32.mrb[0].mxu0
    %v2357 = vadd.f32 %v2164, %v2356
    %2358 = vmatprep.mubr.bf16.mxu0 %v422
    %2359 = vmatmul.mubr.bf16.gmra.mrb[0].mxu0 %v421
    %v2360 = vpop.f32.mrb[0].mxu0
    %v2361 = vadd.f32 %v2168, %v2360
    %v2362 = vpop.f32.mrb[0].mxu0
    %v2363 = vadd.f32 %v2170, %v2362
    %v2364 = vpop.f32.mrb[0].mxu0
    %v2365 = vadd.f32 %v2172, %v2364
    %v2366 = vpop.f32.mrb[0].mxu0
    %v2367 = vadd.f32 %v2174, %v2366
    %2368 = vmatprep.mubr.bf16.mxu0 %v430
    %2369 = vmatmul.mubr.bf16.gmra.mrb[0].mxu0 %v429
    %v2370 = vpop.f32.mrb[0].mxu0
    %v2371 = vadd.f32 %v2178, %v2370
    %v2372 = vpop.f32.mrb[0].mxu0
    %v2373 = vadd.f32 %v2180, %v2372
    %v2374 = vpop.f32.mrb[0].mxu0
    %v2375 = vadd.f32 %v2182, %v2374
    %v2376 = vpop.f32.mrb[0].mxu0
    %v2377 = vadd.f32 %v2184, %v2376
    %2378 = vdwg.mxu0
    %2379 = vmatprep.subr.bf16.mxu0 %v1610
    %2380 = vmatpush1.bf16.msra.mxu0 %v1609
    %2381 = vmatprep.subr.bf16.mxu0 %v1614
    %2382 = vmatpush1.bf16.msra.mxu0 %v1613
    %2383 = vmatprep.subr.bf16.mxu0 %v1618
    %2384 = vmatpush1.bf16.msra.mxu0 %v1617
    %2385 = vmatprep.subr.bf16.mxu0 %v1622
    %2386 = vmatpush1.bf16.msra.mxu0 %v1621
    %2387 = vmatprep.subr.bf16.mxu0 %v1626
    %2388 = vmatpush1.bf16.msra.mxu0 %v1625
    %2389 = vmatprep.subr.bf16.mxu0 %v1630
    %2390 = vmatpush1.bf16.msra.mxu0 %v1629
    %2391 = vmatprep.subr.bf16.mxu0 %v1634
    %2392 = vmatpush1.bf16.msra.mxu0 %v1633
    %2393 = vmatprep.subr.bf16.mxu0 %v1638
    %2394 = vmatpush1.bf16.msra.mxu0 %v1637
    %2395 = vmatprep.subr.bf16.mxu0 %v1642
    %2396 = vmatpush1.bf16.msra.mxu0 %v1641
    %2397 = vmatprep.subr.bf16.mxu0 %v1646
    %2398 = vmatpush1.bf16.msra.mxu0 %v1645
    %2399 = vmatprep.subr.bf16.mxu0 %v1650
    %2400 = vmatpush1.bf16.msra.mxu0 %v1649
    %2401 = vmatprep.subr.bf16.mxu0 %v1654
    %2402 = vmatpush1.bf16.msra.mxu0 %v1653
    %2403 = vmatprep.subr.bf16.mxu0 %v1658
    %2404 = vmatpush1.bf16.msra.mxu0 %v1657
    %2405 = vmatprep.subr.bf16.mxu0 %v1662
    %2406 = vmatpush1.bf16.msra.mxu0 %v1661
    %2407 = vmatprep.subr.bf16.mxu0 %v1666
    %2408 = vmatpush1.bf16.msra.mxu0 %v1665
    %2409 = vmatprep.subr.bf16.mxu0 %v1670
    %2410 = vmatpush1.bf16.msra.mxu0 %v1669
    %2411 = vmatprep.mubr.bf16.mxu0 %v312
    %2412 = vmatmul.mubr.bf16.gmra.mrb[0].mxu0 %v311
    %v2413 = vpop.f32.mrb[0].mxu0
    %v2414 = vadd.f32 %v2221, %v2413
    %v2415 = vpop.f32.mrb[0].mxu0
    %v2416 = vadd.f32 %v2223, %v2415
    %v2417 = vpop.f32.mrb[0].mxu0
    %v2418 = vadd.f32 %v2225, %v2417
    %v2419 = vpop.f32.mrb[0].mxu0
    %v2420 = vadd.f32 %v2227, %v2419
    %2421 = vmatprep.mubr.bf16.mxu0 %v320
    %2422 = vmatmul.mubr.bf16.gmra.mrb[0].mxu0 %v319
    %v2423 = vpop.f32.mrb[0].mxu0
    %v2424 = vadd.f32 %v2231, %v2423
    %v2425 = vpop.f32.mrb[0].mxu0
    %v2426 = vadd.f32 %v2233, %v2425
    %v2427 = vpop.f32.mrb[0].mxu0
    %v2428 = vadd.f32 %v2235, %v2427
    %v2429 = vpop.f32.mrb[0].mxu0
    %v2430 = vadd.f32 %v2237, %v2429
    %2431 = vmatprep.mubr.bf16.mxu0 %v328
    %2432 = vmatmul.mubr.bf16.gmra.mrb[0].mxu0 %v327
    %v2433 = vpop.f32.mrb[0].mxu0
    %v2434 = vadd.f32 %v2241, %v2433
    %v2435 = vpop.f32.mrb[0].mxu0
    %v2436 = vadd.f32 %v2243, %v2435
    %v2437 = vpop.f32.mrb[0].mxu0
    %v2438 = vadd.f32 %v2245, %v2437
    %v2439 = vpop.f32.mrb[0].mxu0
    %v2440 = vadd.f32 %v2247, %v2439
    %2441 = vmatprep.mubr.bf16.mxu0 %v336
    %2442 = vmatmul.mubr.bf16.gmra.mrb[0].mxu0 %v335
    %v2443 = vpop.f32.mrb[0].mxu0
    %v2444 = vadd.f32 %v2251, %v2443
    %v2445 = vpop.f32.mrb[0].mxu0
    %v2446 = vadd.f32 %v2253, %v2445
    %v2447 = vpop.f32.mrb[0].mxu0
    %v2448 = vadd.f32 %v2255, %v2447
    %v2449 = vpop.f32.mrb[0].mxu0
    %v2450 = vadd.f32 %v2257, %v2449
    %2451 = vmatprep.mubr.bf16.mxu0 %v344
    %2452 = vmatmul.mubr.bf16.gmra.mrb[0].mxu0 %v343
    %v2453 = vpop.f32.mrb[0].mxu0
    %v2454 = vadd.f32 %v2261, %v2453
    %v2455 = vpop.f32.mrb[0].mxu0
    %v2456 = vadd.f32 %v2263, %v2455
    %v2457 = vpop.f32.mrb[0].mxu0
    %v2458 = vadd.f32 %v2265, %v2457
    %v2459 = vpop.f32.mrb[0].mxu0
    %v2460 = vadd.f32 %v2267, %v2459
    %2461 = vmatprep.mubr.bf16.mxu0 %v352
    %2462 = vmatmul.mubr.bf16.gmra.mrb[0].mxu0 %v351
    %v2463 = vpop.f32.mrb[0].mxu0
    %v2464 = vadd.f32 %v2271, %v2463
    %v2465 = vpop.f32.mrb[0].mxu0
    %v2466 = vadd.f32 %v2273, %v2465
    %v2467 = vpop.f32.mrb[0].mxu0
    %v2468 = vadd.f32 %v2275, %v2467
    %v2469 = vpop.f32.mrb[0].mxu0
    %v2470 = vadd.f32 %v2277, %v2469
    %2471 = vmatprep.mubr.bf16.mxu0 %v360
    %2472 = vmatmul.mubr.bf16.gmra.mrb[0].mxu0 %v359
    %v2473 = vpop.f32.mrb[0].mxu0
    %v2474 = vadd.f32 %v2281, %v2473
    %v2475 = vpop.f32.mrb[0].mxu0
    %v2476 = vadd.f32 %v2283, %v2475
    %v2477 = vpop.f32.mrb[0].mxu0
    %v2478 = vadd.f32 %v2285, %v2477
    %v2479 = vpop.f32.mrb[0].mxu0
    %v2480 = vadd.f32 %v2287, %v2479
    %2481 = vmatprep.mubr.bf16.mxu0 %v368
    %2482 = vmatmul.mubr.bf16.gmra.mrb[0].mxu0 %v367
    %v2483 = vpop.f32.mrb[0].mxu0
    %v2484 = vadd.f32 %v2291, %v2483
    %v2485 = vpop.f32.mrb[0].mxu0
    %v2486 = vadd.f32 %v2293, %v2485
    %v2487 = vpop.f32.mrb[0].mxu0
    %v2488 = vadd.f32 %v2295, %v2487
    %v2489 = vpop.f32.mrb[0].mxu0
    %v2490 = vadd.f32 %v2297, %v2489
    %2491 = vmatprep.mubr.bf16.mxu0 %v376
    %2492 = vmatmul.mubr.bf16.gmra.mrb[0].mxu0 %v375
    %v2493 = vpop.f32.mrb[0].mxu0
    %v2494 = vadd.f32 %v2301, %v2493
    %v2495 = vpop.f32.mrb[0].mxu0
    %v2496 = vadd.f32 %v2303, %v2495
    %v2497 = vpop.f32.mrb[0].mxu0
    %v2498 = vadd.f32 %v2305, %v2497
    %v2499 = vpop.f32.mrb[0].mxu0
    %v2500 = vadd.f32 %v2307, %v2499
    %2501 = vmatprep.mubr.bf16.mxu0 %v384
    %2502 = vmatmul.mubr.bf16.gmra.mrb[0].mxu0 %v383
    %v2503 = vpop.f32.mrb[0].mxu0
    %v2504 = vadd.f32 %v2311, %v2503
    %v2505 = vpop.f32.mrb[0].mxu0
    %v2506 = vadd.f32 %v2313, %v2505
    %v2507 = vpop.f32.mrb[0].mxu0
    %v2508 = vadd.f32 %v2315, %v2507
    %v2509 = vpop.f32.mrb[0].mxu0
    %v2510 = vadd.f32 %v2317, %v2509
    %2511 = vmatprep.mubr.bf16.mxu0 %v392
    %2512 = vmatmul.mubr.bf16.gmra.mrb[0].mxu0 %v391
    %v2513 = vpop.f32.mrb[0].mxu0
    %v2514 = vadd.f32 %v2321, %v2513
    %v2515 = vpop.f32.mrb[0].mxu0
    %v2516 = vadd.f32 %v2323, %v2515
    %v2517 = vpop.f32.mrb[0].mxu0
    %v2518 = vadd.f32 %v2325, %v2517
    %v2519 = vpop.f32.mrb[0].mxu0
    %v2520 = vadd.f32 %v2327, %v2519
    %2521 = vmatprep.mubr.bf16.mxu0 %v400
    %2522 = vmatmul.mubr.bf16.gmra.mrb[0].mxu0 %v399
    %v2523 = vpop.f32.mrb[0].mxu0
    %v2524 = vadd.f32 %v2331, %v2523
    %v2525 = vpop.f32.mrb[0].mxu0
    %v2526 = vadd.f32 %v2333, %v2525
    %v2527 = vpop.f32.mrb[0].mxu0
    %v2528 = vadd.f32 %v2335, %v2527
    %v2529 = vpop.f32.mrb[0].mxu0
    %v2530 = vadd.f32 %v2337, %v2529
    %2531 = vmatprep.mubr.bf16.mxu0 %v408
    %2532 = vmatmul.mubr.bf16.gmra.mrb[0].mxu0 %v407
    %v2533 = vpop.f32.mrb[0].mxu0
    %v2534 = vadd.f32 %v2341, %v2533
    %v2535 = vpop.f32.mrb[0].mxu0
    %v2536 = vadd.f32 %v2343, %v2535
    %v2537 = vpop.f32.mrb[0].mxu0
    %v2538 = vadd.f32 %v2345, %v2537
    %v2539 = vpop.f32.mrb[0].mxu0
    %v2540 = vadd.f32 %v2347, %v2539
    %2541 = vmatprep.mubr.bf16.mxu0 %v416
    %2542 = vmatmul.mubr.bf16.gmra.mrb[0].mxu0 %v415
    %v2543 = vpop.f32.mrb[0].mxu0
    %v2544 = vadd.f32 %v2351, %v2543
    %v2545 = vpop.f32.mrb[0].mxu0
    %v2546 = vadd.f32 %v2353, %v2545
    %v2547 = vpop.f32.mrb[0].mxu0
    %v2548 = vadd.f32 %v2355, %v2547
    %v2549 = vpop.f32.mrb[0].mxu0
    %v2550 = vadd.f32 %v2357, %v2549
    %2551 = vmatprep.mubr.bf16.mxu0 %v424
    %2552 = vmatmul.mubr.bf16.gmra.mrb[0].mxu0 %v423
    %v2553 = vpop.f32.mrb[0].mxu0
    %v2554 = vadd.f32 %v2361, %v2553
    %v2555 = vpop.f32.mrb[0].mxu0
    %v2556 = vadd.f32 %v2363, %v2555
    %v2557 = vpop.f32.mrb[0].mxu0
    %v2558 = vadd.f32 %v2365, %v2557
    %v2559 = vpop.f32.mrb[0].mxu0
    %v2560 = vadd.f32 %v2367, %v2559
    %2561 = vmatprep.mubr.bf16.mxu0 %v432
    %2562 = vmatmul.mubr.bf16.gmra.mrb[0].mxu0 %v431
    %v2563 = vpop.f32.mrb[0].mxu0
    %v2564 = vadd.f32 %v2371, %v2563
    %v2565 = vpop.f32.mrb[0].mxu0
    %v2566 = vadd.f32 %v2373, %v2565
    %v2567 = vpop.f32.mrb[0].mxu0
    %v2568 = vadd.f32 %v2375, %v2567
    %v2569 = vpop.f32.mrb[0].mxu0
    %v2570 = vadd.f32 %v2377, %v2569
    %2571 = vdwg.mxu0
    %2572 = vmatprep.subr.bf16.mxu0 %v1674
    %2573 = vmatpush1.bf16.msra.mxu0 %v1673
    %2574 = vmatprep.subr.bf16.mxu0 %v1678
    %2575 = vmatpush1.bf16.msra.mxu0 %v1677
    %2576 = vmatprep.subr.bf16.mxu0 %v1682
    %2577 = vmatpush1.bf16.msra.mxu0 %v1681
    %2578 = vmatprep.subr.bf16.mxu0 %v1686
    %2579 = vmatpush1.bf16.msra.mxu0 %v1685
    %2580 = vmatprep.subr.bf16.mxu0 %v1690
    %2581 = vmatpush1.bf16.msra.mxu0 %v1689
    %2582 = vmatprep.subr.bf16.mxu0 %v1694
    %2583 = vmatpush1.bf16.msra.mxu0 %v1693
    %2584 = vmatprep.subr.bf16.mxu0 %v1698
    %2585 = vmatpush1.bf16.msra.mxu0 %v1697
    %2586 = vmatprep.subr.bf16.mxu0 %v1702
    %2587 = vmatpush1.bf16.msra.mxu0 %v1701
    %2588 = vmatprep.subr.bf16.mxu0 %v1706
    %2589 = vmatpush1.bf16.msra.mxu0 %v1705
    %2590 = vmatprep.subr.bf16.mxu0 %v1710
    %2591 = vmatpush1.bf16.msra.mxu0 %v1709
    %2592 = vmatprep.subr.bf16.mxu0 %v1714
    %2593 = vmatpush1.bf16.msra.mxu0 %v1713
    %2594 = vmatprep.subr.bf16.mxu0 %v1718
    %2595 = vmatpush1.bf16.msra.mxu0 %v1717
    %2596 = vmatprep.subr.bf16.mxu0 %v1722
    %2597 = vmatpush1.bf16.msra.mxu0 %v1721
    %2598 = vmatprep.subr.bf16.mxu0 %v1726
    %2599 = vmatpush1.bf16.msra.mxu0 %v1725
    %2600 = vmatprep.subr.bf16.mxu0 %v1730
    %2601 = vmatpush1.bf16.msra.mxu0 %v1729
    %2602 = vmatprep.subr.bf16.mxu0 %v1734
    %2603 = vmatpush1.bf16.msra.mxu0 %v1733
    %2604 = vmatprep.mubr.bf16.mxu0 %v314
    %2605 = vmatmul.mubr.bf16.gmra.mrb[0].mxu0 %v313
    %v2606 = vpop.f32.mrb[0].mxu0
    %v2607 = vadd.f32 %v2414, %v2606
    %v2608 = vpop.f32.mrb[0].mxu0
    %v2609 = vadd.f32 %v2416, %v2608
    %v2610 = vpop.f32.mrb[0].mxu0
    %v2611 = vadd.f32 %v2418, %v2610
    %v2612 = vpop.f32.mrb[0].mxu0
    %v2613 = vadd.f32 %v2420, %v2612
    %2614 = vmatprep.mubr.bf16.mxu0 %v322
    %2615 = vmatmul.mubr.bf16.gmra.mrb[0].mxu0 %v321
    %v2616 = vpop.f32.mrb[0].mxu0
    %v2617 = vadd.f32 %v2424, %v2616
    %v2618 = vpop.f32.mrb[0].mxu0
    %v2619 = vadd.f32 %v2426, %v2618
    %v2620 = vpop.f32.mrb[0].mxu0
    %v2621 = vadd.f32 %v2428, %v2620
    %v2622 = vpop.f32.mrb[0].mxu0
    %v2623 = vadd.f32 %v2430, %v2622
    %2624 = vmatprep.mubr.bf16.mxu0 %v330
    %2625 = vmatmul.mubr.bf16.gmra.mrb[0].mxu0 %v329
    %v2626 = vpop.f32.mrb[0].mxu0
    %v2627 = vadd.f32 %v2434, %v2626
    %v2628 = vpop.f32.mrb[0].mxu0
    %v2629 = vadd.f32 %v2436, %v2628
    %v2630 = vpop.f32.mrb[0].mxu0
    %v2631 = vadd.f32 %v2438, %v2630
    %v2632 = vpop.f32.mrb[0].mxu0
    %v2633 = vadd.f32 %v2440, %v2632
    %2634 = vmatprep.mubr.bf16.mxu0 %v338
    %2635 = vmatmul.mubr.bf16.gmra.mrb[0].mxu0 %v337
    %v2636 = vpop.f32.mrb[0].mxu0
    %v2637 = vadd.f32 %v2444, %v2636
    %v2638 = vpop.f32.mrb[0].mxu0
    %v2639 = vadd.f32 %v2446, %v2638
    %v2640 = vpop.f32.mrb[0].mxu0
    %v2641 = vadd.f32 %v2448, %v2640
    %v2642 = vpop.f32.mrb[0].mxu0
    %v2643 = vadd.f32 %v2450, %v2642
    %2644 = vmatprep.mubr.bf16.mxu0 %v346
    %2645 = vmatmul.mubr.bf16.gmra.mrb[0].mxu0 %v345
    %v2646 = vpop.f32.mrb[0].mxu0
    %v2647 = vadd.f32 %v2454, %v2646
    %v2648 = vpop.f32.mrb[0].mxu0
    %v2649 = vadd.f32 %v2456, %v2648
    %v2650 = vpop.f32.mrb[0].mxu0
    %v2651 = vadd.f32 %v2458, %v2650
    %v2652 = vpop.f32.mrb[0].mxu0
    %v2653 = vadd.f32 %v2460, %v2652
    %2654 = vmatprep.mubr.bf16.mxu0 %v354
    %2655 = vmatmul.mubr.bf16.gmra.mrb[0].mxu0 %v353
    %v2656 = vpop.f32.mrb[0].mxu0
    %v2657 = vadd.f32 %v2464, %v2656
    %v2658 = vpop.f32.mrb[0].mxu0
    %v2659 = vadd.f32 %v2466, %v2658
    %v2660 = vpop.f32.mrb[0].mxu0
    %v2661 = vadd.f32 %v2468, %v2660
    %v2662 = vpop.f32.mrb[0].mxu0
    %v2663 = vadd.f32 %v2470, %v2662
    %2664 = vmatprep.mubr.bf16.mxu0 %v362
    %2665 = vmatmul.mubr.bf16.gmra.mrb[0].mxu0 %v361
    %v2666 = vpop.f32.mrb[0].mxu0
    %v2667 = vadd.f32 %v2474, %v2666
    %v2668 = vpop.f32.mrb[0].mxu0
    %v2669 = vadd.f32 %v2476, %v2668
    %v2670 = vpop.f32.mrb[0].mxu0
    %v2671 = vadd.f32 %v2478, %v2670
    %v2672 = vpop.f32.mrb[0].mxu0
    %v2673 = vadd.f32 %v2480, %v2672
    %2674 = vmatprep.mubr.bf16.mxu0 %v370
    %2675 = vmatmul.mubr.bf16.gmra.mrb[0].mxu0 %v369
    %v2676 = vpop.f32.mrb[0].mxu0
    %v2677 = vadd.f32 %v2484, %v2676
    %v2678 = vpop.f32.mrb[0].mxu0
    %v2679 = vadd.f32 %v2486, %v2678
    %v2680 = vpop.f32.mrb[0].mxu0
    %v2681 = vadd.f32 %v2488, %v2680
    %v2682 = vpop.f32.mrb[0].mxu0
    %v2683 = vadd.f32 %v2490, %v2682
    %2684 = vmatprep.mubr.bf16.mxu0 %v378
    %2685 = vmatmul.mubr.bf16.gmra.mrb[0].mxu0 %v377
    %v2686 = vpop.f32.mrb[0].mxu0
    %v2687 = vadd.f32 %v2494, %v2686
    %v2688 = vpop.f32.mrb[0].mxu0
    %v2689 = vadd.f32 %v2496, %v2688
    %v2690 = vpop.f32.mrb[0].mxu0
    %v2691 = vadd.f32 %v2498, %v2690
    %v2692 = vpop.f32.mrb[0].mxu0
    %v2693 = vadd.f32 %v2500, %v2692
    %2694 = vmatprep.mubr.bf16.mxu0 %v386
    %2695 = vmatmul.mubr.bf16.gmra.mrb[0].mxu0 %v385
    %v2696 = vpop.f32.mrb[0].mxu0
    %v2697 = vadd.f32 %v2504, %v2696
    %v2698 = vpop.f32.mrb[0].mxu0
    %v2699 = vadd.f32 %v2506, %v2698
    %v2700 = vpop.f32.mrb[0].mxu0
    %v2701 = vadd.f32 %v2508, %v2700
    %v2702 = vpop.f32.mrb[0].mxu0
    %v2703 = vadd.f32 %v2510, %v2702
    %2704 = vmatprep.mubr.bf16.mxu0 %v394
    %2705 = vmatmul.mubr.bf16.gmra.mrb[0].mxu0 %v393
    %v2706 = vpop.f32.mrb[0].mxu0
    %v2707 = vadd.f32 %v2514, %v2706
    %v2708 = vpop.f32.mrb[0].mxu0
    %v2709 = vadd.f32 %v2516, %v2708
    %v2710 = vpop.f32.mrb[0].mxu0
    %v2711 = vadd.f32 %v2518, %v2710
    %v2712 = vpop.f32.mrb[0].mxu0
    %v2713 = vadd.f32 %v2520, %v2712
    %2714 = vmatprep.mubr.bf16.mxu0 %v402
    %2715 = vmatmul.mubr.bf16.gmra.mrb[0].mxu0 %v401
    %v2716 = vpop.f32.mrb[0].mxu0
    %v2717 = vadd.f32 %v2524, %v2716
    %v2718 = vpop.f32.mrb[0].mxu0
    %v2719 = vadd.f32 %v2526, %v2718
    %v2720 = vpop.f32.mrb[0].mxu0
    %v2721 = vadd.f32 %v2528, %v2720
    %v2722 = vpop.f32.mrb[0].mxu0
    %v2723 = vadd.f32 %v2530, %v2722
    %2724 = vmatprep.mubr.bf16.mxu0 %v410
    %2725 = vmatmul.mubr.bf16.gmra.mrb[0].mxu0 %v409
    %v2726 = vpop.f32.mrb[0].mxu0
    %v2727 = vadd.f32 %v2534, %v2726
    %v2728 = vpop.f32.mrb[0].mxu0
    %v2729 = vadd.f32 %v2536, %v2728
    %v2730 = vpop.f32.mrb[0].mxu0
    %v2731 = vadd.f32 %v2538, %v2730
    %v2732 = vpop.f32.mrb[0].mxu0
    %v2733 = vadd.f32 %v2540, %v2732
    %2734 = vmatprep.mubr.bf16.mxu0 %v418
    %2735 = vmatmul.mubr.bf16.gmra.mrb[0].mxu0 %v417
    %v2736 = vpop.f32.mrb[0].mxu0
    %v2737 = vadd.f32 %v2544, %v2736
    %v2738 = vpop.f32.mrb[0].mxu0
    %v2739 = vadd.f32 %v2546, %v2738
    %v2740 = vpop.f32.mrb[0].mxu0
    %v2741 = vadd.f32 %v2548, %v2740
    %v2742 = vpop.f32.mrb[0].mxu0
    %v2743 = vadd.f32 %v2550, %v2742
    %2744 = vmatprep.mubr.bf16.mxu0 %v426
    %2745 = vmatmul.mubr.bf16.gmra.mrb[0].mxu0 %v425
    %v2746 = vpop.f32.mrb[0].mxu0
    %v2747 = vadd.f32 %v2554, %v2746
    %v2748 = vpop.f32.mrb[0].mxu0
    %v2749 = vadd.f32 %v2556, %v2748
    %v2750 = vpop.f32.mrb[0].mxu0
    %v2751 = vadd.f32 %v2558, %v2750
    %v2752 = vpop.f32.mrb[0].mxu0
    %v2753 = vadd.f32 %v2560, %v2752
    %2754 = vmatprep.mubr.bf16.mxu0 %v434
    %2755 = vmatmul.mubr.bf16.gmra.mrb[0].mxu0 %v433
    %v2756 = vpop.f32.mrb[0].mxu0
    %v2757 = vadd.f32 %v2564, %v2756
    %v2758 = vpop.f32.mrb[0].mxu0
    %v2759 = vadd.f32 %v2566, %v2758
    %v2760 = vpop.f32.mrb[0].mxu0
    %v2761 = vadd.f32 %v2568, %v2760
    %v2762 = vpop.f32.mrb[0].mxu0
    %v2763 = vadd.f32 %v2570, %v2762
    %2764 = vdwg.mxu0
    %2765 = vmatprep.subr.bf16.mxu0 %v1484
    %2766 = vmatpush1.bf16.msra.mxu0 %v1483
    %2767 = vmatprep.subr.bf16.mxu0 %v1488
    %2768 = vmatpush1.bf16.msra.mxu0 %v1487
    %2769 = vmatprep.subr.bf16.mxu0 %v1492
    %2770 = vmatpush1.bf16.msra.mxu0 %v1491
    %2771 = vmatprep.subr.bf16.mxu0 %v1496
    %2772 = vmatpush1.bf16.msra.mxu0 %v1495
    %2773 = vmatprep.subr.bf16.mxu0 %v1500
    %2774 = vmatpush1.bf16.msra.mxu0 %v1499
    %2775 = vmatprep.subr.bf16.mxu0 %v1504
    %2776 = vmatpush1.bf16.msra.mxu0 %v1503
    %2777 = vmatprep.subr.bf16.mxu0 %v1508
    %2778 = vmatpush1.bf16.msra.mxu0 %v1507
    %2779 = vmatprep.subr.bf16.mxu0 %v1512
    %2780 = vmatpush1.bf16.msra.mxu0 %v1511
    %2781 = vmatprep.subr.bf16.mxu0 %v1516
    %2782 = vmatpush1.bf16.msra.mxu0 %v1515
    %2783 = vmatprep.subr.bf16.mxu0 %v1520
    %2784 = vmatpush1.bf16.msra.mxu0 %v1519
    %2785 = vmatprep.subr.bf16.mxu0 %v1524
    %2786 = vmatpush1.bf16.msra.mxu0 %v1523
    %2787 = vmatprep.subr.bf16.mxu0 %v1528
    %2788 = vmatpush1.bf16.msra.mxu0 %v1527
    %2789 = vmatprep.subr.bf16.mxu0 %v1532
    %2790 = vmatpush1.bf16.msra.mxu0 %v1531
    %2791 = vmatprep.subr.bf16.mxu0 %v1536
    %2792 = vmatpush1.bf16.msra.mxu0 %v1535
    %2793 = vmatprep.subr.bf16.mxu0 %v1540
    %2794 = vmatpush1.bf16.msra.mxu0 %v1539
    %2795 = vmatprep.subr.bf16.mxu0 %v1544
    %2796 = vmatpush1.bf16.msra.mxu0 %v1543
    %2797 = vmatprep.mubr.bf16.mxu0 %v308
    %2798 = vmatmul.mubr.bf16.gmra.mrb[0].mxu0 %v307
    %v2799 = vpop.f32.mrb[0].mxu0
    %v2800 = vadd.f32 %v704, %v2799
    %v2801 = vpop.f32.mrb[0].mxu0
    %v2802 = vadd.f32 %v708, %v2801
    %v2803 = vpop.f32.mrb[0].mxu0
    %v2804 = vadd.f32 %v704, %v2803
    %v2805 = vpop.f32.mrb[0].mxu0
    %v2806 = vadd.f32 %v708, %v2805
    %2807 = vmatprep.mubr.bf16.mxu0 %v316
    %2808 = vmatmul.mubr.bf16.gmra.mrb[0].mxu0 %v315
    %v2809 = vpop.f32.mrb[0].mxu0
    %v2810 = vadd.f32 %v704, %v2809
    %v2811 = vpop.f32.mrb[0].mxu0
    %v2812 = vadd.f32 %v708, %v2811
    %v2813 = vpop.f32.mrb[0].mxu0
    %v2814 = vadd.f32 %v704, %v2813
    %v2815 = vpop.f32.mrb[0].mxu0
    %v2816 = vadd.f32 %v708, %v2815
    %2817 = vmatprep.mubr.bf16.mxu0 %v324
    %2818 = vmatmul.mubr.bf16.gmra.mrb[0].mxu0 %v323
    %v2819 = vpop.f32.mrb[0].mxu0
    %v2820 = vadd.f32 %v704, %v2819
    %v2821 = vpop.f32.mrb[0].mxu0
    %v2822 = vadd.f32 %v708, %v2821
    %v2823 = vpop.f32.mrb[0].mxu0
    %v2824 = vadd.f32 %v704, %v2823
    %v2825 = vpop.f32.mrb[0].mxu0
    %v2826 = vadd.f32 %v708, %v2825
    %2827 = vmatprep.mubr.bf16.mxu0 %v332
    %2828 = vmatmul.mubr.bf16.gmra.mrb[0].mxu0 %v331
    %v2829 = vpop.f32.mrb[0].mxu0
    %v2830 = vadd.f32 %v704, %v2829
    %v2831 = vpop.f32.mrb[0].mxu0
    %v2832 = vadd.f32 %v708, %v2831
    %v2833 = vpop.f32.mrb[0].mxu0
    %v2834 = vadd.f32 %v704, %v2833
    %v2835 = vpop.f32.mrb[0].mxu0
    %v2836 = vadd.f32 %v708, %v2835
    %2837 = vmatprep.mubr.bf16.mxu0 %v340
    %2838 = vmatmul.mubr.bf16.gmra.mrb[0].mxu0 %v339
    %v2839 = vpop.f32.mrb[0].mxu0
    %v2840 = vadd.f32 %v704, %v2839
    %v2841 = vpop.f32.mrb[0].mxu0
    %v2842 = vadd.f32 %v708, %v2841
    %v2843 = vpop.f32.mrb[0].mxu0
    %v2844 = vadd.f32 %v704, %v2843
    %v2845 = vpop.f32.mrb[0].mxu0
    %v2846 = vadd.f32 %v708, %v2845
    %2847 = vmatprep.mubr.bf16.mxu0 %v348
    %2848 = vmatmul.mubr.bf16.gmra.mrb[0].mxu0 %v347
    %v2849 = vpop.f32.mrb[0].mxu0
    %v2850 = vadd.f32 %v704, %v2849
    %v2851 = vpop.f32.mrb[0].mxu0
    %v2852 = vadd.f32 %v708, %v2851
    %v2853 = vpop.f32.mrb[0].mxu0
    %v2854 = vadd.f32 %v704, %v2853
    %v2855 = vpop.f32.mrb[0].mxu0
    %v2856 = vadd.f32 %v708, %v2855
    %2857 = vmatprep.mubr.bf16.mxu0 %v356
    %2858 = vmatmul.mubr.bf16.gmra.mrb[0].mxu0 %v355
    %v2859 = vpop.f32.mrb[0].mxu0
    %v2860 = vadd.f32 %v704, %v2859
    %v2861 = vpop.f32.mrb[0].mxu0
    %v2862 = vadd.f32 %v708, %v2861
    %v2863 = vpop.f32.mrb[0].mxu0
    %v2864 = vadd.f32 %v704, %v2863
    %v2865 = vpop.f32.mrb[0].mxu0
    %v2866 = vadd.f32 %v708, %v2865
    %2867 = vmatprep.mubr.bf16.mxu0 %v364
    %2868 = vmatmul.mubr.bf16.gmra.mrb[0].mxu0 %v363
    %v2869 = vpop.f32.mrb[0].mxu0
    %v2870 = vadd.f32 %v704, %v2869
    %v2871 = vpop.f32.mrb[0].mxu0
    %v2872 = vadd.f32 %v708, %v2871
    %v2873 = vpop.f32.mrb[0].mxu0
    %v2874 = vadd.f32 %v704, %v2873
    %v2875 = vpop.f32.mrb[0].mxu0
    %v2876 = vadd.f32 %v708, %v2875
    %2877 = vmatprep.mubr.bf16.mxu0 %v372
    %2878 = vmatmul.mubr.bf16.gmra.mrb[0].mxu0 %v371
    %v2879 = vpop.f32.mrb[0].mxu0
    %v2880 = vadd.f32 %v704, %v2879
    %v2881 = vpop.f32.mrb[0].mxu0
    %v2882 = vadd.f32 %v708, %v2881
    %v2883 = vpop.f32.mrb[0].mxu0
    %v2884 = vadd.f32 %v704, %v2883
    %v2885 = vpop.f32.mrb[0].mxu0
    %v2886 = vadd.f32 %v708, %v2885
    %2887 = vmatprep.mubr.bf16.mxu0 %v380
    %2888 = vmatmul.mubr.bf16.gmra.mrb[0].mxu0 %v379
    %v2889 = vpop.f32.mrb[0].mxu0
    %v2890 = vadd.f32 %v704, %v2889
    %v2891 = vpop.f32.mrb[0].mxu0
    %v2892 = vadd.f32 %v708, %v2891
    %v2893 = vpop.f32.mrb[0].mxu0
    %v2894 = vadd.f32 %v704, %v2893
    %v2895 = vpop.f32.mrb[0].mxu0
    %v2896 = vadd.f32 %v708, %v2895
    %2897 = vmatprep.mubr.bf16.mxu0 %v388
    %2898 = vmatmul.mubr.bf16.gmra.mrb[0].mxu0 %v387
    %v2899 = vpop.f32.mrb[0].mxu0
    %v2900 = vadd.f32 %v704, %v2899
    %v2901 = vpop.f32.mrb[0].mxu0
    %v2902 = vadd.f32 %v708, %v2901
    %v2903 = vpop.f32.mrb[0].mxu0
    %v2904 = vadd.f32 %v704, %v2903
    %v2905 = vpop.f32.mrb[0].mxu0
    %v2906 = vadd.f32 %v708, %v2905
    %2907 = vmatprep.mubr.bf16.mxu0 %v396
    %2908 = vmatmul.mubr.bf16.gmra.mrb[0].mxu0 %v395
    %v2909 = vpop.f32.mrb[0].mxu0
    %v2910 = vadd.f32 %v704, %v2909
    %v2911 = vpop.f32.mrb[0].mxu0
    %v2912 = vadd.f32 %v708, %v2911
    %v2913 = vpop.f32.mrb[0].mxu0
    %v2914 = vadd.f32 %v704, %v2913
    %v2915 = vpop.f32.mrb[0].mxu0
    %v2916 = vadd.f32 %v708, %v2915
    %2917 = vmatprep.mubr.bf16.mxu0 %v404
    %2918 = vmatmul.mubr.bf16.gmra.mrb[0].mxu0 %v403
    %v2919 = vpop.f32.mrb[0].mxu0
    %v2920 = vadd.f32 %v704, %v2919
    %v2921 = vpop.f32.mrb[0].mxu0
    %v2922 = vadd.f32 %v708, %v2921
    %v2923 = vpop.f32.mrb[0].mxu0
    %v2924 = vadd.f32 %v704, %v2923
    %v2925 = vpop.f32.mrb[0].mxu0
    %v2926 = vadd.f32 %v708, %v2925
    %2927 = vmatprep.mubr.bf16.mxu0 %v412
    %2928 = vmatmul.mubr.bf16.gmra.mrb[0].mxu0 %v411
    %v2929 = vpop.f32.mrb[0].mxu0
    %v2930 = vadd.f32 %v704, %v2929
    %v2931 = vpop.f32.mrb[0].mxu0
    %v2932 = vadd.f32 %v708, %v2931
    %v2933 = vpop.f32.mrb[0].mxu0
    %v2934 = vadd.f32 %v704, %v2933
    %v2935 = vpop.f32.mrb[0].mxu0
    %v2936 = vadd.f32 %v708, %v2935
    %2937 = vmatprep.mubr.bf16.mxu0 %v420
    %2938 = vmatmul.mubr.bf16.gmra.mrb[0].mxu0 %v419
    %v2939 = vpop.f32.mrb[0].mxu0
    %v2940 = vadd.f32 %v704, %v2939
    %v2941 = vpop.f32.mrb[0].mxu0
    %v2942 = vadd.f32 %v708, %v2941
    %v2943 = vpop.f32.mrb[0].mxu0
    %v2944 = vadd.f32 %v704, %v2943
    %v2945 = vpop.f32.mrb[0].mxu0
    %v2946 = vadd.f32 %v708, %v2945
    %2947 = vmatprep.mubr.bf16.mxu0 %v428
    %2948 = vmatmul.mubr.bf16.gmra.mrb[0].mxu0 %v427
    %v2949 = vpop.f32.mrb[0].mxu0
    %v2950 = vadd.f32 %v704, %v2949
    %v2951 = vpop.f32.mrb[0].mxu0
    %v2952 = vadd.f32 %v708, %v2951
    %v2953 = vpop.f32.mrb[0].mxu0
    %v2954 = vadd.f32 %v704, %v2953
    %v2955 = vpop.f32.mrb[0].mxu0
    %v2956 = vadd.f32 %v708, %v2955
    %2957 = vdwg.mxu0
    %2958 = vmatprep.subr.bf16.mxu0 %v1548
    %2959 = vmatpush1.bf16.msra.mxu0 %v1547
    %2960 = vmatprep.subr.bf16.mxu0 %v1552
    %2961 = vmatpush1.bf16.msra.mxu0 %v1551
    %2962 = vmatprep.subr.bf16.mxu0 %v1556
    %2963 = vmatpush1.bf16.msra.mxu0 %v1555
    %2964 = vmatprep.subr.bf16.mxu0 %v1560
    %2965 = vmatpush1.bf16.msra.mxu0 %v1559
    %2966 = vmatprep.subr.bf16.mxu0 %v1564
    %2967 = vmatpush1.bf16.msra.mxu0 %v1563
    %2968 = vmatprep.subr.bf16.mxu0 %v1568
    %2969 = vmatpush1.bf16.msra.mxu0 %v1567
    %2970 = vmatprep.subr.bf16.mxu0 %v1572
    %2971 = vmatpush1.bf16.msra.mxu0 %v1571
    %2972 = vmatprep.subr.bf16.mxu0 %v1576
    %2973 = vmatpush1.bf16.msra.mxu0 %v1575
    %2974 = vmatprep.subr.bf16.mxu0 %v1580
    %2975 = vmatpush1.bf16.msra.mxu0 %v1579
    %2976 = vmatprep.subr.bf16.mxu0 %v1584
    %2977 = vmatpush1.bf16.msra.mxu0 %v1583
    %2978 = vmatprep.subr.bf16.mxu0 %v1588
    %2979 = vmatpush1.bf16.msra.mxu0 %v1587
    %2980 = vmatprep.subr.bf16.mxu0 %v1592
    %2981 = vmatpush1.bf16.msra.mxu0 %v1591
    %2982 = vmatprep.subr.bf16.mxu0 %v1596
    %2983 = vmatpush1.bf16.msra.mxu0 %v1595
    %2984 = vmatprep.subr.bf16.mxu0 %v1600
    %2985 = vmatpush1.bf16.msra.mxu0 %v1599
    %2986 = vmatprep.subr.bf16.mxu0 %v1604
    %2987 = vmatpush1.bf16.msra.mxu0 %v1603
    %2988 = vmatprep.subr.bf16.mxu0 %v1608
    %2989 = vmatpush1.bf16.msra.mxu0 %v1607
    %2990 = vmatprep.mubr.bf16.mxu0 %v310
    %2991 = vmatmul.mubr.bf16.gmra.mrb[0].mxu0 %v309
    %v2992 = vpop.f32.mrb[0].mxu0
    %v2993 = vadd.f32 %v2800, %v2992
    %v2994 = vpop.f32.mrb[0].mxu0
    %v2995 = vadd.f32 %v2802, %v2994
    %v2996 = vpop.f32.mrb[0].mxu0
    %v2997 = vadd.f32 %v2804, %v2996
    %v2998 = vpop.f32.mrb[0].mxu0
    %v2999 = vadd.f32 %v2806, %v2998
    %3000 = vmatprep.mubr.bf16.mxu0 %v318
    %3001 = vmatmul.mubr.bf16.gmra.mrb[0].mxu0 %v317
    %v3002 = vpop.f32.mrb[0].mxu0
    %v3003 = vadd.f32 %v2810, %v3002
    %v3004 = vpop.f32.mrb[0].mxu0
    %v3005 = vadd.f32 %v2812, %v3004
    %v3006 = vpop.f32.mrb[0].mxu0
    %v3007 = vadd.f32 %v2814, %v3006
    %v3008 = vpop.f32.mrb[0].mxu0
    %v3009 = vadd.f32 %v2816, %v3008
    %3010 = vmatprep.mubr.bf16.mxu0 %v326
    %3011 = vmatmul.mubr.bf16.gmra.mrb[0].mxu0 %v325
    %v3012 = vpop.f32.mrb[0].mxu0
    %v3013 = vadd.f32 %v2820, %v3012
    %v3014 = vpop.f32.mrb[0].mxu0
    %v3015 = vadd.f32 %v2822, %v3014
    %v3016 = vpop.f32.mrb[0].mxu0
    %v3017 = vadd.f32 %v2824, %v3016
    %v3018 = vpop.f32.mrb[0].mxu0
    %v3019 = vadd.f32 %v2826, %v3018
    %3020 = vmatprep.mubr.bf16.mxu0 %v334
    %3021 = vmatmul.mubr.bf16.gmra.mrb[0].mxu0 %v333
    %v3022 = vpop.f32.mrb[0].mxu0
    %v3023 = vadd.f32 %v2830, %v3022
    %v3024 = vpop.f32.mrb[0].mxu0
    %v3025 = vadd.f32 %v2832, %v3024
    %v3026 = vpop.f32.mrb[0].mxu0
    %v3027 = vadd.f32 %v2834, %v3026
    %v3028 = vpop.f32.mrb[0].mxu0
    %v3029 = vadd.f32 %v2836, %v3028
    %3030 = vmatprep.mubr.bf16.mxu0 %v342
    %3031 = vmatmul.mubr.bf16.gmra.mrb[0].mxu0 %v341
    %v3032 = vpop.f32.mrb[0].mxu0
    %v3033 = vadd.f32 %v2840, %v3032
    %v3034 = vpop.f32.mrb[0].mxu0
    %v3035 = vadd.f32 %v2842, %v3034
    %v3036 = vpop.f32.mrb[0].mxu0
    %v3037 = vadd.f32 %v2844, %v3036
    %v3038 = vpop.f32.mrb[0].mxu0
    %v3039 = vadd.f32 %v2846, %v3038
    %3040 = vmatprep.mubr.bf16.mxu0 %v350
    %3041 = vmatmul.mubr.bf16.gmra.mrb[0].mxu0 %v349
    %v3042 = vpop.f32.mrb[0].mxu0
    %v3043 = vadd.f32 %v2850, %v3042
    %v3044 = vpop.f32.mrb[0].mxu0
    %v3045 = vadd.f32 %v2852, %v3044
    %v3046 = vpop.f32.mrb[0].mxu0
    %v3047 = vadd.f32 %v2854, %v3046
    %v3048 = vpop.f32.mrb[0].mxu0
    %v3049 = vadd.f32 %v2856, %v3048
    %3050 = vmatprep.mubr.bf16.mxu0 %v358
    %3051 = vmatmul.mubr.bf16.gmra.mrb[0].mxu0 %v357
    %v3052 = vpop.f32.mrb[0].mxu0
    %v3053 = vadd.f32 %v2860, %v3052
    %v3054 = vpop.f32.mrb[0].mxu0
    %v3055 = vadd.f32 %v2862, %v3054
    %v3056 = vpop.f32.mrb[0].mxu0
    %v3057 = vadd.f32 %v2864, %v3056
    %v3058 = vpop.f32.mrb[0].mxu0
    %v3059 = vadd.f32 %v2866, %v3058
    %3060 = vmatprep.mubr.bf16.mxu0 %v366
    %3061 = vmatmul.mubr.bf16.gmra.mrb[0].mxu0 %v365
    %v3062 = vpop.f32.mrb[0].mxu0
    %v3063 = vadd.f32 %v2870, %v3062
    %v3064 = vpop.f32.mrb[0].mxu0
    %v3065 = vadd.f32 %v2872, %v3064
    %v3066 = vpop.f32.mrb[0].mxu0
    %v3067 = vadd.f32 %v2874, %v3066
    %v3068 = vpop.f32.mrb[0].mxu0
    %v3069 = vadd.f32 %v2876, %v3068
    %3070 = vmatprep.mubr.bf16.mxu0 %v374
    %3071 = vmatmul.mubr.bf16.gmra.mrb[0].mxu0 %v373
    %v3072 = vpop.f32.mrb[0].mxu0
    %v3073 = vadd.f32 %v2880, %v3072
    %v3074 = vpop.f32.mrb[0].mxu0
    %v3075 = vadd.f32 %v2882, %v3074
    %v3076 = vpop.f32.mrb[0].mxu0
    %v3077 = vadd.f32 %v2884, %v3076
    %v3078 = vpop.f32.mrb[0].mxu0
    %v3079 = vadd.f32 %v2886, %v3078
    %3080 = vmatprep.mubr.bf16.mxu0 %v382
    %3081 = vmatmul.mubr.bf16.gmra.mrb[0].mxu0 %v381
    %v3082 = vpop.f32.mrb[0].mxu0
    %v3083 = vadd.f32 %v2890, %v3082
    %v3084 = vpop.f32.mrb[0].mxu0
    %v3085 = vadd.f32 %v2892, %v3084
    %v3086 = vpop.f32.mrb[0].mxu0
    %v3087 = vadd.f32 %v2894, %v3086
    %v3088 = vpop.f32.mrb[0].mxu0
    %v3089 = vadd.f32 %v2896, %v3088
    %3090 = vmatprep.mubr.bf16.mxu0 %v390
    %3091 = vmatmul.mubr.bf16.gmra.mrb[0].mxu0 %v389
    %v3092 = vpop.f32.mrb[0].mxu0
    %v3093 = vadd.f32 %v2900, %v3092
    %v3094 = vpop.f32.mrb[0].mxu0
    %v3095 = vadd.f32 %v2902, %v3094
    %v3096 = vpop.f32.mrb[0].mxu0
    %v3097 = vadd.f32 %v2904, %v3096
    %v3098 = vpop.f32.mrb[0].mxu0
    %v3099 = vadd.f32 %v2906, %v3098
    %3100 = vmatprep.mubr.bf16.mxu0 %v398
    %3101 = vmatmul.mubr.bf16.gmra.mrb[0].mxu0 %v397
    %v3102 = vpop.f32.mrb[0].mxu0
    %v3103 = vadd.f32 %v2910, %v3102
    %v3104 = vpop.f32.mrb[0].mxu0
    %v3105 = vadd.f32 %v2912, %v3104
    %v3106 = vpop.f32.mrb[0].mxu0
    %v3107 = vadd.f32 %v2914, %v3106
    %v3108 = vpop.f32.mrb[0].mxu0
    %v3109 = vadd.f32 %v2916, %v3108
    %3110 = vmatprep.mubr.bf16.mxu0 %v406
    %3111 = vmatmul.mubr.bf16.gmra.mrb[0].mxu0 %v405
    %v3112 = vpop.f32.mrb[0].mxu0
    %v3113 = vadd.f32 %v2920, %v3112
    %v3114 = vpop.f32.mrb[0].mxu0
    %v3115 = vadd.f32 %v2922, %v3114
    %v3116 = vpop.f32.mrb[0].mxu0
    %v3117 = vadd.f32 %v2924, %v3116
    %v3118 = vpop.f32.mrb[0].mxu0
    %v3119 = vadd.f32 %v2926, %v3118
    %3120 = vmatprep.mubr.bf16.mxu0 %v414
    %3121 = vmatmul.mubr.bf16.gmra.mrb[0].mxu0 %v413
    %v3122 = vpop.f32.mrb[0].mxu0
    %v3123 = vadd.f32 %v2930, %v3122
    %v3124 = vpop.f32.mrb[0].mxu0
    %v3125 = vadd.f32 %v2932, %v3124
    %v3126 = vpop.f32.mrb[0].mxu0
    %v3127 = vadd.f32 %v2934, %v3126
    %v3128 = vpop.f32.mrb[0].mxu0
    %v3129 = vadd.f32 %v2936, %v3128
    %3130 = vmatprep.mubr.bf16.mxu0 %v422
    %3131 = vmatmul.mubr.bf16.gmra.mrb[0].mxu0 %v421
    %v3132 = vpop.f32.mrb[0].mxu0
    %v3133 = vadd.f32 %v2940, %v3132
    %v3134 = vpop.f32.mrb[0].mxu0
    %v3135 = vadd.f32 %v2942, %v3134
    %v3136 = vpop.f32.mrb[0].mxu0
    %v3137 = vadd.f32 %v2944, %v3136
    %v3138 = vpop.f32.mrb[0].mxu0
    %v3139 = vadd.f32 %v2946, %v3138
    %3140 = vmatprep.mubr.bf16.mxu0 %v430
    %3141 = vmatmul.mubr.bf16.gmra.mrb[0].mxu0 %v429
    %v3142 = vpop.f32.mrb[0].mxu0
    %v3143 = vadd.f32 %v2950, %v3142
    %v3144 = vpop.f32.mrb[0].mxu0
    %v3145 = vadd.f32 %v2952, %v3144
    %v3146 = vpop.f32.mrb[0].mxu0
    %v3147 = vadd.f32 %v2954, %v3146
    %v3148 = vpop.f32.mrb[0].mxu0
    %v3149 = vadd.f32 %v2956, %v3148
    %3150 = vdwg.mxu0
    %3151 = vmatprep.subr.bf16.mxu0 %v1612
    %3152 = vmatpush1.bf16.msra.mxu0 %v1611
    %3153 = vmatprep.subr.bf16.mxu0 %v1616
    %3154 = vmatpush1.bf16.msra.mxu0 %v1615
    %3155 = vmatprep.subr.bf16.mxu0 %v1620
    %3156 = vmatpush1.bf16.msra.mxu0 %v1619
    %3157 = vmatprep.subr.bf16.mxu0 %v1624
    %3158 = vmatpush1.bf16.msra.mxu0 %v1623
    %3159 = vmatprep.subr.bf16.mxu0 %v1628
    %3160 = vmatpush1.bf16.msra.mxu0 %v1627
    %3161 = vmatprep.subr.bf16.mxu0 %v1632
    %3162 = vmatpush1.bf16.msra.mxu0 %v1631
    %3163 = vmatprep.subr.bf16.mxu0 %v1636
    %3164 = vmatpush1.bf16.msra.mxu0 %v1635
    %3165 = vmatprep.subr.bf16.mxu0 %v1640
    %3166 = vmatpush1.bf16.msra.mxu0 %v1639
    %3167 = vmatprep.subr.bf16.mxu0 %v1644
    %3168 = vmatpush1.bf16.msra.mxu0 %v1643
    %3169 = vmatprep.subr.bf16.mxu0 %v1648
    %3170 = vmatpush1.bf16.msra.mxu0 %v1647
    %3171 = vmatprep.subr.bf16.mxu0 %v1652
    %3172 = vmatpush1.bf16.msra.mxu0 %v1651
    %3173 = vmatprep.subr.bf16.mxu0 %v1656
    %3174 = vmatpush1.bf16.msra.mxu0 %v1655
    %3175 = vmatprep.subr.bf16.mxu0 %v1660
    %3176 = vmatpush1.bf16.msra.mxu0 %v1659
    %3177 = vmatprep.subr.bf16.mxu0 %v1664
    %3178 = vmatpush1.bf16.msra.mxu0 %v1663
    %3179 = vmatprep.subr.bf16.mxu0 %v1668
    %3180 = vmatpush1.bf16.msra.mxu0 %v1667
    %3181 = vmatprep.subr.bf16.mxu0 %v1672
    %3182 = vmatpush1.bf16.msra.mxu0 %v1671
    %3183 = vmatprep.mubr.bf16.mxu0 %v312
    %3184 = vmatmul.mubr.bf16.gmra.mrb[0].mxu0 %v311
    %v3185 = vpop.f32.mrb[0].mxu0
    %v3186 = vadd.f32 %v2993, %v3185
    %v3187 = vpop.f32.mrb[0].mxu0
    %v3188 = vadd.f32 %v2995, %v3187
    %v3189 = vpop.f32.mrb[0].mxu0
    %v3190 = vadd.f32 %v2997, %v3189
    %v3191 = vpop.f32.mrb[0].mxu0
    %v3192 = vadd.f32 %v2999, %v3191
    %3193 = vmatprep.mubr.bf16.mxu0 %v320
    %3194 = vmatmul.mubr.bf16.gmra.mrb[0].mxu0 %v319
    %v3195 = vpop.f32.mrb[0].mxu0
    %v3196 = vadd.f32 %v3003, %v3195
    %v3197 = vpop.f32.mrb[0].mxu0
    %v3198 = vadd.f32 %v3005, %v3197
    %v3199 = vpop.f32.mrb[0].mxu0
    %v3200 = vadd.f32 %v3007, %v3199
    %v3201 = vpop.f32.mrb[0].mxu0
    %v3202 = vadd.f32 %v3009, %v3201
    %3203 = vmatprep.mubr.bf16.mxu0 %v328
    %3204 = vmatmul.mubr.bf16.gmra.mrb[0].mxu0 %v327
    %v3205 = vpop.f32.mrb[0].mxu0
    %v3206 = vadd.f32 %v3013, %v3205
    %v3207 = vpop.f32.mrb[0].mxu0
    %v3208 = vadd.f32 %v3015, %v3207
    %v3209 = vpop.f32.mrb[0].mxu0
    %v3210 = vadd.f32 %v3017, %v3209
    %v3211 = vpop.f32.mrb[0].mxu0
    %v3212 = vadd.f32 %v3019, %v3211
    %3213 = vmatprep.mubr.bf16.mxu0 %v336
    %3214 = vmatmul.mubr.bf16.gmra.mrb[0].mxu0 %v335
    %v3215 = vpop.f32.mrb[0].mxu0
    %v3216 = vadd.f32 %v3023, %v3215
    %v3217 = vpop.f32.mrb[0].mxu0
    %v3218 = vadd.f32 %v3025, %v3217
    %v3219 = vpop.f32.mrb[0].mxu0
    %v3220 = vadd.f32 %v3027, %v3219
    %v3221 = vpop.f32.mrb[0].mxu0
    %v3222 = vadd.f32 %v3029, %v3221
    %3223 = vmatprep.mubr.bf16.mxu0 %v344
    %3224 = vmatmul.mubr.bf16.gmra.mrb[0].mxu0 %v343
    %v3225 = vpop.f32.mrb[0].mxu0
    %v3226 = vadd.f32 %v3033, %v3225
    %v3227 = vpop.f32.mrb[0].mxu0
    %v3228 = vadd.f32 %v3035, %v3227
    %v3229 = vpop.f32.mrb[0].mxu0
    %v3230 = vadd.f32 %v3037, %v3229
    %v3231 = vpop.f32.mrb[0].mxu0
    %v3232 = vadd.f32 %v3039, %v3231
    %3233 = vmatprep.mubr.bf16.mxu0 %v352
    %3234 = vmatmul.mubr.bf16.gmra.mrb[0].mxu0 %v351
    %v3235 = vpop.f32.mrb[0].mxu0
    %v3236 = vadd.f32 %v3043, %v3235
    %v3237 = vpop.f32.mrb[0].mxu0
    %v3238 = vadd.f32 %v3045, %v3237
    %v3239 = vpop.f32.mrb[0].mxu0
    %v3240 = vadd.f32 %v3047, %v3239
    %v3241 = vpop.f32.mrb[0].mxu0
    %v3242 = vadd.f32 %v3049, %v3241
    %3243 = vmatprep.mubr.bf16.mxu0 %v360
    %3244 = vmatmul.mubr.bf16.gmra.mrb[0].mxu0 %v359
    %v3245 = vpop.f32.mrb[0].mxu0
    %v3246 = vadd.f32 %v3053, %v3245
    %v3247 = vpop.f32.mrb[0].mxu0
    %v3248 = vadd.f32 %v3055, %v3247
    %v3249 = vpop.f32.mrb[0].mxu0
    %v3250 = vadd.f32 %v3057, %v3249
    %v3251 = vpop.f32.mrb[0].mxu0
    %v3252 = vadd.f32 %v3059, %v3251
    %3253 = vmatprep.mubr.bf16.mxu0 %v368
    %3254 = vmatmul.mubr.bf16.gmra.mrb[0].mxu0 %v367
    %v3255 = vpop.f32.mrb[0].mxu0
    %v3256 = vadd.f32 %v3063, %v3255
    %v3257 = vpop.f32.mrb[0].mxu0
    %v3258 = vadd.f32 %v3065, %v3257
    %v3259 = vpop.f32.mrb[0].mxu0
    %v3260 = vadd.f32 %v3067, %v3259
    %v3261 = vpop.f32.mrb[0].mxu0
    %v3262 = vadd.f32 %v3069, %v3261
    %3263 = vmatprep.mubr.bf16.mxu0 %v376
    %3264 = vmatmul.mubr.bf16.gmra.mrb[0].mxu0 %v375
    %v3265 = vpop.f32.mrb[0].mxu0
    %v3266 = vadd.f32 %v3073, %v3265
    %v3267 = vpop.f32.mrb[0].mxu0
    %v3268 = vadd.f32 %v3075, %v3267
    %v3269 = vpop.f32.mrb[0].mxu0
    %v3270 = vadd.f32 %v3077, %v3269
    %v3271 = vpop.f32.mrb[0].mxu0
    %v3272 = vadd.f32 %v3079, %v3271
    %3273 = vmatprep.mubr.bf16.mxu0 %v384
    %3274 = vmatmul.mubr.bf16.gmra.mrb[0].mxu0 %v383
    %v3275 = vpop.f32.mrb[0].mxu0
    %v3276 = vadd.f32 %v3083, %v3275
    %v3277 = vpop.f32.mrb[0].mxu0
    %v3278 = vadd.f32 %v3085, %v3277
    %v3279 = vpop.f32.mrb[0].mxu0
    %v3280 = vadd.f32 %v3087, %v3279
    %v3281 = vpop.f32.mrb[0].mxu0
    %v3282 = vadd.f32 %v3089, %v3281
    %3283 = vmatprep.mubr.bf16.mxu0 %v392
    %3284 = vmatmul.mubr.bf16.gmra.mrb[0].mxu0 %v391
    %v3285 = vpop.f32.mrb[0].mxu0
    %v3286 = vadd.f32 %v3093, %v3285
    %v3287 = vpop.f32.mrb[0].mxu0
    %v3288 = vadd.f32 %v3095, %v3287
    %v3289 = vpop.f32.mrb[0].mxu0
    %v3290 = vadd.f32 %v3097, %v3289
    %v3291 = vpop.f32.mrb[0].mxu0
    %v3292 = vadd.f32 %v3099, %v3291
    %3293 = vmatprep.mubr.bf16.mxu0 %v400
    %3294 = vmatmul.mubr.bf16.gmra.mrb[0].mxu0 %v399
    %v3295 = vpop.f32.mrb[0].mxu0
    %v3296 = vadd.f32 %v3103, %v3295
    %v3297 = vpop.f32.mrb[0].mxu0
    %v3298 = vadd.f32 %v3105, %v3297
    %v3299 = vpop.f32.mrb[0].mxu0
    %v3300 = vadd.f32 %v3107, %v3299
    %v3301 = vpop.f32.mrb[0].mxu0
    %v3302 = vadd.f32 %v3109, %v3301
    %3303 = vmatprep.mubr.bf16.mxu0 %v408
    %3304 = vmatmul.mubr.bf16.gmra.mrb[0].mxu0 %v407
    %v3305 = vpop.f32.mrb[0].mxu0
    %v3306 = vadd.f32 %v3113, %v3305
    %v3307 = vpop.f32.mrb[0].mxu0
    %v3308 = vadd.f32 %v3115, %v3307
    %v3309 = vpop.f32.mrb[0].mxu0
    %v3310 = vadd.f32 %v3117, %v3309
    %v3311 = vpop.f32.mrb[0].mxu0
    %v3312 = vadd.f32 %v3119, %v3311
    %3313 = vmatprep.mubr.bf16.mxu0 %v416
    %3314 = vmatmul.mubr.bf16.gmra.mrb[0].mxu0 %v415
    %v3315 = vpop.f32.mrb[0].mxu0
    %v3316 = vadd.f32 %v3123, %v3315
    %v3317 = vpop.f32.mrb[0].mxu0
    %v3318 = vadd.f32 %v3125, %v3317
    %v3319 = vpop.f32.mrb[0].mxu0
    %v3320 = vadd.f32 %v3127, %v3319
    %v3321 = vpop.f32.mrb[0].mxu0
    %v3322 = vadd.f32 %v3129, %v3321
    %3323 = vmatprep.mubr.bf16.mxu0 %v424
    %3324 = vmatmul.mubr.bf16.gmra.mrb[0].mxu0 %v423
    %v3325 = vpop.f32.mrb[0].mxu0
    %v3326 = vadd.f32 %v3133, %v3325
    %v3327 = vpop.f32.mrb[0].mxu0
    %v3328 = vadd.f32 %v3135, %v3327
    %v3329 = vpop.f32.mrb[0].mxu0
    %v3330 = vadd.f32 %v3137, %v3329
    %v3331 = vpop.f32.mrb[0].mxu0
    %v3332 = vadd.f32 %v3139, %v3331
    %3333 = vmatprep.mubr.bf16.mxu0 %v432
    %3334 = vmatmul.mubr.bf16.gmra.mrb[0].mxu0 %v431
    %v3335 = vpop.f32.mrb[0].mxu0
    %v3336 = vadd.f32 %v3143, %v3335
    %v3337 = vpop.f32.mrb[0].mxu0
    %v3338 = vadd.f32 %v3145, %v3337
    %v3339 = vpop.f32.mrb[0].mxu0
    %v3340 = vadd.f32 %v3147, %v3339
    %v3341 = vpop.f32.mrb[0].mxu0
    %v3342 = vadd.f32 %v3149, %v3341
    %3343 = vdwg.mxu0
    %3344 = vmatprep.subr.bf16.mxu0 %v1676
    %3345 = vmatpush1.bf16.msra.mxu0 %v1675
    %3346 = vmatprep.subr.bf16.mxu0 %v1680
    %3347 = vmatpush1.bf16.msra.mxu0 %v1679
    %3348 = vmatprep.subr.bf16.mxu0 %v1684
    %3349 = vmatpush1.bf16.msra.mxu0 %v1683
    %3350 = vmatprep.subr.bf16.mxu0 %v1688
    %3351 = vmatpush1.bf16.msra.mxu0 %v1687
    %3352 = vmatprep.subr.bf16.mxu0 %v1692
    %3353 = vmatpush1.bf16.msra.mxu0 %v1691
    %3354 = vmatprep.subr.bf16.mxu0 %v1696
    %3355 = vmatpush1.bf16.msra.mxu0 %v1695
    %3356 = vmatprep.subr.bf16.mxu0 %v1700
    %3357 = vmatpush1.bf16.msra.mxu0 %v1699
    %3358 = vmatprep.subr.bf16.mxu0 %v1704
    %3359 = vmatpush1.bf16.msra.mxu0 %v1703
    %3360 = vmatprep.subr.bf16.mxu0 %v1708
    %3361 = vmatpush1.bf16.msra.mxu0 %v1707
    %3362 = vmatprep.subr.bf16.mxu0 %v1712
    %3363 = vmatpush1.bf16.msra.mxu0 %v1711
    %3364 = vmatprep.subr.bf16.mxu0 %v1716
    %3365 = vmatpush1.bf16.msra.mxu0 %v1715
    %3366 = vmatprep.subr.bf16.mxu0 %v1720
    %3367 = vmatpush1.bf16.msra.mxu0 %v1719
    %3368 = vmatprep.subr.bf16.mxu0 %v1724
    %3369 = vmatpush1.bf16.msra.mxu0 %v1723
    %3370 = vmatprep.subr.bf16.mxu0 %v1728
    %3371 = vmatpush1.bf16.msra.mxu0 %v1727
    %3372 = vmatprep.subr.bf16.mxu0 %v1732
    %3373 = vmatpush1.bf16.msra.mxu0 %v1731
    %3374 = vmatprep.subr.bf16.mxu0 %v1736
    %3375 = vmatpush1.bf16.msra.mxu0 %v1735
    %3376 = vmatprep.mubr.bf16.mxu0 %v314
    %3377 = vmatmul.mubr.bf16.gmra.mrb[0].mxu0 %v313
    %v3378 = vpop.f32.mrb[0].mxu0
    %v3379 = vadd.f32 %v3186, %v3378
    %v3380 = vpop.f32.mrb[0].mxu0
    %v3381 = vadd.f32 %v3188, %v3380
    %v3382 = vpop.f32.mrb[0].mxu0
    %v3383 = vadd.f32 %v3190, %v3382
    %v3384 = vpop.f32.mrb[0].mxu0
    %v3385 = vadd.f32 %v3192, %v3384
    %3386 = vmatprep.mubr.bf16.mxu0 %v322
    %3387 = vmatmul.mubr.bf16.gmra.mrb[0].mxu0 %v321
    %v3388 = vpop.f32.mrb[0].mxu0
    %v3389 = vadd.f32 %v3196, %v3388
    %v3390 = vpop.f32.mrb[0].mxu0
    %v3391 = vadd.f32 %v3198, %v3390
    %v3392 = vpop.f32.mrb[0].mxu0
    %v3393 = vadd.f32 %v3200, %v3392
    %v3394 = vpop.f32.mrb[0].mxu0
    %v3395 = vadd.f32 %v3202, %v3394
    %3396 = vmatprep.mubr.bf16.mxu0 %v330
    %3397 = vmatmul.mubr.bf16.gmra.mrb[0].mxu0 %v329
    %v3398 = vpop.f32.mrb[0].mxu0
    %v3399 = vadd.f32 %v3206, %v3398
    %v3400 = vpop.f32.mrb[0].mxu0
    %v3401 = vadd.f32 %v3208, %v3400
    %v3402 = vpop.f32.mrb[0].mxu0
    %v3403 = vadd.f32 %v3210, %v3402
    %v3404 = vpop.f32.mrb[0].mxu0
    %v3405 = vadd.f32 %v3212, %v3404
    %3406 = vmatprep.mubr.bf16.mxu0 %v338
    %3407 = vmatmul.mubr.bf16.gmra.mrb[0].mxu0 %v337
    %v3408 = vpop.f32.mrb[0].mxu0
    %v3409 = vadd.f32 %v3216, %v3408
    %v3410 = vpop.f32.mrb[0].mxu0
    %v3411 = vadd.f32 %v3218, %v3410
    %v3412 = vpop.f32.mrb[0].mxu0
    %v3413 = vadd.f32 %v3220, %v3412
    %v3414 = vpop.f32.mrb[0].mxu0
    %v3415 = vadd.f32 %v3222, %v3414
    %3416 = vmatprep.mubr.bf16.mxu0 %v346
    %3417 = vmatmul.mubr.bf16.gmra.mrb[0].mxu0 %v345
    %v3418 = vpop.f32.mrb[0].mxu0
    %v3419 = vadd.f32 %v3226, %v3418
    %v3420 = vpop.f32.mrb[0].mxu0
    %v3421 = vadd.f32 %v3228, %v3420
    %v3422 = vpop.f32.mrb[0].mxu0
    %v3423 = vadd.f32 %v3230, %v3422
    %v3424 = vpop.f32.mrb[0].mxu0
    %v3425 = vadd.f32 %v3232, %v3424
    %3426 = vmatprep.mubr.bf16.mxu0 %v354
    %3427 = vmatmul.mubr.bf16.gmra.mrb[0].mxu0 %v353
    %v3428 = vpop.f32.mrb[0].mxu0
    %v3429 = vadd.f32 %v3236, %v3428
    %v3430 = vpop.f32.mrb[0].mxu0
    %v3431 = vadd.f32 %v3238, %v3430
    %v3432 = vpop.f32.mrb[0].mxu0
    %v3433 = vadd.f32 %v3240, %v3432
    %v3434 = vpop.f32.mrb[0].mxu0
    %v3435 = vadd.f32 %v3242, %v3434
    %3436 = vmatprep.mubr.bf16.mxu0 %v362
    %3437 = vmatmul.mubr.bf16.gmra.mrb[0].mxu0 %v361
    %v3438 = vpop.f32.mrb[0].mxu0
    %v3439 = vadd.f32 %v3246, %v3438
    %v3440 = vpop.f32.mrb[0].mxu0
    %v3441 = vadd.f32 %v3248, %v3440
    %v3442 = vpop.f32.mrb[0].mxu0
    %v3443 = vadd.f32 %v3250, %v3442
    %v3444 = vpop.f32.mrb[0].mxu0
    %v3445 = vadd.f32 %v3252, %v3444
    %3446 = vmatprep.mubr.bf16.mxu0 %v370
    %3447 = vmatmul.mubr.bf16.gmra.mrb[0].mxu0 %v369
    %v3448 = vpop.f32.mrb[0].mxu0
    %v3449 = vadd.f32 %v3256, %v3448
    %v3450 = vpop.f32.mrb[0].mxu0
    %v3451 = vadd.f32 %v3258, %v3450
    %v3452 = vpop.f32.mrb[0].mxu0
    %v3453 = vadd.f32 %v3260, %v3452
    %v3454 = vpop.f32.mrb[0].mxu0
    %v3455 = vadd.f32 %v3262, %v3454
    %3456 = vmatprep.mubr.bf16.mxu0 %v378
    %3457 = vmatmul.mubr.bf16.gmra.mrb[0].mxu0 %v377
    %v3458 = vpop.f32.mrb[0].mxu0
    %v3459 = vadd.f32 %v3266, %v3458
    %v3460 = vpop.f32.mrb[0].mxu0
    %v3461 = vadd.f32 %v3268, %v3460
    %v3462 = vpop.f32.mrb[0].mxu0
    %v3463 = vadd.f32 %v3270, %v3462
    %v3464 = vpop.f32.mrb[0].mxu0
    %v3465 = vadd.f32 %v3272, %v3464
    %3466 = vmatprep.mubr.bf16.mxu0 %v386
    %3467 = vmatmul.mubr.bf16.gmra.mrb[0].mxu0 %v385
    %v3468 = vpop.f32.mrb[0].mxu0
    %v3469 = vadd.f32 %v3276, %v3468
    %v3470 = vpop.f32.mrb[0].mxu0
    %v3471 = vadd.f32 %v3278, %v3470
    %v3472 = vpop.f32.mrb[0].mxu0
    %v3473 = vadd.f32 %v3280, %v3472
    %v3474 = vpop.f32.mrb[0].mxu0
    %v3475 = vadd.f32 %v3282, %v3474
    %3476 = vmatprep.mubr.bf16.mxu0 %v394
    %3477 = vmatmul.mubr.bf16.gmra.mrb[0].mxu0 %v393
    %v3478 = vpop.f32.mrb[0].mxu0
    %v3479 = vadd.f32 %v3286, %v3478
    %v3480 = vpop.f32.mrb[0].mxu0
    %v3481 = vadd.f32 %v3288, %v3480
    %v3482 = vpop.f32.mrb[0].mxu0
    %v3483 = vadd.f32 %v3290, %v3482
    %v3484 = vpop.f32.mrb[0].mxu0
    %v3485 = vadd.f32 %v3292, %v3484
    %3486 = vmatprep.mubr.bf16.mxu0 %v402
    %3487 = vmatmul.mubr.bf16.gmra.mrb[0].mxu0 %v401
    %v3488 = vpop.f32.mrb[0].mxu0
    %v3489 = vadd.f32 %v3296, %v3488
    %v3490 = vpop.f32.mrb[0].mxu0
    %v3491 = vadd.f32 %v3298, %v3490
    %v3492 = vpop.f32.mrb[0].mxu0
    %v3493 = vadd.f32 %v3300, %v3492
    %v3494 = vpop.f32.mrb[0].mxu0
    %v3495 = vadd.f32 %v3302, %v3494
    %3496 = vmatprep.mubr.bf16.mxu0 %v410
    %3497 = vmatmul.mubr.bf16.gmra.mrb[0].mxu0 %v409
    %v3498 = vpop.f32.mrb[0].mxu0
    %v3499 = vadd.f32 %v3306, %v3498
    %v3500 = vpop.f32.mrb[0].mxu0
    %v3501 = vadd.f32 %v3308, %v3500
    %v3502 = vpop.f32.mrb[0].mxu0
    %v3503 = vadd.f32 %v3310, %v3502
    %v3504 = vpop.f32.mrb[0].mxu0
    %v3505 = vadd.f32 %v3312, %v3504
    %3506 = vmatprep.mubr.bf16.mxu0 %v418
    %3507 = vmatmul.mubr.bf16.gmra.mrb[0].mxu0 %v417
    %v3508 = vpop.f32.mrb[0].mxu0
    %v3509 = vadd.f32 %v3316, %v3508
    %v3510 = vpop.f32.mrb[0].mxu0
    %v3511 = vadd.f32 %v3318, %v3510
    %v3512 = vpop.f32.mrb[0].mxu0
    %v3513 = vadd.f32 %v3320, %v3512
    %v3514 = vpop.f32.mrb[0].mxu0
    %v3515 = vadd.f32 %v3322, %v3514
    %3516 = vmatprep.mubr.bf16.mxu0 %v426
    %3517 = vmatmul.mubr.bf16.gmra.mrb[0].mxu0 %v425
    %v3518 = vpop.f32.mrb[0].mxu0
    %v3519 = vadd.f32 %v3326, %v3518
    %v3520 = vpop.f32.mrb[0].mxu0
    %v3521 = vadd.f32 %v3328, %v3520
    %v3522 = vpop.f32.mrb[0].mxu0
    %v3523 = vadd.f32 %v3330, %v3522
    %v3524 = vpop.f32.mrb[0].mxu0
    %v3525 = vadd.f32 %v3332, %v3524
    %3526 = vmatprep.mubr.bf16.mxu0 %v434
    %3527 = vmatmul.mubr.bf16.gmra.mrb[0].mxu0 %v433
    %v3528 = vpop.f32.mrb[0].mxu0
    %v3529 = vadd.f32 %v3336, %v3528
    %v3530 = vpop.f32.mrb[0].mxu0
    %v3531 = vadd.f32 %v3338, %v3530
    %v3532 = vpop.f32.mrb[0].mxu0
    %v3533 = vadd.f32 %v3340, %v3532
    %v3534 = vpop.f32.mrb[0].mxu0
    %v3535 = vadd.f32 %v3342, %v3534
    %3536 = vdwg.mxu0
    %v3537 = vtanh.pop %v2607
    %v3538 = vtanh.pop %v2609
    %v3539 = vtanh.pop %v2611
    %v3540 = vtanh.pop %v2613
    %v3541 = vtanh.pop %v2617
    %v3542 = vtanh.pop %v2619
    %v3543 = vtanh.pop %v2621
    %v3544 = vtanh.pop %v2623
    %v3545 = vtanh.pop %v2627
    %v3546 = vtanh.pop %v2629
    %v3547 = vtanh.pop %v2631
    %v3548 = vtanh.pop %v2633
    %v3549 = vtanh.pop %v2637
    %v3550 = vtanh.pop %v2639
    %v3551 = vtanh.pop %v2641
    %v3552 = vtanh.pop %v2643
    %v3553 = vtanh.pop %v2647
    %v3554 = vtanh.pop %v2649
    %v3555 = vtanh.pop %v2651
    %v3556 = vtanh.pop %v2653
    %v3557 = vtanh.pop %v2657
    %v3558 = vtanh.pop %v2659
    %v3559 = vtanh.pop %v2661
    %v3560 = vtanh.pop %v2663
    %v3561 = vtanh.pop %v2667
    %v3562 = vtanh.pop %v2669
    %v3563 = vtanh.pop %v2671
    %v3564 = vtanh.pop %v2673
    %v3565 = vtanh.pop %v2677
    %v3566 = vtanh.pop %v2679
    %v3567 = vtanh.pop %v2681
    %v3568 = vtanh.pop %v2683
    %v3569 = vtanh.pop %v2687
    %v3570 = vtanh.pop %v2689
    %v3571 = vtanh.pop %v2691
    %v3572 = vtanh.pop %v2693
    %v3573 = vtanh.pop %v2697
    %v3574 = vtanh.pop %v2699
    %v3575 = vtanh.pop %v2701
    %v3576 = vtanh.pop %v2703
    %v3577 = vtanh.pop %v2707
    %v3578 = vtanh.pop %v2709
    %v3579 = vtanh.pop %v2711
    %v3580 = vtanh.pop %v2713
    %v3581 = vtanh.pop %v2717
    %v3582 = vtanh.pop %v2719
    %v3583 = vtanh.pop %v2721
    %v3584 = vtanh.pop %v2723
    %v3585 = vtanh.pop %v2727
    %v3586 = vtanh.pop %v2729
    %v3587 = vtanh.pop %v2731
    %v3588 = vtanh.pop %v2733
    %v3589 = vtanh.pop %v2737
    %v3590 = vtanh.pop %v2739
    %v3591 = vtanh.pop %v2741
    %v3592 = vtanh.pop %v2743
    %v3593 = vtanh.pop %v2747
    %v3594 = vtanh.pop %v2749
    %v3595 = vtanh.pop %v2751
    %v3596 = vtanh.pop %v2753
    %v3597 = vtanh.pop %v2757
    %v3598 = vtanh.pop %v2759
    %v3599 = vtanh.pop %v2761
    %v3600 = vtanh.pop %v2763
    %v3601 = vxor.u32 %v3379, 2147483648
    %v3602 = vxor.u32 %v3381, 2147483648
    %v3603 = vxor.u32 %v3383, 2147483648
    %v3604 = vxor.u32 %v3385, 2147483648
    %v3605 = vxor.u32 %v3389, 2147483648
    %v3606 = vxor.u32 %v3391, 2147483648
    %v3607 = vxor.u32 %v3393, 2147483648
    %v3608 = vxor.u32 %v3395, 2147483648
    %v3609 = vxor.u32 %v3399, 2147483648
    %v3610 = vxor.u32 %v3401, 2147483648
    %v3611 = vxor.u32 %v3403, 2147483648
    %v3612 = vxor.u32 %v3405, 2147483648
    %v3613 = vxor.u32 %v3409, 2147483648
    %v3614 = vxor.u32 %v3411, 2147483648
    %v3615 = vxor.u32 %v3413, 2147483648
    %v3616 = vxor.u32 %v3415, 2147483648
    %v3617 = vxor.u32 %v3419, 2147483648
    %v3618 = vxor.u32 %v3421, 2147483648
    %v3619 = vxor.u32 %v3423, 2147483648
    %v3620 = vxor.u32 %v3425, 2147483648
    %v3621 = vxor.u32 %v3429, 2147483648
    %v3622 = vxor.u32 %v3431, 2147483648
    %v3623 = vxor.u32 %v3433, 2147483648
    %v3624 = vxor.u32 %v3435, 2147483648
    %v3625 = vxor.u32 %v3439, 2147483648
    %v3626 = vxor.u32 %v3441, 2147483648
    %v3627 = vxor.u32 %v3443, 2147483648
    %v3628 = vxor.u32 %v3445, 2147483648
    %v3629 = vxor.u32 %v3449, 2147483648
    %v3630 = vxor.u32 %v3451, 2147483648
    %v3631 = vxor.u32 %v3453, 2147483648
    %v3632 = vxor.u32 %v3455, 2147483648
    %v3633 = vxor.u32 %v3459, 2147483648
    %v3634 = vxor.u32 %v3461, 2147483648
    %v3635 = vxor.u32 %v3463, 2147483648
    %v3636 = vxor.u32 %v3465, 2147483648
    %v3637 = vxor.u32 %v3469, 2147483648
    %v3638 = vxor.u32 %v3471, 2147483648
    %v3639 = vxor.u32 %v3473, 2147483648
    %v3640 = vxor.u32 %v3475, 2147483648
    %v3641 = vxor.u32 %v3479, 2147483648
    %v3642 = vxor.u32 %v3481, 2147483648
    %v3643 = vxor.u32 %v3483, 2147483648
    %v3644 = vxor.u32 %v3485, 2147483648
    %v3645 = vxor.u32 %v3489, 2147483648
    %v3646 = vxor.u32 %v3491, 2147483648
    %v3647 = vxor.u32 %v3493, 2147483648
    %v3648 = vxor.u32 %v3495, 2147483648
    %v3649 = vxor.u32 %v3499, 2147483648
    %v3650 = vxor.u32 %v3501, 2147483648
    %v3651 = vxor.u32 %v3503, 2147483648
    %v3652 = vxor.u32 %v3505, 2147483648
    %v3653 = vxor.u32 %v3509, 2147483648
    %v3654 = vxor.u32 %v3511, 2147483648
    %v3655 = vxor.u32 %v3513, 2147483648
    %v3656 = vxor.u32 %v3515, 2147483648
    %v3657 = vxor.u32 %v3519, 2147483648
    %v3658 = vxor.u32 %v3521, 2147483648
    %v3659 = vxor.u32 %v3523, 2147483648
    %v3660 = vxor.u32 %v3525, 2147483648
    %v3661 = vxor.u32 %v3529, 2147483648
    %v3662 = vxor.u32 %v3531, 2147483648
    %v3663 = vxor.u32 %v3533, 2147483648
    %v3664 = vxor.u32 %v3535, 2147483648
    %v3665 = vmul.f32 %v3601, 1.442695
    %v3666 = vpow.pop %v3665
    %v3667 = vmul.f32 %v3602, 1.442695
    %v3668 = vpow.pop %v3667
    %v3669 = vmul.f32 %v3603, 1.442695
    %v3670 = vpow.pop %v3669
    %v3671 = vmul.f32 %v3604, 1.442695
    %v3672 = vpow.pop %v3671
    %v3673 = vmul.f32 %v3605, 1.442695
    %v3674 = vpow.pop %v3673
    %v3675 = vmul.f32 %v3606, 1.442695
    %v3676 = vpow.pop %v3675
    %v3677 = vmul.f32 %v3607, 1.442695
    %v3678 = vpow.pop %v3677
    %v3679 = vmul.f32 %v3608, 1.442695
    %v3680 = vpow.pop %v3679
    %v3681 = vmul.f32 %v3609, 1.442695
    %v3682 = vpow.pop %v3681
    %v3683 = vmul.f32 %v3610, 1.442695
    %v3684 = vpow.pop %v3683
    %v3685 = vmul.f32 %v3611, 1.442695
    %v3686 = vpow.pop %v3685
    %v3687 = vmul.f32 %v3612, 1.442695
    %v3688 = vpow.pop %v3687
    %v3689 = vmul.f32 %v3613, 1.442695
    %v3690 = vpow.pop %v3689
    %v3691 = vmul.f32 %v3614, 1.442695
    %v3692 = vpow.pop %v3691
    %v3693 = vmul.f32 %v3615, 1.442695
    %v3694 = vpow.pop %v3693
    %v3695 = vmul.f32 %v3616, 1.442695
    %v3696 = vpow.pop %v3695
    %v3697 = vmul.f32 %v3617, 1.442695
    %v3698 = vpow.pop %v3697
    %v3699 = vmul.f32 %v3618, 1.442695
    %v3700 = vpow.pop %v3699
    %v3701 = vmul.f32 %v3619, 1.442695
    %v3702 = vpow.pop %v3701
    %v3703 = vmul.f32 %v3620, 1.442695
    %v3704 = vpow.pop %v3703
    %v3705 = vmul.f32 %v3621, 1.442695
    %v3706 = vpow.pop %v3705
    %v3707 = vmul.f32 %v3622, 1.442695
    %v3708 = vpow.pop %v3707
    %v3709 = vmul.f32 %v3623, 1.442695
    %v3710 = vpow.pop %v3709
    %v3711 = vmul.f32 %v3624, 1.442695
    %v3712 = vpow.pop %v3711
    %v3713 = vmul.f32 %v3625, 1.442695
    %v3714 = vpow.pop %v3713
    %v3715 = vmul.f32 %v3626, 1.442695
    %v3716 = vpow.pop %v3715
    %v3717 = vmul.f32 %v3627, 1.442695
    %v3718 = vpow.pop %v3717
    %v3719 = vmul.f32 %v3628, 1.442695
    %v3720 = vpow.pop %v3719
    %v3721 = vmul.f32 %v3629, 1.442695
    %v3722 = vpow.pop %v3721
    %v3723 = vmul.f32 %v3630, 1.442695
    %v3724 = vpow.pop %v3723
    %v3725 = vmul.f32 %v3631, 1.442695
    %v3726 = vpow.pop %v3725
    %v3727 = vmul.f32 %v3632, 1.442695
    %v3728 = vpow.pop %v3727
    %v3729 = vmul.f32 %v3633, 1.442695
    %v3730 = vpow.pop %v3729
    %v3731 = vmul.f32 %v3634, 1.442695
    %v3732 = vpow.pop %v3731
    %v3733 = vmul.f32 %v3635, 1.442695
    %v3734 = vpow.pop %v3733
    %v3735 = vmul.f32 %v3636, 1.442695
    %v3736 = vpow.pop %v3735
    %v3737 = vmul.f32 %v3637, 1.442695
    %v3738 = vpow.pop %v3737
    %v3739 = vmul.f32 %v3638, 1.442695
    %v3740 = vpow.pop %v3739
    %v3741 = vmul.f32 %v3639, 1.442695
    %v3742 = vpow.pop %v3741
    %v3743 = vmul.f32 %v3640, 1.442695
    %v3744 = vpow.pop %v3743
    %v3745 = vmul.f32 %v3641, 1.442695
    %v3746 = vpow.pop %v3745
    %v3747 = vmul.f32 %v3642, 1.442695
    %v3748 = vpow.pop %v3747
    %v3749 = vmul.f32 %v3643, 1.442695
    %v3750 = vpow.pop %v3749
    %v3751 = vmul.f32 %v3644, 1.442695
    %v3752 = vpow.pop %v3751
    %v3753 = vmul.f32 %v3645, 1.442695
    %v3754 = vpow.pop %v3753
    %v3755 = vmul.f32 %v3646, 1.442695
    %v3756 = vpow.pop %v3755
    %v3757 = vmul.f32 %v3647, 1.442695
    %v3758 = vpow.pop %v3757
    %v3759 = vmul.f32 %v3648, 1.442695
    %v3760 = vpow.pop %v3759
    %v3761 = vmul.f32 %v3649, 1.442695
    %v3762 = vpow.pop %v3761
    %v3763 = vmul.f32 %v3650, 1.442695
    %v3764 = vpow.pop %v3763
    %v3765 = vmul.f32 %v3651, 1.442695
    %v3766 = vpow.pop %v3765
    %v3767 = vmul.f32 %v3652, 1.442695
    %v3768 = vpow.pop %v3767
    %v3769 = vmul.f32 %v3653, 1.442695
    %v3770 = vpow.pop %v3769
    %v3771 = vmul.f32 %v3654, 1.442695
    %v3772 = vpow.pop %v3771
    %v3773 = vmul.f32 %v3655, 1.442695
    %v3774 = vpow.pop %v3773
    %v3775 = vmul.f32 %v3656, 1.442695
    %v3776 = vpow.pop %v3775
    %v3777 = vmul.f32 %v3657, 1.442695
    %v3778 = vpow.pop %v3777
    %v3779 = vmul.f32 %v3658, 1.442695
    %v3780 = vpow.pop %v3779
    %v3781 = vmul.f32 %v3659, 1.442695
    %v3782 = vpow.pop %v3781
    %v3783 = vmul.f32 %v3660, 1.442695
    %v3784 = vpow.pop %v3783
    %v3785 = vmul.f32 %v3661, 1.442695
    %v3786 = vpow.pop %v3785
    %v3787 = vmul.f32 %v3662, 1.442695
    %v3788 = vpow.pop %v3787
    %v3789 = vmul.f32 %v3663, 1.442695
    %v3790 = vpow.pop %v3789
    %v3791 = vmul.f32 %v3664, 1.442695
    %v3792 = vpow.pop %v3791
    %v3793 = vadd.f32 %v3666, 1.0
    %v3794 = vadd.f32 %v3668, 1.0
    %v3795 = vadd.f32 %v3670, 1.0
    %v3796 = vadd.f32 %v3672, 1.0
    %v3797 = vadd.f32 %v3674, 1.0
    %v3798 = vadd.f32 %v3676, 1.0
    %v3799 = vadd.f32 %v3678, 1.0
    %v3800 = vadd.f32 %v3680, 1.0
    %v3801 = vadd.f32 %v3682, 1.0
    %v3802 = vadd.f32 %v3684, 1.0
    %v3803 = vadd.f32 %v3686, 1.0
    %v3804 = vadd.f32 %v3688, 1.0
    %v3805 = vadd.f32 %v3690, 1.0
    %v3806 = vadd.f32 %v3692, 1.0
    %v3807 = vadd.f32 %v3694, 1.0
    %v3808 = vadd.f32 %v3696, 1.0
    %v3809 = vadd.f32 %v3698, 1.0
    %v3810 = vadd.f32 %v3700, 1.0
    %v3811 = vadd.f32 %v3702, 1.0
    %v3812 = vadd.f32 %v3704, 1.0
    %v3813 = vadd.f32 %v3706, 1.0
    %v3814 = vadd.f32 %v3708, 1.0
    %v3815 = vadd.f32 %v3710, 1.0
    %v3816 = vadd.f32 %v3712, 1.0
    %v3817 = vadd.f32 %v3714, 1.0
    %v3818 = vadd.f32 %v3716, 1.0
    %v3819 = vadd.f32 %v3718, 1.0
    %v3820 = vadd.f32 %v3720, 1.0
    %v3821 = vadd.f32 %v3722, 1.0
    %v3822 = vadd.f32 %v3724, 1.0
    %v3823 = vadd.f32 %v3726, 1.0
    %v3824 = vadd.f32 %v3728, 1.0
    %v3825 = vadd.f32 %v3730, 1.0
    %v3826 = vadd.f32 %v3732, 1.0
    %v3827 = vadd.f32 %v3734, 1.0
    %v3828 = vadd.f32 %v3736, 1.0
    %v3829 = vadd.f32 %v3738, 1.0
    %v3830 = vadd.f32 %v3740, 1.0
    %v3831 = vadd.f32 %v3742, 1.0
    %v3832 = vadd.f32 %v3744, 1.0
    %v3833 = vadd.f32 %v3746, 1.0
    %v3834 = vadd.f32 %v3748, 1.0
    %v3835 = vadd.f32 %v3750, 1.0
    %v3836 = vadd.f32 %v3752, 1.0
    %v3837 = vadd.f32 %v3754, 1.0
    %v3838 = vadd.f32 %v3756, 1.0
    %v3839 = vadd.f32 %v3758, 1.0
    %v3840 = vadd.f32 %v3760, 1.0
    %v3841 = vadd.f32 %v3762, 1.0
    %v3842 = vadd.f32 %v3764, 1.0
    %v3843 = vadd.f32 %v3766, 1.0
    %v3844 = vadd.f32 %v3768, 1.0
    %v3845 = vadd.f32 %v3770, 1.0
    %v3846 = vadd.f32 %v3772, 1.0
    %v3847 = vadd.f32 %v3774, 1.0
    %v3848 = vadd.f32 %v3776, 1.0
    %v3849 = vadd.f32 %v3778, 1.0
    %v3850 = vadd.f32 %v3780, 1.0
    %v3851 = vadd.f32 %v3782, 1.0
    %v3852 = vadd.f32 %v3784, 1.0
    %v3853 = vadd.f32 %v3786, 1.0
    %v3854 = vadd.f32 %v3788, 1.0
    %v3855 = vadd.f32 %v3790, 1.0
    %v3856 = vadd.f32 %v3792, 1.0
    %v3857 = vrcp.pop %v3793
    %v3858 = vmul.f32 1.0, %v3857
    %v3859 = vrcp.pop %v3794
    %v3860 = vmul.f32 1.0, %v3859
    %v3861 = vrcp.pop %v3795
    %v3862 = vmul.f32 1.0, %v3861
    %v3863 = vrcp.pop %v3796
    %v3864 = vmul.f32 1.0, %v3863
    %v3865 = vrcp.pop %v3797
    %v3866 = vmul.f32 1.0, %v3865
    %v3867 = vrcp.pop %v3798
    %v3868 = vmul.f32 1.0, %v3867
    %v3869 = vrcp.pop %v3799
    %v3870 = vmul.f32 1.0, %v3869
    %v3871 = vrcp.pop %v3800
    %v3872 = vmul.f32 1.0, %v3871
    %v3873 = vrcp.pop %v3801
    %v3874 = vmul.f32 1.0, %v3873
    %v3875 = vrcp.pop %v3802
    %v3876 = vmul.f32 1.0, %v3875
    %v3877 = vrcp.pop %v3803
    %v3878 = vmul.f32 1.0, %v3877
    %v3879 = vrcp.pop %v3804
    %v3880 = vmul.f32 1.0, %v3879
    %v3881 = vrcp.pop %v3805
    %v3882 = vmul.f32 1.0, %v3881
    %v3883 = vrcp.pop %v3806
    %v3884 = vmul.f32 1.0, %v3883
    %v3885 = vrcp.pop %v3807
    %v3886 = vmul.f32 1.0, %v3885
    %v3887 = vrcp.pop %v3808
    %v3888 = vmul.f32 1.0, %v3887
    %v3889 = vrcp.pop %v3809
    %v3890 = vmul.f32 1.0, %v3889
    %v3891 = vrcp.pop %v3810
    %v3892 = vmul.f32 1.0, %v3891
    %v3893 = vrcp.pop %v3811
    %v3894 = vmul.f32 1.0, %v3893
    %v3895 = vrcp.pop %v3812
    %v3896 = vmul.f32 1.0, %v3895
    %v3897 = vrcp.pop %v3813
    %v3898 = vmul.f32 1.0, %v3897
    %v3899 = vrcp.pop %v3814
    %v3900 = vmul.f32 1.0, %v3899
    %v3901 = vrcp.pop %v3815
    %v3902 = vmul.f32 1.0, %v3901
    %v3903 = vrcp.pop %v3816
    %v3904 = vmul.f32 1.0, %v3903
    %v3905 = vrcp.pop %v3817
    %v3906 = vmul.f32 1.0, %v3905
    %v3907 = vrcp.pop %v3818
    %v3908 = vmul.f32 1.0, %v3907
    %v3909 = vrcp.pop %v3819
    %v3910 = vmul.f32 1.0, %v3909
    %v3911 = vrcp.pop %v3820
    %v3912 = vmul.f32 1.0, %v3911
    %v3913 = vrcp.pop %v3821
    %v3914 = vmul.f32 1.0, %v3913
    %v3915 = vrcp.pop %v3822
    %v3916 = vmul.f32 1.0, %v3915
    %v3917 = vrcp.pop %v3823
    %v3918 = vmul.f32 1.0, %v3917
    %v3919 = vrcp.pop %v3824
    %v3920 = vmul.f32 1.0, %v3919
    %v3921 = vrcp.pop %v3825
    %v3922 = vmul.f32 1.0, %v3921
    %v3923 = vrcp.pop %v3826
    %v3924 = vmul.f32 1.0, %v3923
    %v3925 = vrcp.pop %v3827
    %v3926 = vmul.f32 1.0, %v3925
    %v3927 = vrcp.pop %v3828
    %v3928 = vmul.f32 1.0, %v3927
    %v3929 = vrcp.pop %v3829
    %v3930 = vmul.f32 1.0, %v3929
    %v3931 = vrcp.pop %v3830
    %v3932 = vmul.f32 1.0, %v3931
    %v3933 = vrcp.pop %v3831
    %v3934 = vmul.f32 1.0, %v3933
    %v3935 = vrcp.pop %v3832
    %v3936 = vmul.f32 1.0, %v3935
    %v3937 = vrcp.pop %v3833
    %v3938 = vmul.f32 1.0, %v3937
    %v3939 = vrcp.pop %v3834
    %v3940 = vmul.f32 1.0, %v3939
    %v3941 = vrcp.pop %v3835
    %v3942 = vmul.f32 1.0, %v3941
    %v3943 = vrcp.pop %v3836
    %v3944 = vmul.f32 1.0, %v3943
    %v3945 = vrcp.pop %v3837
    %v3946 = vmul.f32 1.0, %v3945
    %v3947 = vrcp.pop %v3838
    %v3948 = vmul.f32 1.0, %v3947
    %v3949 = vrcp.pop %v3839
    %v3950 = vmul.f32 1.0, %v3949
    %v3951 = vrcp.pop %v3840
    %v3952 = vmul.f32 1.0, %v3951
    %v3953 = vrcp.pop %v3841
    %v3954 = vmul.f32 1.0, %v3953
    %v3955 = vrcp.pop %v3842
    %v3956 = vmul.f32 1.0, %v3955
    %v3957 = vrcp.pop %v3843
    %v3958 = vmul.f32 1.0, %v3957
    %v3959 = vrcp.pop %v3844
    %v3960 = vmul.f32 1.0, %v3959
    %v3961 = vrcp.pop %v3845
    %v3962 = vmul.f32 1.0, %v3961
    %v3963 = vrcp.pop %v3846
    %v3964 = vmul.f32 1.0, %v3963
    %v3965 = vrcp.pop %v3847
    %v3966 = vmul.f32 1.0, %v3965
    %v3967 = vrcp.pop %v3848
    %v3968 = vmul.f32 1.0, %v3967
    %v3969 = vrcp.pop %v3849
    %v3970 = vmul.f32 1.0, %v3969
    %v3971 = vrcp.pop %v3850
    %v3972 = vmul.f32 1.0, %v3971
    %v3973 = vrcp.pop %v3851
    %v3974 = vmul.f32 1.0, %v3973
    %v3975 = vrcp.pop %v3852
    %v3976 = vmul.f32 1.0, %v3975
    %v3977 = vrcp.pop %v3853
    %v3978 = vmul.f32 1.0, %v3977
    %v3979 = vrcp.pop %v3854
    %v3980 = vmul.f32 1.0, %v3979
    %v3981 = vrcp.pop %v3855
    %v3982 = vmul.f32 1.0, %v3981
    %v3983 = vrcp.pop %v3856
    %v3984 = vmul.f32 1.0, %v3983
    %v3985 = vmul.f32 %v3537, %v3858
    %v3986 = vmul.f32 %v3538, %v3860
    %v3987 = vmul.f32 %v3539, %v3862
    %v3988 = vmul.f32 %v3540, %v3864
    %v3989 = vmul.f32 %v3541, %v3866
    %v3990 = vmul.f32 %v3542, %v3868
    %v3991 = vmul.f32 %v3543, %v3870
    %v3992 = vmul.f32 %v3544, %v3872
    %v3993 = vmul.f32 %v3545, %v3874
    %v3994 = vmul.f32 %v3546, %v3876
    %v3995 = vmul.f32 %v3547, %v3878
    %v3996 = vmul.f32 %v3548, %v3880
    %v3997 = vmul.f32 %v3549, %v3882
    %v3998 = vmul.f32 %v3550, %v3884
    %v3999 = vmul.f32 %v3551, %v3886
    %v4000 = vmul.f32 %v3552, %v3888
    %v4001 = vmul.f32 %v3553, %v3890
    %v4002 = vmul.f32 %v3554, %v3892
    %v4003 = vmul.f32 %v3555, %v3894
    %v4004 = vmul.f32 %v3556, %v3896
    %v4005 = vmul.f32 %v3557, %v3898
    %v4006 = vmul.f32 %v3558, %v3900
    %v4007 = vmul.f32 %v3559, %v3902
    %v4008 = vmul.f32 %v3560, %v3904
    %v4009 = vmul.f32 %v3561, %v3906
    %v4010 = vmul.f32 %v3562, %v3908
    %v4011 = vmul.f32 %v3563, %v3910
    %v4012 = vmul.f32 %v3564, %v3912
    %v4013 = vmul.f32 %v3565, %v3914
    %v4014 = vmul.f32 %v3566, %v3916
    %v4015 = vmul.f32 %v3567, %v3918
    %v4016 = vmul.f32 %v3568, %v3920
    %v4017 = vmul.f32 %v3569, %v3922
    %v4018 = vmul.f32 %v3570, %v3924
    %v4019 = vmul.f32 %v3571, %v3926
    %v4020 = vmul.f32 %v3572, %v3928
    %v4021 = vmul.f32 %v3573, %v3930
    %v4022 = vmul.f32 %v3574, %v3932
    %v4023 = vmul.f32 %v3575, %v3934
    %v4024 = vmul.f32 %v3576, %v3936
    %v4025 = vmul.f32 %v3577, %v3938
    %v4026 = vmul.f32 %v3578, %v3940
    %v4027 = vmul.f32 %v3579, %v3942
    %v4028 = vmul.f32 %v3580, %v3944
    %v4029 = vmul.f32 %v3581, %v3946
    %v4030 = vmul.f32 %v3582, %v3948
    %v4031 = vmul.f32 %v3583, %v3950
    %v4032 = vmul.f32 %v3584, %v3952
    %v4033 = vmul.f32 %v3585, %v3954
    %v4034 = vmul.f32 %v3586, %v3956
    %v4035 = vmul.f32 %v3587, %v3958
    %v4036 = vmul.f32 %v3588, %v3960
    %v4037 = vmul.f32 %v3589, %v3962
    %v4038 = vmul.f32 %v3590, %v3964
    %v4039 = vmul.f32 %v3591, %v3966
    %v4040 = vmul.f32 %v3592, %v3968
    %v4041 = vmul.f32 %v3593, %v3970
    %v4042 = vmul.f32 %v3594, %v3972
    %v4043 = vmul.f32 %v3595, %v3974
    %v4044 = vmul.f32 %v3596, %v3976
    %v4045 = vmul.f32 %v3597, %v3978
    %v4046 = vmul.f32 %v3598, %v3980
    %v4047 = vmul.f32 %v3599, %v3982
    %v4048 = vmul.f32 %v3600, %v3984
    %v4049 = vpack.c.bf16 %v3987, %v3985
    %v4050 = vpack.c.bf16 %v3988, %v3986
    %v4051 = vpack.c.bf16 %v3991, %v3989
    %v4052 = vpack.c.bf16 %v3992, %v3990
    %v4053 = vpack.c.bf16 %v3995, %v3993
    %v4054 = vpack.c.bf16 %v3996, %v3994
    %v4055 = vpack.c.bf16 %v3999, %v3997
    %v4056 = vpack.c.bf16 %v4000, %v3998
    %v4057 = vpack.c.bf16 %v4003, %v4001
    %v4058 = vpack.c.bf16 %v4004, %v4002
    %v4059 = vpack.c.bf16 %v4007, %v4005
    %v4060 = vpack.c.bf16 %v4008, %v4006
    %v4061 = vpack.c.bf16 %v4011, %v4009
    %v4062 = vpack.c.bf16 %v4012, %v4010
    %v4063 = vpack.c.bf16 %v4015, %v4013
    %v4064 = vpack.c.bf16 %v4016, %v4014
    %v4065 = vpack.c.bf16 %v4019, %v4017
    %v4066 = vpack.c.bf16 %v4020, %v4018
    %v4067 = vpack.c.bf16 %v4023, %v4021
    %v4068 = vpack.c.bf16 %v4024, %v4022
    %v4069 = vpack.c.bf16 %v4027, %v4025
    %v4070 = vpack.c.bf16 %v4028, %v4026
    %v4071 = vpack.c.bf16 %v4031, %v4029
    %v4072 = vpack.c.bf16 %v4032, %v4030
    %v4073 = vpack.c.bf16 %v4035, %v4033
    %v4074 = vpack.c.bf16 %v4036, %v4034
    %v4075 = vpack.c.bf16 %v4039, %v4037
    %v4076 = vpack.c.bf16 %v4040, %v4038
    %v4077 = vpack.c.bf16 %v4043, %v4041
    %v4078 = vpack.c.bf16 %v4044, %v4042
    %v4079 = vpack.c.bf16 %v4047, %v4045
    %v4080 = vpack.c.bf16 %v4048, %v4046
    %v4081 = vld [vmem:[%s3] sm:$0x3]
    %v4082 = vld [vmem:[#allocation2] sm:$0x1]
    %4084 = vset.pattern.permute.xlu0 0
    %4085 = vperm.xlu0 %4084, %v4082
    %v4086 = vpop.permute.xlu0 %4085
    %v4088 = vlaneseq
    %v4089 = vshrl.u32 %v4088, 7
    %v4090 = vsub.s32 0, %v4089
    %v4091 = vrot.slane %v4086, %v4090
    %v4094 = vunpack.c.l.s4 1966171168
    %v4095 = vunpack.c.0.s8 %v4094
    %v4096 = vlaneseq
    %v4097 = vshrl.u32 %v4096, 7
    %v4098 = vsub.s32 %v4095, %v4097
    %v4099 = vrot.slane %v4081, %v4098
    %v4100 = vcombine.high %v4099, %v4099
    %v4102 = vunpack.c.l.s4 1966171168
    %v4103 = vunpack.c.0.s8 %v4102
    %v4104 = vlaneseq
    %v4105 = vshrl.u32 %v4104, 7
    %v4106 = vsub.s32 %v4103, %v4105
    %v4107 = vrot.slane %v4099, %v4106
    %v4109 = vunpack.c.l.s4 1966171168
    %v4110 = vunpack.c.0.s8 %v4109
    %v4111 = vlaneseq
    %v4112 = vshrl.u32 %v4111, 7
    %v4113 = vsub.s32 %v4110, %v4112
    %v4114 = vrot.slane %v4100, %v4113
    %4117 = vmatprep.subr.bf16.mxu0 %v4050
    %4118 = vmatpush1.bf16.xpose.msra.mxu0 %v4049
    %4119 = vmatprep.subr.bf16.mxu0 %v4052
    %4120 = vmatpush1.bf16.xpose.msra.mxu0 %v4051
    %4121 = vmatprep.subr.bf16.mxu0 %v4054
    %4122 = vmatpush1.bf16.xpose.msra.mxu0 %v4053
    %4123 = vmatprep.subr.bf16.mxu0 %v4056
    %4124 = vmatpush1.bf16.xpose.msra.mxu0 %v4055
    %4125 = vmatprep.subr.bf16.mxu0 %v4058
    %4126 = vmatpush1.bf16.xpose.msra.mxu0 %v4057
    %4127 = vmatprep.subr.bf16.mxu0 %v4060
    %4128 = vmatpush1.bf16.xpose.msra.mxu0 %v4059
    %4129 = vmatprep.subr.bf16.mxu0 %v4062
    %4130 = vmatpush1.bf16.xpose.msra.mxu0 %v4061
    %4131 = vmatprep.subr.bf16.mxu0 %v4064
    %4132 = vmatpush1.bf16.xpose.msra.mxu0 %v4063
    %4133 = vmatprep.subr.bf16.mxu0 %v4066
    %4134 = vmatpush1.bf16.xpose.msra.mxu0 %v4065
    %4135 = vmatprep.subr.bf16.mxu0 %v4068
    %4136 = vmatpush1.bf16.xpose.msra.mxu0 %v4067
    %4137 = vmatprep.subr.bf16.mxu0 %v4070
    %4138 = vmatpush1.bf16.xpose.msra.mxu0 %v4069
    %4139 = vmatprep.subr.bf16.mxu0 %v4072
    %4140 = vmatpush1.bf16.xpose.msra.mxu0 %v4071
    %4141 = vmatprep.subr.bf16.mxu0 %v4074
    %4142 = vmatpush1.bf16.xpose.msra.mxu0 %v4073
    %4143 = vmatprep.subr.bf16.mxu0 %v4076
    %4144 = vmatpush1.bf16.xpose.msra.mxu0 %v4075
    %4145 = vmatprep.subr.bf16.mxu0 %v4078
    %4146 = vmatpush1.bf16.xpose.msra.mxu0 %v4077
    %4147 = vmatprep.subr.bf16.mxu0 %v4080
    %4148 = vmatpush1.bf16.xpose.msra.mxu0 %v4079
    %4149 = vmatprep.mubr.bf16.mxu0 %v4114
    %4150 = vmatmul.mubr.bf16.gmra.mrb[0].mxu0 %v4107
    %v4151 = vpop.f32.mrb[0].mxu0
    %v4152 = vadd.f32 %v4091, %v4151
    %v4153 = vpop.f32.mrb[0].mxu0
    %v4154 = vadd.f32 %v4091, %v4153
    %v4155 = vpop.f32.mrb[0].mxu0
    %v4156 = vpop.f32.mrb[0].mxu0
    %4157 = vdwg.mxu0
    %v4160 = vcombine.low %v4152, %v4154
    %v4162 = vunpack.c.l.s4 1966171168
    %v4163 = vunpack.c.0.s8 %v4162
    %v4164 = vlaneseq
    %v4165 = vshrl.u32 %v4164, 7
    %v4166 = vsub.s32 %v4163, %v4165
    %v4167 = vrot.slane %v4160, %v4166
    %v4169 = vunpack.c.l.s4 1966171168
    %v4170 = vunpack.c.0.s8 %v4169
    %v4171 = vlaneseq
    %v4172 = vshrl.u32 %v4171, 7
    %v4173 = vsub.s32 %v4170, %v4172
    %v4174 = vrot.slane %v4167, %v4173
    %v4176 = vlaneseq
    %vm4177 = vcmp.ge.s32.totalorder %v4176, 0
    %vm4178 = vcmp.lt.s32.totalorder %v4176, 256
    %vm4179 = vmand %vm4177, %vm4178
    %4180 = vst.msk [vmem:[#allocation8] sm:$0x3] %vm4179, %v4174
    // Predicated region
    $region30: #{tpu_custom_call.1} parent=1 // pred_check
      _
    $region31: #{tpu_custom_call.1} parent=1 // pred_check_branch
      %4182 = sbr.rel (0) target = $region33
    $region32: #{tpu_custom_call.1} parent=1 // pred_region
      %s4184 = ssub.s32 32, 16
      %4185 = vsyncadd [#allocation5], %s4184
      %s4187 = sshll.u32 [#allocation8], 4
      %s4188 = int_to_ptr.vmem [resolvable:$true] %s4187
      %4190 = dma.vmem_to_hbm [thread:$0]  %s4188, 16, %s5, [#allocation5]
    $region33: #{tpu_custom_call.1} parent=1 // pred_fallthru
      _
    // Predicated region
    $region34: #{tpu_custom_call.1} parent=1 // pred_check
      _
    $region35: #{tpu_custom_call.1} parent=1 // pred_check_branch
      %4192 = sbr.rel (0) target = $region37
    $region36: #{tpu_custom_call.1} parent=1 // pred_region
      %4193 = dma.done [#allocation5], 32
    $region37: #{tpu_custom_call.1} parent=1 // pred_fallthru
      _
    %4194 = vsyncpa [#allocation4], 1
    %4195 = vsyncpa [#allocation7], 1
    %4196 = vsyncpa [#allocation5], 1

</llo_original>
